<compile_context>
chip_gen: v7x
topology: tpu7x:2x2x1
jax: 0.10.0
libtpu: 0.0.40
codegen_flags: <defaults>
</compile_context>

<pallas_src>
import jax
import jax.numpy as jnp
import numpy as np
from jax.experimental import pallas as pl
from jax.experimental.pallas import tpu as pltpu


_LANE = 128     # TPU lane width
_LPAD = 8       # sublane-aligned interior start column of the halo scratch


def _round_up(n, m=_LANE):
    return ((n + m - 1) // m) * m


def _pad_axis(a, axis, target):
    if a.shape[axis] == target:
        return a
    pad = [(0, 0)] * a.ndim
    pad[axis] = (0, target - a.shape[axis])
    return jnp.pad(a, pad)


def _silu_approx(v):
    # v * sigmoid(v); divide goes to the EUP (approx reciprocal) instead of VALU.
    return v * pl.reciprocal(1.0 + jnp.exp(-v), approx=True)


def _sigmoid_approx(v):
    return pl.reciprocal(1.0 + jnp.exp(-v), approx=True)


def _make_kernel(Nb, H, W, Cin_p, Cinner_p, Cout_p, K, stride, residual):
    p = K // 2
    assert K % 2 == 1, "same-padded depthwise identity assumes odd kernel size"
    assert p <= _LPAD
    Hout = (H + 2 * p - K) // stride + 1
    Wout = (W + 2 * p - K) // stride + 1
    PW = _LPAD + W + p          # scratch width; interior columns [_LPAD, _LPAD+W)

    def kernel(x_ref, w1_ref, b1_ref, wdw_ref, bdw_ref, w3_ref, b3_ref,
               wse1_ref, bse1_ref, wse2_ref, bse2_ref, o_ref, pad_ref):
        # ---- 1x1 expansion conv (BN1 folded) + SiLU; bf16 MXU, f32 accumulate
        x = x_ref[...]                                        # (Nb,H,W,Cin_p) bf16
        xm = x.reshape(Nb * H * W, Cin_p)
        h1 = jnp.dot(xm, w1_ref[...],
                     preferred_element_type=jnp.float32) + b1_ref[...]
        h1 = _silu_approx(h1)
        h = h1.reshape(Nb, H, W, Cinner_p)

        # ---- depthwise KxK conv (BN2 folded) + SiLU on a halo scratch.
        # Zero only the halo strips the window loop reads, every step (the
        # interior is always overwritten; per-step zeroing stays correct when
        # the "parallel" batch axis is sharded across cores).
        if p > 0:
            zrow = jnp.zeros((Nb, p, W + 2 * p, Cinner_p), jnp.float32)
            pad_ref[:, 0:p, _LPAD - p:_LPAD + W + p] = zrow
            pad_ref[:, p + H:p + H + p, _LPAD - p:_LPAD + W + p] = zrow
            zcol = jnp.zeros((Nb, H + 2 * p, p, Cinner_p), jnp.float32)
            pad_ref[:, :, _LPAD - p:_LPAD] = zcol
            pad_ref[:, :, _LPAD + W:_LPAD + W + p] = zcol
        pad_ref[:, p:p + H, _LPAD:_LPAD + W] = h              # sublane-aligned store

        wdw = wdw_ref[...]                                    # (K,K,Cinner_p) f32
        acc = jnp.zeros((Nb, Hout, Wout, Cinner_p), jnp.float32)
        for ky in range(K):
            for kx in range(K):
                c0 = _LPAD - p + kx
                if stride == 1:
                    win = pad_ref[:, ky:ky + Hout, c0:c0 + Wout, :]
                else:
                    # stride-aware: compute only the output grid
                    win = pad_ref[:, pl.ds(ky, Hout, stride=stride),
                                     pl.ds(c0, Wout, stride=stride), :]
                acc = acc + win * wdw[ky, kx]
        h2 = _silu_approx(acc + bdw_ref[...].reshape(1, 1, 1, Cinner_p))

        # ---- 1x1 projection conv (BN3 folded); linear bottleneck (no activation)
        h2m = h2.reshape(Nb * Hout * Wout, Cinner_p).astype(jnp.bfloat16)
        out = jnp.dot(h2m, w3_ref[...],
                      preferred_element_type=jnp.float32) + b3_ref[...]
        outb = out.reshape(Nb, Hout * Wout, Cout_p)

        # ---- squeeze & excitation (global avg pool + 2 tiny FCs + sigmoid gate)
        att = jnp.mean(outb, axis=1)                          # (Nb, Cout_p)
        s = jnp.dot(att.astype(jnp.bfloat16), wse1_ref[...],
                    preferred_element_type=jnp.float32) + bse1_ref[...]
        s = _silu_approx(s)
        s = jnp.dot(s.astype(jnp.bfloat16), wse2_ref[...],
                    preferred_element_type=jnp.float32) + bse2_ref[...]
        s = _sigmoid_approx(s)
        outb = outb * s[:, None, :]

        # ---- residual (inference path of stochastic depth)
        if stride == 1 and residual:
            outb = outb + xm.reshape(Nb, H * W, Cin_p).astype(jnp.float32)

        o_ref[...] = outb.reshape(Nb, Hout, Wout, Cout_p)

    scratch = pltpu.VMEM((Nb, H + 2 * p, PW, Cinner_p), jnp.float32)
    return kernel, Hout, Wout, scratch


def init_params(key, input_channels, output_channels, expansion_ratio, kernel_size):
    """Deterministic synthetic parameters with PyTorch-layout shapes."""
    inner = input_channels * expansion_ratio
    reduced = output_channels // 4
    ks = jax.random.split(key, 24)

    def nrm(k, shape, s=0.1):
        return (s * jax.random.normal(k, shape)).astype(jnp.float32)

    def pos(k, shape):
        return jax.random.uniform(k, shape, minval=0.5, maxval=1.5).astype(jnp.float32)

    return {
        "conv1_w": nrm(ks[0], (inner, input_channels, 1, 1), 0.3),
        "conv1_b": nrm(ks[1], (inner,)),
        "bn1": (pos(ks[2], (inner,)), nrm(ks[3], (inner,)),
                nrm(ks[4], (inner,)), pos(ks[5], (inner,))),
        "dw_w": nrm(ks[6], (inner, 1, kernel_size, kernel_size), 0.3),
        "dw_b": nrm(ks[7], (inner,)),
        "bn2": (pos(ks[8], (inner,)), nrm(ks[9], (inner,)),
                nrm(ks[10], (inner,)), pos(ks[11], (inner,))),
        "conv3_w": nrm(ks[12], (output_channels, inner, 1, 1), 0.3),
        "conv3_b": nrm(ks[13], (output_channels,)),
        "bn3": (pos(ks[14], (output_channels,)), nrm(ks[15], (output_channels,)),
                nrm(ks[16], (output_channels,)), pos(ks[17], (output_channels,))),
        "lin1_w": nrm(ks[18], (reduced, output_channels), 0.3),
        "lin1_b": nrm(ks[19], (reduced,)),
        "lin2_w": nrm(ks[20], (output_channels, reduced), 0.3),
        "lin2_b": nrm(ks[21], (output_channels,)),
    }


def fold_params(p, eps=1e-5):
    """Fold eval-mode BatchNorm into conv weights; produce kernel-layout arrays."""
    g1, be1, m1, v1 = p["bn1"]; s1 = g1 / jnp.sqrt(v1 + eps)
    w1f = (p["conv1_w"][:, :, 0, 0] * s1[:, None]).T                  # (Cin, inner)
    b1f = (s1 * (p["conv1_b"] - m1) + be1)[None, :]                   # (1, inner)

    g2, be2, m2, v2 = p["bn2"]; s2 = g2 / jnp.sqrt(v2 + eps)
    wdwf = jnp.transpose(p["dw_w"][:, 0], (1, 2, 0)) * s2             # (K, K, inner)
    bdwf = (s2 * (p["dw_b"] - m2) + be2)[None, :]                     # (1, inner)

    g3, be3, m3, v3 = p["bn3"]; s3 = g3 / jnp.sqrt(v3 + eps)
    w3f = (p["conv3_w"][:, :, 0, 0] * s3[:, None]).T                  # (inner, Cout)
    b3f = (s3 * (p["conv3_b"] - m3) + be3)[None, :]                   # (1, Cout)

    wse1 = p["lin1_w"].T                                              # (Cout, reduced)
    bse1 = p["lin1_b"][None, :]                                       # (1, reduced)
    wse2 = p["lin2_w"].T                                              # (reduced, Cout)
    bse2 = p["lin2_b"][None, :]                                       # (1, Cout)
    return w1f, b1f, wdwf, bdwf, w3f, b3f, wse1, bse1, wse2, bse2


def inverted_linear_bottleneck(x_nchw, folded, *, kernel_size, stride,
                               residual=True, batch_tile=None):
    N, Cin, H, W = x_nchw.shape
    w1f, b1f, wdwf, bdwf, w3f, b3f, wse1, bse1, wse2, bse2 = folded
    Cinner = w1f.shape[1]
    Cout = w3f.shape[1]
    red = wse1.shape[1]
    K = kernel_size
    if stride == 1 and residual:
        assert Cin == Cout, "residual path requires input_channels == output_channels"

    # Batch a few small images per grid step: amortizes ~0.35us/step overhead and
    # enlarges the MXU M dimension.  (Keep tile small so per-step VMEM stays low.)
    if batch_tile is None:
        batch_tile = 1
        for cand in (4, 2):
            if N % cand == 0:
                batch_tile = cand
                break
    assert N % batch_tile == 0

    # Lane-dense channel padding (multiples of 128) + bf16 matmul operands.
    Cin_p, Cinner_p, Cout_p, red_p = (_round_up(c) for c in (Cin, Cinner, Cout, red))
    bf16, f32 = jnp.bfloat16, jnp.float32
    w1p = _pad_axis(_pad_axis(w1f, 0, Cin_p), 1, Cinner_p).astype(bf16)
    b1p = _pad_axis(b1f, 1, Cinner_p).astype(f32)
    wdwp = _pad_axis(wdwf, 2, Cinner_p).astype(f32)      # depthwise stays f32 (VPU)
    bdwp = _pad_axis(bdwf, 1, Cinner_p).astype(f32)
    w3p = _pad_axis(_pad_axis(w3f, 0, Cinner_p), 1, Cout_p).astype(bf16)
    b3p = _pad_axis(b3f, 1, Cout_p).astype(f32)
    wse1p = _pad_axis(_pad_axis(wse1, 0, Cout_p), 1, red_p).astype(bf16)
    bse1p = _pad_axis(bse1, 1, red_p).astype(f32)
    wse2p = _pad_axis(_pad_axis(wse2, 0, red_p), 1, Cout_p).astype(bf16)
    bse2p = _pad_axis(bse2, 1, Cout_p).astype(f32)

    x_nhwc = _pad_axis(jnp.transpose(x_nchw, (0, 2, 3, 1)).astype(bf16), 3, Cin_p)

    kernel, Hout, Wout, scratch = _make_kernel(
        batch_tile, H, W, Cin_p, Cinner_p, Cout_p, K, stride, residual)

    def full(shape):
        n = len(shape)
        return pl.BlockSpec(shape, lambda b, _n=n: (0,) * _n)
    # TODO(synk): on v7x (64 MiB VMEM) at production EfficientNet resolutions,
    # row-band tile H with a K-1 halo and single-buffer the weight specs
    # (pipeline_mode=pl.Buffered(1)) to stay under the scoped VMEM limit.

    weights = (w1p, b1p, wdwp, bdwp, w3p, b3p, wse1p, bse1p, wse2p, bse2p)

    # Advisory cost estimate so XLA can overlap the surrounding transposes/pads.
    flops = N * (2 * H * W * Cin_p * Cinner_p
                 + 2 * K * K * Hout * Wout * Cinner_p
                 + 2 * Hout * Wout * Cinner_p * Cout_p
                 + 4 * Cout_p * red_p)
    transcendentals = N * (H * W * Cinner_p + Hout * Wout * Cinner_p + red_p + Cout_p)
    bytes_accessed = (int(x_nhwc.size) * 2 + N * Hout * Wout * Cout_p * 4
                      + sum(int(a.size) * a.dtype.itemsize for a in weights))

    out_nhwc = pl.pallas_call(
        kernel,
        out_shape=jax.ShapeDtypeStruct((N, Hout, Wout, Cout_p), jnp.float32),
        grid_spec=pltpu.PrefetchScalarGridSpec(
            num_scalar_prefetch=0,
            grid=(N // batch_tile,),
            in_specs=[pl.BlockSpec((batch_tile, H, W, Cin_p), lambda b: (b, 0, 0, 0))]
                     + [full(a.shape) for a in weights],
            out_specs=pl.BlockSpec((batch_tile, Hout, Wout, Cout_p),
                                   lambda b: (b, 0, 0, 0)),
            scratch_shapes=[scratch],
        ),
        compiler_params=pltpu.CompilerParams(dimension_semantics=("parallel",)),
        cost_estimate=pl.CostEstimate(flops=flops, transcendentals=transcendentals,
                                      bytes_accessed=bytes_accessed),
    )(x_nhwc, *weights)

    # Drop channel padding, back to NCHW.
    return jnp.transpose(out_nhwc[..., :Cout], (0, 3, 1, 2))


def reference(x_nchw, folded, *, kernel_size, stride, residual=True):
    """Pure-JAX reference mirroring the PyTorch forward (eval mode) with the same
    mixed-precision contract as the kernel: bf16 matmul inputs, f32 accumulation,
    f32 depthwise math."""
    w1f, b1f, wdwf, bdwf, w3f, b3f, wse1, bse1, wse2, bse2 = folded
    K = kernel_size
    pd = K // 2
    bf16, f32 = jnp.bfloat16, jnp.float32
    x = jnp.transpose(x_nchw, (0, 2, 3, 1)).astype(bf16)
    N, H, W, Cin = x.shape
    y = jax.nn.silu(jnp.einsum("nhwc,cd->nhwd", x, w1f.astype(bf16),
                               preferred_element_type=f32) + b1f[0])
    yp = jnp.pad(y, ((0, 0), (pd, pd), (pd, pd), (0, 0)))
    acc = jnp.zeros_like(y)
    for ky in range(K):
        for kx in range(K):
            acc = acc + yp[:, ky:ky + H, kx:kx + W, :] * wdwf[ky, kx]
    y2 = jax.nn.silu(acc + bdwf[0])
    if stride > 1:
        y2 = y2[:, ::stride, ::stride, :]
    out = jnp.einsum("nhwc,cd->nhwd", y2.astype(bf16), w3f.astype(bf16),
                     preferred_element_type=f32) + b3f[0]
    att = out.mean(axis=(1, 2))
    s = jax.nn.silu(jnp.dot(att.astype(bf16), wse1.astype(bf16),
                            preferred_element_type=f32) + bse1[0])
    s = jax.nn.sigmoid(jnp.dot(s.astype(bf16), wse2.astype(bf16),
                               preferred_element_type=f32) + bse2[0])
    out = out * s[:, None, None, :]
    if stride == 1 and residual:
        out = out + x.astype(f32)
    return jnp.transpose(out, (0, 3, 1, 2))


if __name__ == "__main__":
    key = jax.random.PRNGKey(0)
    kx_key, kp_key = jax.random.split(key)

    # small shapes consistent with the module
    N, Cin, H, W = 2, 8, 16, 16
    Cout, expansion, K, stride = 8, 4, 3, 1          # inner = 32, SE reduced = 2

    x = jax.random.normal(kx_key, (N, Cin, H, W), dtype=jnp.float32)
    params = init_params(kp_key, Cin, Cout, expansion, K)
    folded = fold_params(params)

    out = inverted_linear_bottleneck(x, folded, kernel_size=K, stride=stride,
                                     residual=True)
    out = jax.block_until_ready(out)

    ref = reference(x, folded, kernel_size=K, stride=stride, residual=True)
    assert out.shape == (N, Cout, H, W)
    # Tolerance covers bf16 MXU inputs and the approximate EUP reciprocal used
    # in SiLU / sigmoid inside the kernel.
    np.testing.assert_allclose(np.asarray(out), np.asarray(ref), rtol=2e-2, atol=2e-2)
    print("KERNEL_OK")
</pallas_src>

<mosaic_0001>
module attributes {stable_mosaic.version = 11 : i64} {
  func.func @kernel(%arg0: i32, %arg1: memref<2x16x16x128xbf16, #tpu.memory_space<vmem>>, %arg2: memref<128x128xbf16, #tpu.memory_space<vmem>>, %arg3: memref<1x128xf32, #tpu.memory_space<vmem>>, %arg4: memref<3x3x128xf32, #tpu.memory_space<vmem>>, %arg5: memref<1x128xf32, #tpu.memory_space<vmem>>, %arg6: memref<128x128xbf16, #tpu.memory_space<vmem>>, %arg7: memref<1x128xf32, #tpu.memory_space<vmem>>, %arg8: memref<128x128xbf16, #tpu.memory_space<vmem>>, %arg9: memref<1x128xf32, #tpu.memory_space<vmem>>, %arg10: memref<128x128xbf16, #tpu.memory_space<vmem>>, %arg11: memref<1x128xf32, #tpu.memory_space<vmem>>, %arg12: memref<2x16x16x128xf32, #tpu.memory_space<vmem>>, %arg13: memref<2x18x25x128xf32, #tpu.memory_space<vmem>>) attributes {dimension_semantics = [#tpu.dimension_semantics<parallel>], iteration_bounds = array<i64: 1>, scalar_prefetch = 0 : i64, scratch_operands = 1 : i64, tpu.core_type = #tpu.core_type<tc>, window_params = [{transform_indices = @transform_0, window_bounds = array<i64: 2, 16, 16, 128>}, {pipeline_mode = #tpu.pipeline_mode<synchronous>, transform_indices = @transform_1, window_bounds = array<i64: 128, 128>}, {pipeline_mode = #tpu.pipeline_mode<synchronous>, transform_indices = @transform_2, window_bounds = array<i64: 1, 128>}, {pipeline_mode = #tpu.pipeline_mode<synchronous>, transform_indices = @transform_3, window_bounds = array<i64: 3, 3, 128>}, {pipeline_mode = #tpu.pipeline_mode<synchronous>, transform_indices = @transform_4, window_bounds = array<i64: 1, 128>}, {pipeline_mode = #tpu.pipeline_mode<synchronous>, transform_indices = @transform_5, window_bounds = array<i64: 128, 128>}, {pipeline_mode = #tpu.pipeline_mode<synchronous>, transform_indices = @transform_6, window_bounds = array<i64: 1, 128>}, {pipeline_mode = #tpu.pipeline_mode<synchronous>, transform_indices = @transform_7, window_bounds = array<i64: 128, 128>}, {pipeline_mode = #tpu.pipeline_mode<synchronous>, transform_indices = @transform_8, window_bounds = array<i64: 1, 128>}, {pipeline_mode = #tpu.pipeline_mode<synchronous>, transform_indices = @transform_9, window_bounds = array<i64: 128, 128>}, {pipeline_mode = #tpu.pipeline_mode<synchronous>, transform_indices = @transform_10, window_bounds = array<i64: 1, 128>}, {transform_indices = @transform_11, window_bounds = array<i64: 2, 16, 16, 128>}]} {
    %c0 = arith.constant 0 : index
    %c0_0 = arith.constant 0 : index
    %c0_1 = arith.constant 0 : index
    %c0_2 = arith.constant 0 : index
    %0 = vector.load %arg1[%c0, %c0_0, %c0_1, %c0_2] : memref<2x16x16x128xbf16, #tpu.memory_space<vmem>>, vector<2x16x16x128xbf16>
    %1 = vector.shape_cast %0 : vector<2x16x16x128xbf16> to vector<512x128xbf16>
    %c0_3 = arith.constant 0 : index
    %c0_4 = arith.constant 0 : index
    %2 = vector.load %arg2[%c0_3, %c0_4] : memref<128x128xbf16, #tpu.memory_space<vmem>>, vector<128x128xbf16>
    %cst = arith.constant dense<0.000000e+00> : vector<512x128xf32>
    %3 = tpu.matmul %1, %2, %cst {dimension_numbers = #tpu.dot_dimension_numbers<[1], [0], [0], [1], [0, 0, 1, 1], [], []>} : vector<512x128xbf16>, vector<128x128xbf16>, vector<512x128xf32> -> vector<512x128xf32>
    %c0_5 = arith.constant 0 : index
    %c0_6 = arith.constant 0 : index
    %4 = vector.load %arg3[%c0_5, %c0_6] : memref<1x128xf32, #tpu.memory_space<vmem>>, vector<1x128xf32>
    %5 = vector.broadcast %4 : vector<1x128xf32> to vector<512x128xf32>
    %6 = arith.addf %3, %5 : vector<512x128xf32>
    %cst_7 = arith.constant 0.000000e+00 : f32
    %7 = vector.broadcast %cst_7 : f32 to vector<512x128xf32>
    %8 = arith.subf %7, %6 : vector<512x128xf32>
    %9 = math.exp %8 : vector<512x128xf32>
    %cst_8 = arith.constant 1.000000e+00 : f32
    %10 = vector.broadcast %cst_8 : f32 to vector<512x128xf32>
    %11 = arith.addf %10, %9 : vector<512x128xf32>
    %12 = tpu.reciprocal %11 {approx = true} : vector<512x128xf32> -> vector<512x128xf32>
    %13 = arith.mulf %6, %12 : vector<512x128xf32>
    %14 = vector.shape_cast %13 : vector<512x128xf32> to vector<2x16x16x128xf32>
    %cst_9 = arith.constant 0.000000e+00 : f32
    %15 = vector.broadcast %cst_9 : f32 to vector<2x1x18x128xf32>
    %c0_10 = arith.constant 0 : index
    %c0_11 = arith.constant 0 : index
    %c7 = arith.constant 7 : index
    %c0_12 = arith.constant 0 : index
    %16 = vector.load %arg13[%c0_10, %c0_11, %c7, %c0_12] : memref<2x18x25x128xf32, #tpu.memory_space<vmem>>, vector<2x1x18x128xf32>
    tpu.vector_store %arg13[%c0_10, %c0_11, %c7, %c0_12], %15 {strides = array<i32>} : memref<2x18x25x128xf32, #tpu.memory_space<vmem>>, vector<2x1x18x128xf32>,
    %c0_13 = arith.constant 0 : index
    %c17 = arith.constant 17 : index
    %c7_14 = arith.constant 7 : index
    %c0_15 = arith.constant 0 : index
    %17 = vector.load %arg13[%c0_13, %c17, %c7_14, %c0_15] : memref<2x18x25x128xf32, #tpu.memory_space<vmem>>, vector<2x1x18x128xf32>
    tpu.vector_store %arg13[%c0_13, %c17, %c7_14, %c0_15], %15 {strides = array<i32>} : memref<2x18x25x128xf32, #tpu.memory_space<vmem>>, vector<2x1x18x128xf32>,
    %cst_16 = arith.constant 0.000000e+00 : f32
    %18 = vector.broadcast %cst_16 : f32 to vector<2x18x1x128xf32>
    %c0_17 = arith.constant 0 : index
    %c0_18 = arith.constant 0 : index
    %c7_19 = arith.constant 7 : index
    %c0_20 = arith.constant 0 : index
    %19 = vector.load %arg13[%c0_17, %c0_18, %c7_19, %c0_20] : memref<2x18x25x128xf32, #tpu.memory_space<vmem>>, vector<2x18x1x128xf32>
    tpu.vector_store %arg13[%c0_17, %c0_18, %c7_19, %c0_20], %18 {strides = array<i32>} : memref<2x18x25x128xf32, #tpu.memory_space<vmem>>, vector<2x18x1x128xf32>,
    %c0_21 = arith.constant 0 : index
    %c0_22 = arith.constant 0 : index
    %c24 = arith.constant 24 : index
    %c0_23 = arith.constant 0 : index
    %20 = vector.load %arg13[%c0_21, %c0_22, %c24, %c0_23] : memref<2x18x25x128xf32, #tpu.memory_space<vmem>>, vector<2x18x1x128xf32>
    tpu.vector_store %arg13[%c0_21, %c0_22, %c24, %c0_23], %18 {strides = array<i32>} : memref<2x18x25x128xf32, #tpu.memory_space<vmem>>, vector<2x18x1x128xf32>,
    %c0_24 = arith.constant 0 : index
    %c1 = arith.constant 1 : index
    %c8 = arith.constant 8 : index
    %c0_25 = arith.constant 0 : index
    %21 = vector.load %arg13[%c0_24, %c1, %c8, %c0_25] : memref<2x18x25x128xf32, #tpu.memory_space<vmem>>, vector<2x16x16x128xf32>
    tpu.vector_store %arg13[%c0_24, %c1, %c8, %c0_25], %14 {strides = array<i32>} : memref<2x18x25x128xf32, #tpu.memory_space<vmem>>, vector<2x16x16x128xf32>,
    %c0_26 = arith.constant 0 : index
    %c0_27 = arith.constant 0 : index
    %c0_28 = arith.constant 0 : index
    %22 = vector.load %arg4[%c0_26, %c0_27, %c0_28] : memref<3x3x128xf32, #tpu.memory_space<vmem>>, vector<3x3x128xf32>
    %cst_29 = arith.constant 0.000000e+00 : f32
    %23 = vector.broadcast %cst_29 : f32 to vector<2x16x16x128xf32>
    %c0_30 = arith.constant 0 : index
    %c0_31 = arith.constant 0 : index
    %c7_32 = arith.constant 7 : index
    %c0_33 = arith.constant 0 : index
    %24 = vector.load %arg13[%c0_30, %c0_31, %c7_32, %c0_33] : memref<2x18x25x128xf32, #tpu.memory_space<vmem>>, vector<2x16x16x128xf32>
    %25 = vector.extract_strided_slice %22 {offsets = [0, 0, 0], sizes = [1, 1, 128], strides = [1, 1, 1]} : vector<3x3x128xf32> to vector<1x1x128xf32>
    %26 = vector.shape_cast %25 : vector<1x1x128xf32> to vector<128xf32>
    %27 = vector.shape_cast %26 : vector<128xf32> to vector<1x1x1x128xf32>
    %28 = vector.broadcast %27 : vector<1x1x1x128xf32> to vector<2x16x16x128xf32>
    %29 = arith.mulf %24, %28 : vector<2x16x16x128xf32>
    %30 = arith.addf %23, %29 : vector<2x16x16x128xf32>
    %c0_34 = arith.constant 0 : index
    %c0_35 = arith.constant 0 : index
    %c8_36 = arith.constant 8 : index
    %c0_37 = arith.constant 0 : index
    %31 = vector.load %arg13[%c0_34, %c0_35, %c8_36, %c0_37] : memref<2x18x25x128xf32, #tpu.memory_space<vmem>>, vector<2x16x16x128xf32>
    %32 = vector.extract_strided_slice %22 {offsets = [0, 1, 0], sizes = [1, 1, 128], strides = [1, 1, 1]} : vector<3x3x128xf32> to vector<1x1x128xf32>
    %33 = vector.shape_cast %32 : vector<1x1x128xf32> to vector<128xf32>
    %34 = vector.shape_cast %33 : vector<128xf32> to vector<1x1x1x128xf32>
    %35 = vector.broadcast %34 : vector<1x1x1x128xf32> to vector<2x16x16x128xf32>
    %36 = arith.mulf %31, %35 : vector<2x16x16x128xf32>
    %37 = arith.addf %30, %36 : vector<2x16x16x128xf32>
    %c0_38 = arith.constant 0 : index
    %c0_39 = arith.constant 0 : index
    %c9 = arith.constant 9 : index
    %c0_40 = arith.constant 0 : index
    %38 = vector.load %arg13[%c0_38, %c0_39, %c9, %c0_40] : memref<2x18x25x128xf32, #tpu.memory_space<vmem>>, vector<2x16x16x128xf32>
    %39 = vector.extract_strided_slice %22 {offsets = [0, 2, 0], sizes = [1, 1, 128], strides = [1, 1, 1]} : vector<3x3x128xf32> to vector<1x1x128xf32>
    %40 = vector.shape_cast %39 : vector<1x1x128xf32> to vector<128xf32>
    %41 = vector.shape_cast %40 : vector<128xf32> to vector<1x1x1x128xf32>
    %42 = vector.broadcast %41 : vector<1x1x1x128xf32> to vector<2x16x16x128xf32>
    %43 = arith.mulf %38, %42 : vector<2x16x16x128xf32>
    %44 = arith.addf %37, %43 : vector<2x16x16x128xf32>
    %c0_41 = arith.constant 0 : index
    %c1_42 = arith.constant 1 : index
    %c7_43 = arith.constant 7 : index
    %c0_44 = arith.constant 0 : index
    %45 = vector.load %arg13[%c0_41, %c1_42, %c7_43, %c0_44] : memref<2x18x25x128xf32, #tpu.memory_space<vmem>>, vector<2x16x16x128xf32>
    %46 = vector.extract_strided_slice %22 {offsets = [1, 0, 0], sizes = [1, 1, 128], strides = [1, 1, 1]} : vector<3x3x128xf32> to vector<1x1x128xf32>
    %47 = vector.shape_cast %46 : vector<1x1x128xf32> to vector<128xf32>
    %48 = vector.shape_cast %47 : vector<128xf32> to vector<1x1x1x128xf32>
    %49 = vector.broadcast %48 : vector<1x1x1x128xf32> to vector<2x16x16x128xf32>
    %50 = arith.mulf %45, %49 : vector<2x16x16x128xf32>
    %51 = arith.addf %44, %50 : vector<2x16x16x128xf32>
    %c0_45 = arith.constant 0 : index
    %c1_46 = arith.constant 1 : index
    %c8_47 = arith.constant 8 : index
    %c0_48 = arith.constant 0 : index
    %52 = vector.load %arg13[%c0_45, %c1_46, %c8_47, %c0_48] : memref<2x18x25x128xf32, #tpu.memory_space<vmem>>, vector<2x16x16x128xf32>
    %53 = vector.extract_strided_slice %22 {offsets = [1, 1, 0], sizes = [1, 1, 128], strides = [1, 1, 1]} : vector<3x3x128xf32> to vector<1x1x128xf32>
    %54 = vector.shape_cast %53 : vector<1x1x128xf32> to vector<128xf32>
    %55 = vector.shape_cast %54 : vector<128xf32> to vector<1x1x1x128xf32>
    %56 = vector.broadcast %55 : vector<1x1x1x128xf32> to vector<2x16x16x128xf32>
    %57 = arith.mulf %52, %56 : vector<2x16x16x128xf32>
    %58 = arith.addf %51, %57 : vector<2x16x16x128xf32>
    %c0_49 = arith.constant 0 : index
    %c1_50 = arith.constant 1 : index
    %c9_51 = arith.constant 9 : index
    %c0_52 = arith.constant 0 : index
    %59 = vector.load %arg13[%c0_49, %c1_50, %c9_51, %c0_52] : memref<2x18x25x128xf32, #tpu.memory_space<vmem>>, vector<2x16x16x128xf32>
    %60 = vector.extract_strided_slice %22 {offsets = [1, 2, 0], sizes = [1, 1, 128], strides = [1, 1, 1]} : vector<3x3x128xf32> to vector<1x1x128xf32>
    %61 = vector.shape_cast %60 : vector<1x1x128xf32> to vector<128xf32>
    %62 = vector.shape_cast %61 : vector<128xf32> to vector<1x1x1x128xf32>
    %63 = vector.broadcast %62 : vector<1x1x1x128xf32> to vector<2x16x16x128xf32>
    %64 = arith.mulf %59, %63 : vector<2x16x16x128xf32>
    %65 = arith.addf %58, %64 : vector<2x16x16x128xf32>
    %c0_53 = arith.constant 0 : index
    %c2 = arith.constant 2 : index
    %c7_54 = arith.constant 7 : index
    %c0_55 = arith.constant 0 : index
    %66 = vector.load %arg13[%c0_53, %c2, %c7_54, %c0_55] : memref<2x18x25x128xf32, #tpu.memory_space<vmem>>, vector<2x16x16x128xf32>
    %67 = vector.extract_strided_slice %22 {offsets = [2, 0, 0], sizes = [1, 1, 128], strides = [1, 1, 1]} : vector<3x3x128xf32> to vector<1x1x128xf32>
    %68 = vector.shape_cast %67 : vector<1x1x128xf32> to vector<128xf32>
    %69 = vector.shape_cast %68 : vector<128xf32> to vector<1x1x1x128xf32>
    %70 = vector.broadcast %69 : vector<1x1x1x128xf32> to vector<2x16x16x128xf32>
    %71 = arith.mulf %66, %70 : vector<2x16x16x128xf32>
    %72 = arith.addf %65, %71 : vector<2x16x16x128xf32>
    %c0_56 = arith.constant 0 : index
    %c2_57 = arith.constant 2 : index
    %c8_58 = arith.constant 8 : index
    %c0_59 = arith.constant 0 : index
    %73 = vector.load %arg13[%c0_56, %c2_57, %c8_58, %c0_59] : memref<2x18x25x128xf32, #tpu.memory_space<vmem>>, vector<2x16x16x128xf32>
    %74 = vector.extract_strided_slice %22 {offsets = [2, 1, 0], sizes = [1, 1, 128], strides = [1, 1, 1]} : vector<3x3x128xf32> to vector<1x1x128xf32>
    %75 = vector.shape_cast %74 : vector<1x1x128xf32> to vector<128xf32>
    %76 = vector.shape_cast %75 : vector<128xf32> to vector<1x1x1x128xf32>
    %77 = vector.broadcast %76 : vector<1x1x1x128xf32> to vector<2x16x16x128xf32>
    %78 = arith.mulf %73, %77 : vector<2x16x16x128xf32>
    %79 = arith.addf %72, %78 : vector<2x16x16x128xf32>
    %c0_60 = arith.constant 0 : index
    %c2_61 = arith.constant 2 : index
    %c9_62 = arith.constant 9 : index
    %c0_63 = arith.constant 0 : index
    %80 = vector.load %arg13[%c0_60, %c2_61, %c9_62, %c0_63] : memref<2x18x25x128xf32, #tpu.memory_space<vmem>>, vector<2x16x16x128xf32>
    %81 = vector.extract_strided_slice %22 {offsets = [2, 2, 0], sizes = [1, 1, 128], strides = [1, 1, 1]} : vector<3x3x128xf32> to vector<1x1x128xf32>
    %82 = vector.shape_cast %81 : vector<1x1x128xf32> to vector<128xf32>
    %83 = vector.shape_cast %82 : vector<128xf32> to vector<1x1x1x128xf32>
    %84 = vector.broadcast %83 : vector<1x1x1x128xf32> to vector<2x16x16x128xf32>
    %85 = arith.mulf %80, %84 : vector<2x16x16x128xf32>
    %86 = arith.addf %79, %85 : vector<2x16x16x128xf32>
    %c0_64 = arith.constant 0 : index
    %c0_65 = arith.constant 0 : index
    %87 = vector.load %arg5[%c0_64, %c0_65] : memref<1x128xf32, #tpu.memory_space<vmem>>, vector<1x128xf32>
    %88 = vector.shape_cast %87 : vector<1x128xf32> to vector<1x1x1x128xf32>
    %89 = vector.broadcast %88 : vector<1x1x1x128xf32> to vector<2x16x16x128xf32>
    %90 = arith.addf %86, %89 : vector<2x16x16x128xf32>
    %cst_66 = arith.constant 0.000000e+00 : f32
    %91 = vector.broadcast %cst_66 : f32 to vector<2x16x16x128xf32>
    %92 = arith.subf %91, %90 : vector<2x16x16x128xf32>
    %93 = math.exp %92 : vector<2x16x16x128xf32>
    %cst_67 = arith.constant 1.000000e+00 : f32
    %94 = vector.broadcast %cst_67 : f32 to vector<2x16x16x128xf32>
    %95 = arith.addf %94, %93 : vector<2x16x16x128xf32>
    %96 = tpu.reciprocal %95 {approx = true} : vector<2x16x16x128xf32> -> vector<2x16x16x128xf32>
    %97 = arith.mulf %90, %96 : vector<2x16x16x128xf32>
    %98 = vector.shape_cast %97 : vector<2x16x16x128xf32> to vector<512x128xf32>
    %99 = arith.truncf %98 : vector<512x128xf32> to vector<512x128xbf16>
    %c0_68 = arith.constant 0 : index
    %c0_69 = arith.constant 0 : index
    %100 = vector.load %arg6[%c0_68, %c0_69] : memref<128x128xbf16, #tpu.memory_space<vmem>>, vector<128x128xbf16>
    %cst_70 = arith.constant dense<0.000000e+00> : vector<512x128xf32>
    %101 = tpu.matmul %99, %100, %cst_70 {dimension_numbers = #tpu.dot_dimension_numbers<[1], [0], [0], [1], [0, 0, 1, 1], [], []>} : vector<512x128xbf16>, vector<128x128xbf16>, vector<512x128xf32> -> vector<512x128xf32>
    %c0_71 = arith.constant 0 : index
    %c0_72 = arith.constant 0 : index
    %102 = vector.load %arg7[%c0_71, %c0_72] : memref<1x128xf32, #tpu.memory_space<vmem>>, vector<1x128xf32>
    %103 = vector.broadcast %102 : vector<1x128xf32> to vector<512x128xf32>
    %104 = arith.addf %101, %103 : vector<512x128xf32>
    %105 = vector.shape_cast %104 : vector<512x128xf32> to vector<2x256x128xf32>
    %cst_73 = arith.constant dense<0.000000e+00> : vector<2x128xf32>
    %106 = vector.multi_reduction <add>, %105, %cst_73 [1] : vector<2x256x128xf32> to vector<2x128xf32>
    %cst_74 = arith.constant 2.560000e+02 : f32
    %107 = vector.broadcast %cst_74 : f32 to vector<2x128xf32>
    %108 = arith.divf %106, %107 : vector<2x128xf32>
    %109 = arith.truncf %108 : vector<2x128xf32> to vector<2x128xbf16>
    %c0_75 = arith.constant 0 : index
    %c0_76 = arith.constant 0 : index
    %110 = vector.load %arg8[%c0_75, %c0_76] : memref<128x128xbf16, #tpu.memory_space<vmem>>, vector<128x128xbf16>
    %cst_77 = arith.constant dense<0.000000e+00> : vector<2x128xf32>
    %111 = tpu.matmul %109, %110, %cst_77 {dimension_numbers = #tpu.dot_dimension_numbers<[1], [0], [0], [1], [0, 0, 1, 1], [], []>} : vector<2x128xbf16>, vector<128x128xbf16>, vector<2x128xf32> -> vector<2x128xf32>
    %c0_78 = arith.constant 0 : index
    %c0_79 = arith.constant 0 : index
    %112 = vector.load %arg9[%c0_78, %c0_79] : memref<1x128xf32, #tpu.memory_space<vmem>>, vector<1x128xf32>
    %113 = vector.broadcast %112 : vector<1x128xf32> to vector<2x128xf32>
    %114 = arith.addf %111, %113 : vector<2x128xf32>
    %cst_80 = arith.constant 0.000000e+00 : f32
    %115 = vector.broadcast %cst_80 : f32 to vector<2x128xf32>
    %116 = arith.subf %115, %114 : vector<2x128xf32>
    %117 = math.exp %116 : vector<2x128xf32>
    %cst_81 = arith.constant 1.000000e+00 : f32
    %118 = vector.broadcast %cst_81 : f32 to vector<2x128xf32>
    %119 = arith.addf %118, %117 : vector<2x128xf32>
    %120 = tpu.reciprocal %119 {approx = true} : vector<2x128xf32> -> vector<2x128xf32>
    %121 = arith.mulf %114, %120 : vector<2x128xf32>
    %122 = arith.truncf %121 : vector<2x128xf32> to vector<2x128xbf16>
    %c0_82 = arith.constant 0 : index
    %c0_83 = arith.constant 0 : index
    %123 = vector.load %arg10[%c0_82, %c0_83] : memref<128x128xbf16, #tpu.memory_space<vmem>>, vector<128x128xbf16>
    %cst_84 = arith.constant dense<0.000000e+00> : vector<2x128xf32>
    %124 = tpu.matmul %122, %123, %cst_84 {dimension_numbers = #tpu.dot_dimension_numbers<[1], [0], [0], [1], [0, 0, 1, 1], [], []>} : vector<2x128xbf16>, vector<128x128xbf16>, vector<2x128xf32> -> vector<2x128xf32>
    %c0_85 = arith.constant 0 : index
    %c0_86 = arith.constant 0 : index
    %125 = vector.load %arg11[%c0_85, %c0_86] : memref<1x128xf32, #tpu.memory_space<vmem>>, vector<1x128xf32>
    %126 = vector.broadcast %125 : vector<1x128xf32> to vector<2x128xf32>
    %127 = arith.addf %124, %126 : vector<2x128xf32>
    %cst_87 = arith.constant 0.000000e+00 : f32
    %128 = vector.broadcast %cst_87 : f32 to vector<2x128xf32>
    %129 = arith.subf %128, %127 : vector<2x128xf32>
    %130 = math.exp %129 : vector<2x128xf32>
    %cst_88 = arith.constant 1.000000e+00 : f32
    %131 = vector.broadcast %cst_88 : f32 to vector<2x128xf32>
    %132 = arith.addf %131, %130 : vector<2x128xf32>
    %133 = tpu.reciprocal %132 {approx = true} : vector<2x128xf32> -> vector<2x128xf32>
    %134 = vector.shape_cast %133 : vector<2x128xf32> to vector<2x1x128xf32>
    %135 = vector.broadcast %134 : vector<2x1x128xf32> to vector<2x256x128xf32>
    %136 = arith.mulf %105, %135 : vector<2x256x128xf32>
    %137 = vector.shape_cast %1 : vector<512x128xbf16> to vector<2x256x128xbf16>
    %138 = arith.extf %137 : vector<2x256x128xbf16> to vector<2x256x128xf32>
    %139 = arith.addf %136, %138 : vector<2x256x128xf32>
    %140 = vector.shape_cast %139 : vector<2x256x128xf32> to vector<2x16x16x128xf32>
    %c0_89 = arith.constant 0 : index
    %c0_90 = arith.constant 0 : index
    %c0_91 = arith.constant 0 : index
    %c0_92 = arith.constant 0 : index
    %141 = vector.load %arg12[%c0_89, %c0_90, %c0_91, %c0_92] : memref<2x16x16x128xf32, #tpu.memory_space<vmem>>, vector<2x16x16x128xf32>
    tpu.vector_store %arg12[%c0_89, %c0_90, %c0_91, %c0_92], %140 {strides = array<i32>} : memref<2x16x16x128xf32, #tpu.memory_space<vmem>>, vector<2x16x16x128xf32>,
    return
  }
  func.func @transform_0(%arg0: i32) -> (i32, i32, i32, i32) {
    %c0_i32 = arith.constant 0 : i32
    %c0_i32_0 = arith.constant 0 : i32
    %c0_i32_1 = arith.constant 0 : i32
    %c0_i32_2 = arith.constant 0 : i32
    return %arg0, %c0_i32, %c0_i32_0, %c0_i32_1 : i32, i32, i32, i32
  }
  func.func @transform_1(%arg0: i32) -> (i32, i32) {
    %c0_i32 = arith.constant 0 : i32
    %c0_i32_0 = arith.constant 0 : i32
    %c0_i32_1 = arith.constant 0 : i32
    return %c0_i32, %c0_i32_0 : i32, i32
  }
  func.func @transform_2(%arg0: i32) -> (i32, i32) {
    %c0_i32 = arith.constant 0 : i32
    %c0_i32_0 = arith.constant 0 : i32
    %c0_i32_1 = arith.constant 0 : i32
    return %c0_i32, %c0_i32_0 : i32, i32
  }
  func.func @transform_3(%arg0: i32) -> (i32, i32, i32) {
    %c0_i32 = arith.constant 0 : i32
    %c0_i32_0 = arith.constant 0 : i32
    %c0_i32_1 = arith.constant 0 : i32
    %c0_i32_2 = arith.constant 0 : i32
    return %c0_i32, %c0_i32_0, %c0_i32_1 : i32, i32, i32
  }
  func.func @transform_4(%arg0: i32) -> (i32, i32) {
    %c0_i32 = arith.constant 0 : i32
    %c0_i32_0 = arith.constant 0 : i32
    %c0_i32_1 = arith.constant 0 : i32
    return %c0_i32, %c0_i32_0 : i32, i32
  }
  func.func @transform_5(%arg0: i32) -> (i32, i32) {
    %c0_i32 = arith.constant 0 : i32
    %c0_i32_0 = arith.constant 0 : i32
    %c0_i32_1 = arith.constant 0 : i32
    return %c0_i32, %c0_i32_0 : i32, i32
  }
  func.func @transform_6(%arg0: i32) -> (i32, i32) {
    %c0_i32 = arith.constant 0 : i32
    %c0_i32_0 = arith.constant 0 : i32
    %c0_i32_1 = arith.constant 0 : i32
    return %c0_i32, %c0_i32_0 : i32, i32
  }
  func.func @transform_7(%arg0: i32) -> (i32, i32) {
    %c0_i32 = arith.constant 0 : i32
    %c0_i32_0 = arith.constant 0 : i32
    %c0_i32_1 = arith.constant 0 : i32
    return %c0_i32, %c0_i32_0 : i32, i32
  }
  func.func @transform_8(%arg0: i32) -> (i32, i32) {
    %c0_i32 = arith.constant 0 : i32
    %c0_i32_0 = arith.constant 0 : i32
    %c0_i32_1 = arith.constant 0 : i32
    return %c0_i32, %c0_i32_0 : i32, i32
  }
  func.func @transform_9(%arg0: i32) -> (i32, i32) {
    %c0_i32 = arith.constant 0 : i32
    %c0_i32_0 = arith.constant 0 : i32
    %c0_i32_1 = arith.constant 0 : i32
    return %c0_i32, %c0_i32_0 : i32, i32
  }
  func.func @transform_10(%arg0: i32) -> (i32, i32) {
    %c0_i32 = arith.constant 0 : i32
    %c0_i32_0 = arith.constant 0 : i32
    %c0_i32_1 = arith.constant 0 : i32
    return %c0_i32, %c0_i32_0 : i32, i32
  }
  func.func @transform_11(%arg0: i32) -> (i32, i32, i32, i32) {
    %c0_i32 = arith.constant 0 : i32
    %c0_i32_0 = arith.constant 0 : i32
    %c0_i32_1 = arith.constant 0 : i32
    %c0_i32_2 = arith.constant 0 : i32
    return %arg0, %c0_i32, %c0_i32_0, %c0_i32_1 : i32, i32, i32, i32
  }
}

</mosaic_0001>

<llo_original>
// kernel: tpu_custom_call.1
$region0: #{tpu_custom_call.1}
  #allocation0 [shape = 'u32[]', space=smem, size = 0x4, offset = 0x4, fixed_abs, tag = 'smem constant byte address 0x4 - core index']
  #allocation1 [shape = 'u32[144,128]{1,0:T(1,128)}', space=vmem, size = 0x12000, scoped, tag = 'internal scratch']
  #allocation2 [shape = 'f32[2,18,25,128]{3,2,1,0:T(8,128)}', space=vmem, size = 0x90000, scoped, tag = 'scratch operand']
  %s0 = inlined_call_operand.hbm [shape: bf16[2,16,16,128], index: 0, kind: input, shape index: {}]
  %s1 = inlined_call_operand.hbm [shape: bf16[128,128], index: 1, kind: input, shape index: {}]
  %s2 = inlined_call_operand.vmem [shape: f32[1,128], index: 2, kind: input, shape index: {}]
  %s3 = inlined_call_operand.hbm [shape: f32[3,3,128], index: 3, kind: input, shape index: {}]
  %s4 = inlined_call_operand.vmem [shape: f32[1,128], index: 4, kind: input, shape index: {}]
  %s5 = inlined_call_operand.hbm [shape: bf16[128,128], index: 5, kind: input, shape index: {}]
  %s6 = inlined_call_operand.vmem [shape: f32[1,128], index: 6, kind: input, shape index: {}]
  %s7 = inlined_call_operand.hbm [shape: bf16[128,128], index: 7, kind: input, shape index: {}]
  %s8 = inlined_call_operand.vmem [shape: f32[1,128], index: 8, kind: input, shape index: {}]
  %s9 = inlined_call_operand.hbm [shape: bf16[128,128], index: 9, kind: input, shape index: {}]
  %s10 = inlined_call_operand.vmem [shape: f32[1,128], index: 10, kind: input, shape index: {}]
  %s11 = inlined_call_operand.hbm [shape: f32[2,16,16,128], index: 11, kind: output, shape index: {}]
  %s12 = sld [smem:[#allocation0]]
  $region78: #{tpu_custom_call.1} parent=0
    _
  %s14 = ssub.s32 1, %s12
  %s15 = scalar_select 0, %s14, %s12
  $region1: #{tpu_custom_call.1} parent=0
    #allocation3 [shape = 'u8[131072]{0}', space=vmem, size = 0x20000, scoped, tag = 'input window, operand 0, single buffered']
    #allocation4 [shape = 's32[1]{0}', space=sflag, size = 0x4, scoped, tag = 'scoped memory for tpu_custom_call.1']
    #allocation5 [shape = 's32[1]{0}', space=sflag, size = 0x4, scoped, tag = 'scoped memory for tpu_custom_call.1']
    #allocation6 [shape = 'u8[32768]{0}', space=vmem, size = 0x8000, scoped, tag = 'input window, operand 1, single buffered']
    #allocation7 [shape = 's32[1]{0}', space=sflag, size = 0x4, scoped, tag = 'scoped memory for tpu_custom_call.1']
    #allocation8 [shape = 'u8[6144]{0}', space=vmem, size = 0x1800, scoped, tag = 'input window, operand 3, single buffered']
    #allocation9 [shape = 'u8[32768]{0}', space=vmem, size = 0x8000, scoped, tag = 'input window, operand 5, single buffered']
    #allocation10 [shape = 's32[1]{0}', space=sflag, size = 0x4, scoped, tag = 'scoped memory for tpu_custom_call.1']
    #allocation11 [shape = 'u8[32768]{0}', space=vmem, size = 0x8000, scoped, tag = 'input window, operand 7, single buffered']
    #allocation12 [shape = 'u8[32768]{0}', space=vmem, size = 0x8000, scoped, tag = 'input window, operand 9, single buffered']
    #allocation13 [shape = 's32[1]{0}', space=sflag, size = 0x4, scoped, tag = 'scoped memory for tpu_custom_call.1']
    #allocation14 [shape = 'u8[262144]{0}', space=vmem, size = 0x40000, scoped, tag = 'output window, operand 0, single buffered']
    %16 = vsyncpa [#allocation4], 0
    %17 = vsyncpa [#allocation7], 0
    %18 = vsyncpa [#allocation10], 0
    %19 = vsyncpa [#allocation13], 0
    %20 = vsyncpa [#allocation5], 0
    // Predicated region
    $region2: #{tpu_custom_call.1} parent=1 // pred_check
      _
    $region3: #{tpu_custom_call.1} parent=1 // pred_check_branch
      %22 = sbr.rel (0) target = $region5
    $region4: #{tpu_custom_call.1} parent=1 // pred_region
      %s24 = ssub.s32 4096, 4096
      %25 = vsyncadd [#allocation4], %s24
      %s26 = sshll.u32 [#allocation3], 4
      %s27 = int_to_ptr.vmem [resolvable:$true] %s26
      %32 = dma.hbm_to_vmem [thread:$0]  %s0, 4096, %s27, [#allocation4], 64, 64, 4
    $region5: #{tpu_custom_call.1} parent=1 // pred_fallthru
      _
    // Predicated region
    $region6: #{tpu_custom_call.1} parent=1 // pred_check
      _
    $region7: #{tpu_custom_call.1} parent=1 // pred_check_branch
      %34 = sbr.rel (0) target = $region9
    $region8: #{tpu_custom_call.1} parent=1 // pred_region
      %s36 = ssub.s32 1024, 1024
      %37 = vsyncadd [#allocation7], %s36
      %s38 = sshll.u32 [#allocation6], 4
      %s39 = int_to_ptr.vmem [resolvable:$true] %s38
      %44 = dma.hbm_to_vmem [thread:$0]  %s1, 1024, %s39, [#allocation7], 64, 64, 4
    $region9: #{tpu_custom_call.1} parent=1 // pred_fallthru
      _
    // Predicated region
    $region10: #{tpu_custom_call.1} parent=1 // pred_check
      _
    $region11: #{tpu_custom_call.1} parent=1 // pred_check_branch
      %46 = sbr.rel (0) target = $region13
    $region12: #{tpu_custom_call.1} parent=1 // pred_region
      _
    $region13: #{tpu_custom_call.1} parent=1 // pred_fallthru
      _
    // Predicated region
    $region14: #{tpu_custom_call.1} parent=1 // pred_check
      _
    $region15: #{tpu_custom_call.1} parent=1 // pred_check_branch
      %48 = sbr.rel (0) target = $region17
    $region16: #{tpu_custom_call.1} parent=1 // pred_region
      %s50 = ssub.s32 192, 192
      %51 = vsyncadd [#allocation7], %s50
      %s52 = sshll.u32 [#allocation8], 4
      %s53 = int_to_ptr.vmem [resolvable:$true] %s52
      %58 = dma.hbm_to_vmem [thread:$0]  %s3, 192, %s53, [#allocation7], 64, 64, 4
    $region17: #{tpu_custom_call.1} parent=1 // pred_fallthru
      _
    // Predicated region
    $region18: #{tpu_custom_call.1} parent=1 // pred_check
      _
    $region19: #{tpu_custom_call.1} parent=1 // pred_check_branch
      %60 = sbr.rel (0) target = $region21
    $region20: #{tpu_custom_call.1} parent=1 // pred_region
      _
    $region21: #{tpu_custom_call.1} parent=1 // pred_fallthru
      _
    // Predicated region
    $region22: #{tpu_custom_call.1} parent=1 // pred_check
      _
    $region23: #{tpu_custom_call.1} parent=1 // pred_check_branch
      %62 = sbr.rel (0) target = $region25
    $region24: #{tpu_custom_call.1} parent=1 // pred_region
      %s64 = ssub.s32 1024, 1024
      %65 = vsyncadd [#allocation10], %s64
      %s66 = sshll.u32 [#allocation9], 4
      %s67 = int_to_ptr.vmem [resolvable:$true] %s66
      %72 = dma.hbm_to_vmem [thread:$0]  %s5, 1024, %s67, [#allocation10], 64, 64, 4
    $region25: #{tpu_custom_call.1} parent=1 // pred_fallthru
      _
    // Predicated region
    $region26: #{tpu_custom_call.1} parent=1 // pred_check
      _
    $region27: #{tpu_custom_call.1} parent=1 // pred_check_branch
      %74 = sbr.rel (0) target = $region29
    $region28: #{tpu_custom_call.1} parent=1 // pred_region
      _
    $region29: #{tpu_custom_call.1} parent=1 // pred_fallthru
      _
    // Predicated region
    $region30: #{tpu_custom_call.1} parent=1 // pred_check
      _
    $region31: #{tpu_custom_call.1} parent=1 // pred_check_branch
      %76 = sbr.rel (0) target = $region33
    $region32: #{tpu_custom_call.1} parent=1 // pred_region
      %s78 = ssub.s32 1024, 1024
      %79 = vsyncadd [#allocation10], %s78
      %s80 = sshll.u32 [#allocation11], 4
      %s81 = int_to_ptr.vmem [resolvable:$true] %s80
      %86 = dma.hbm_to_vmem [thread:$0]  %s7, 1024, %s81, [#allocation10], 64, 64, 4
    $region33: #{tpu_custom_call.1} parent=1 // pred_fallthru
      _
    // Predicated region
    $region34: #{tpu_custom_call.1} parent=1 // pred_check
      _
    $region35: #{tpu_custom_call.1} parent=1 // pred_check_branch
      %88 = sbr.rel (0) target = $region37
    $region36: #{tpu_custom_call.1} parent=1 // pred_region
      _
    $region37: #{tpu_custom_call.1} parent=1 // pred_fallthru
      _
    // Predicated region
    $region38: #{tpu_custom_call.1} parent=1 // pred_check
      _
    $region39: #{tpu_custom_call.1} parent=1 // pred_check_branch
      %90 = sbr.rel (0) target = $region41
    $region40: #{tpu_custom_call.1} parent=1 // pred_region
      %s92 = ssub.s32 1024, 1024
      %93 = vsyncadd [#allocation13], %s92
      %s94 = sshll.u32 [#allocation12], 4
      %s95 = int_to_ptr.vmem [resolvable:$true] %s94
      %100 = dma.hbm_to_vmem [thread:$0]  %s9, 1024, %s95, [#allocation13], 64, 64, 4
    $region41: #{tpu_custom_call.1} parent=1 // pred_fallthru
      _
    // Predicated region
    $region42: #{tpu_custom_call.1} parent=1 // pred_check
      _
    $region43: #{tpu_custom_call.1} parent=1 // pred_check_branch
      %102 = sbr.rel (0) target = $region45
    $region44: #{tpu_custom_call.1} parent=1 // pred_region
      _
    $region45: #{tpu_custom_call.1} parent=1 // pred_fallthru
      _
    // Predicated region
    $region46: #{tpu_custom_call.1} parent=1 // pred_check
      _
    $region47: #{tpu_custom_call.1} parent=1 // pred_check_branch
      %104 = sbr.rel (0) target = $region49
    $region48: #{tpu_custom_call.1} parent=1 // pred_region
      %105 = dma.done [#allocation4], 4096
    $region49: #{tpu_custom_call.1} parent=1 // pred_fallthru
      _
    // Predicated region
    $region50: #{tpu_custom_call.1} parent=1 // pred_check
      _
    $region51: #{tpu_custom_call.1} parent=1 // pred_check_branch
      %107 = sbr.rel (0) target = $region53
    $region52: #{tpu_custom_call.1} parent=1 // pred_region
      %108 = dma.done [#allocation7], 1024
    $region53: #{tpu_custom_call.1} parent=1 // pred_fallthru
      _
    // Predicated region
    $region54: #{tpu_custom_call.1} parent=1 // pred_check
      _
    $region55: #{tpu_custom_call.1} parent=1 // pred_check_branch
      %110 = sbr.rel (0) target = $region57
    $region56: #{tpu_custom_call.1} parent=1 // pred_region
      %111 = dma.done [#allocation7], 192
    $region57: #{tpu_custom_call.1} parent=1 // pred_fallthru
      _
    // Predicated region
    $region58: #{tpu_custom_call.1} parent=1 // pred_check
      _
    $region59: #{tpu_custom_call.1} parent=1 // pred_check_branch
      %113 = sbr.rel (0) target = $region61
    $region60: #{tpu_custom_call.1} parent=1 // pred_region
      %114 = dma.done [#allocation10], 1024
    $region61: #{tpu_custom_call.1} parent=1 // pred_fallthru
      _
    // Predicated region
    $region62: #{tpu_custom_call.1} parent=1 // pred_check
      _
    $region63: #{tpu_custom_call.1} parent=1 // pred_check_branch
      %116 = sbr.rel (0) target = $region65
    $region64: #{tpu_custom_call.1} parent=1 // pred_region
      %117 = dma.done [#allocation10], 1024
    $region65: #{tpu_custom_call.1} parent=1 // pred_fallthru
      _
    // Predicated region
    $region66: #{tpu_custom_call.1} parent=1 // pred_check
      _
    $region67: #{tpu_custom_call.1} parent=1 // pred_check_branch
      %119 = sbr.rel (0) target = $region69
    $region68: #{tpu_custom_call.1} parent=1 // pred_region
      %120 = dma.done [#allocation13], 1024
    $region69: #{tpu_custom_call.1} parent=1 // pred_fallthru
      _
    %v122 = vld [vmem:[#allocation3] sm:$0xf]
    %v123 = vld [vmem:[#allocation3 + $0x4] sm:$0xf]
    %v124 = vld [vmem:[#allocation3 + $0x8] sm:$0xf]
    %v125 = vld [vmem:[#allocation3 + $0xc] sm:$0xf]
    %v126 = vld [vmem:[#allocation3 + $0x10] sm:$0xf]
    %v127 = vld [vmem:[#allocation3 + $0x14] sm:$0xf]
    %v128 = vld [vmem:[#allocation3 + $0x18] sm:$0xf]
    %v129 = vld [vmem:[#allocation3 + $0x1c] sm:$0xf]
    %v130 = vld [vmem:[#allocation3 + $0x20] sm:$0xf]
    %v131 = vld [vmem:[#allocation3 + $0x24] sm:$0xf]
    %v132 = vld [vmem:[#allocation3 + $0x28] sm:$0xf]
    %v133 = vld [vmem:[#allocation3 + $0x2c] sm:$0xf]
    %v134 = vld [vmem:[#allocation3 + $0x30] sm:$0xf]
    %v135 = vld [vmem:[#allocation3 + $0x34] sm:$0xf]
    %v136 = vld [vmem:[#allocation3 + $0x38] sm:$0xf]
    %v137 = vld [vmem:[#allocation3 + $0x3c] sm:$0xf]
    %v138 = vld [vmem:[#allocation3 + $0x40] sm:$0xf]
    %v139 = vld [vmem:[#allocation3 + $0x44] sm:$0xf]
    %v140 = vld [vmem:[#allocation3 + $0x48] sm:$0xf]
    %v141 = vld [vmem:[#allocation3 + $0x4c] sm:$0xf]
    %v142 = vld [vmem:[#allocation3 + $0x50] sm:$0xf]
    %v143 = vld [vmem:[#allocation3 + $0x54] sm:$0xf]
    %v144 = vld [vmem:[#allocation3 + $0x58] sm:$0xf]
    %v145 = vld [vmem:[#allocation3 + $0x5c] sm:$0xf]
    %v146 = vld [vmem:[#allocation3 + $0x60] sm:$0xf]
    %v147 = vld [vmem:[#allocation3 + $0x64] sm:$0xf]
    %v148 = vld [vmem:[#allocation3 + $0x68] sm:$0xf]
    %v149 = vld [vmem:[#allocation3 + $0x6c] sm:$0xf]
    %v150 = vld [vmem:[#allocation3 + $0x70] sm:$0xf]
    %v151 = vld [vmem:[#allocation3 + $0x74] sm:$0xf]
    %v152 = vld [vmem:[#allocation3 + $0x78] sm:$0xf]
    %v153 = vld [vmem:[#allocation3 + $0x7c] sm:$0xf]
    %v154 = vld [vmem:[#allocation3 + $0x80] sm:$0xf]
    %v155 = vld [vmem:[#allocation3 + $0x84] sm:$0xf]
    %v156 = vld [vmem:[#allocation3 + $0x88] sm:$0xf]
    %v157 = vld [vmem:[#allocation3 + $0x8c] sm:$0xf]
    %v158 = vld [vmem:[#allocation3 + $0x90] sm:$0xf]
    %v159 = vld [vmem:[#allocation3 + $0x94] sm:$0xf]
    %v160 = vld [vmem:[#allocation3 + $0x98] sm:$0xf]
    %v161 = vld [vmem:[#allocation3 + $0x9c] sm:$0xf]
    %v162 = vld [vmem:[#allocation3 + $0xa0] sm:$0xf]
    %v163 = vld [vmem:[#allocation3 + $0xa4] sm:$0xf]
    %v164 = vld [vmem:[#allocation3 + $0xa8] sm:$0xf]
    %v165 = vld [vmem:[#allocation3 + $0xac] sm:$0xf]
    %v166 = vld [vmem:[#allocation3 + $0xb0] sm:$0xf]
    %v167 = vld [vmem:[#allocation3 + $0xb4] sm:$0xf]
    %v168 = vld [vmem:[#allocation3 + $0xb8] sm:$0xf]
    %v169 = vld [vmem:[#allocation3 + $0xbc] sm:$0xf]
    %v170 = vld [vmem:[#allocation3 + $0xc0] sm:$0xf]
    %v171 = vld [vmem:[#allocation3 + $0xc4] sm:$0xf]
    %v172 = vld [vmem:[#allocation3 + $0xc8] sm:$0xf]
    %v173 = vld [vmem:[#allocation3 + $0xcc] sm:$0xf]
    %v174 = vld [vmem:[#allocation3 + $0xd0] sm:$0xf]
    %v175 = vld [vmem:[#allocation3 + $0xd4] sm:$0xf]
    %v176 = vld [vmem:[#allocation3 + $0xd8] sm:$0xf]
    %v177 = vld [vmem:[#allocation3 + $0xdc] sm:$0xf]
    %v178 = vld [vmem:[#allocation3 + $0xe0] sm:$0xf]
    %v179 = vld [vmem:[#allocation3 + $0xe4] sm:$0xf]
    %v180 = vld [vmem:[#allocation3 + $0xe8] sm:$0xf]
    %v181 = vld [vmem:[#allocation3 + $0xec] sm:$0xf]
    %v182 = vld [vmem:[#allocation3 + $0xf0] sm:$0xf]
    %v183 = vld [vmem:[#allocation3 + $0xf4] sm:$0xf]
    %v184 = vld [vmem:[#allocation3 + $0xf8] sm:$0xf]
    %v185 = vld [vmem:[#allocation3 + $0xfc] sm:$0xf]
    %v186 = vld [vmem:[#allocation6] sm:$0xf]
    %v187 = vld [vmem:[#allocation6 + $0x4] sm:$0xf]
    %v188 = vld [vmem:[#allocation6 + $0x8] sm:$0xf]
    %v189 = vld [vmem:[#allocation6 + $0xc] sm:$0xf]
    %v190 = vld [vmem:[#allocation6 + $0x10] sm:$0xf]
    %v191 = vld [vmem:[#allocation6 + $0x14] sm:$0xf]
    %v192 = vld [vmem:[#allocation6 + $0x18] sm:$0xf]
    %v193 = vld [vmem:[#allocation6 + $0x1c] sm:$0xf]
    %v194 = vld [vmem:[#allocation6 + $0x20] sm:$0xf]
    %v195 = vld [vmem:[#allocation6 + $0x24] sm:$0xf]
    %v196 = vld [vmem:[#allocation6 + $0x28] sm:$0xf]
    %v197 = vld [vmem:[#allocation6 + $0x2c] sm:$0xf]
    %v198 = vld [vmem:[#allocation6 + $0x30] sm:$0xf]
    %v199 = vld [vmem:[#allocation6 + $0x34] sm:$0xf]
    %v200 = vld [vmem:[#allocation6 + $0x38] sm:$0xf]
    %v201 = vld [vmem:[#allocation6 + $0x3c] sm:$0xf]
    %v202 = vld [vmem:[%s2] sm:$0x1]
    %v204 = vlaneseq
    %v205 = vshrl.u32 %v204, 7
    %v206 = vsub.s32 0, %v205
    %v207 = vrot.slane %v202, %v206
    %v273 = vunpack.c.l.b16 %v122
    %v274 = vunpack.c.l.b16 %v123
    %v275 = vunpack.c.l.b16 %v124
    %v276 = vunpack.c.l.b16 %v125
    %v277 = vunpack.c.l.b16 %v126
    %v278 = vunpack.c.l.b16 %v127
    %v279 = vunpack.c.l.b16 %v128
    %v280 = vunpack.c.l.b16 %v129
    %v281 = vunpack.c.l.b16 %v130
    %v282 = vunpack.c.l.b16 %v131
    %v283 = vunpack.c.l.b16 %v132
    %v284 = vunpack.c.l.b16 %v133
    %v285 = vunpack.c.l.b16 %v134
    %v286 = vunpack.c.l.b16 %v135
    %v287 = vunpack.c.l.b16 %v136
    %v288 = vunpack.c.l.b16 %v137
    %v289 = vunpack.c.l.b16 %v138
    %v290 = vunpack.c.l.b16 %v139
    %v291 = vunpack.c.l.b16 %v140
    %v292 = vunpack.c.l.b16 %v141
    %v293 = vunpack.c.l.b16 %v142
    %v294 = vunpack.c.l.b16 %v143
    %v295 = vunpack.c.l.b16 %v144
    %v296 = vunpack.c.l.b16 %v145
    %v297 = vunpack.c.l.b16 %v146
    %v298 = vunpack.c.l.b16 %v147
    %v299 = vunpack.c.l.b16 %v148
    %v300 = vunpack.c.l.b16 %v149
    %v301 = vunpack.c.l.b16 %v150
    %v302 = vunpack.c.l.b16 %v151
    %v303 = vunpack.c.l.b16 %v152
    %v304 = vunpack.c.l.b16 %v153
    %v305 = vunpack.c.l.b16 %v154
    %v306 = vunpack.c.l.b16 %v155
    %v307 = vunpack.c.l.b16 %v156
    %v308 = vunpack.c.l.b16 %v157
    %v309 = vunpack.c.l.b16 %v158
    %v310 = vunpack.c.l.b16 %v159
    %v311 = vunpack.c.l.b16 %v160
    %v312 = vunpack.c.l.b16 %v161
    %v313 = vunpack.c.l.b16 %v162
    %v314 = vunpack.c.l.b16 %v163
    %v315 = vunpack.c.l.b16 %v164
    %v316 = vunpack.c.l.b16 %v165
    %v317 = vunpack.c.l.b16 %v166
    %v318 = vunpack.c.l.b16 %v167
    %v319 = vunpack.c.l.b16 %v168
    %v320 = vunpack.c.l.b16 %v169
    %v321 = vunpack.c.l.b16 %v170
    %v322 = vunpack.c.l.b16 %v171
    %v323 = vunpack.c.l.b16 %v172
    %v324 = vunpack.c.l.b16 %v173
    %v325 = vunpack.c.l.b16 %v174
    %v326 = vunpack.c.l.b16 %v175
    %v327 = vunpack.c.l.b16 %v176
    %v328 = vunpack.c.l.b16 %v177
    %v329 = vunpack.c.l.b16 %v178
    %v330 = vunpack.c.l.b16 %v179
    %v331 = vunpack.c.l.b16 %v180
    %v332 = vunpack.c.l.b16 %v181
    %v333 = vunpack.c.l.b16 %v182
    %v334 = vunpack.c.l.b16 %v183
    %v335 = vunpack.c.l.b16 %v184
    %v336 = vunpack.c.l.b16 %v185
    %v337 = vpack.c.b16 %v274, %v273
    %v338 = vpack.c.b16 %v276, %v275
    %v339 = vpack.c.b16 %v278, %v277
    %v340 = vpack.c.b16 %v280, %v279
    %v341 = vpack.c.b16 %v282, %v281
    %v342 = vpack.c.b16 %v284, %v283
    %v343 = vpack.c.b16 %v286, %v285
    %v344 = vpack.c.b16 %v288, %v287
    %v345 = vpack.c.b16 %v290, %v289
    %v346 = vpack.c.b16 %v292, %v291
    %v347 = vpack.c.b16 %v294, %v293
    %v348 = vpack.c.b16 %v296, %v295
    %v349 = vpack.c.b16 %v298, %v297
    %v350 = vpack.c.b16 %v300, %v299
    %v351 = vpack.c.b16 %v302, %v301
    %v352 = vpack.c.b16 %v304, %v303
    %v353 = vpack.c.b16 %v306, %v305
    %v354 = vpack.c.b16 %v308, %v307
    %v355 = vpack.c.b16 %v310, %v309
    %v356 = vpack.c.b16 %v312, %v311
    %v357 = vpack.c.b16 %v314, %v313
    %v358 = vpack.c.b16 %v316, %v315
    %v359 = vpack.c.b16 %v318, %v317
    %v360 = vpack.c.b16 %v320, %v319
    %v361 = vpack.c.b16 %v322, %v321
    %v362 = vpack.c.b16 %v324, %v323
    %v363 = vpack.c.b16 %v326, %v325
    %v364 = vpack.c.b16 %v328, %v327
    %v365 = vpack.c.b16 %v330, %v329
    %v366 = vpack.c.b16 %v332, %v331
    %v367 = vpack.c.b16 %v334, %v333
    %v368 = vpack.c.b16 %v336, %v335
    %v417 = vunpack.c.l.b16 %v186
    %v418 = vunpack.c.l.b16 %v187
    %v419 = vunpack.c.l.b16 %v188
    %v420 = vunpack.c.l.b16 %v189
    %v421 = vunpack.c.l.b16 %v190
    %v422 = vunpack.c.l.b16 %v191
    %v423 = vunpack.c.l.b16 %v192
    %v424 = vunpack.c.l.b16 %v193
    %v425 = vunpack.c.l.b16 %v194
    %v426 = vunpack.c.l.b16 %v195
    %v427 = vunpack.c.l.b16 %v196
    %v428 = vunpack.c.l.b16 %v197
    %v429 = vunpack.c.l.b16 %v198
    %v430 = vunpack.c.l.b16 %v199
    %v431 = vunpack.c.l.b16 %v200
    %v432 = vunpack.c.l.b16 %v201
    %v433 = vpack.c.b16 %v418, %v417
    %v434 = vpack.c.b16 %v420, %v419
    %v435 = vpack.c.b16 %v422, %v421
    %v436 = vpack.c.b16 %v424, %v423
    %v437 = vpack.c.b16 %v426, %v425
    %v438 = vpack.c.b16 %v428, %v427
    %v439 = vpack.c.b16 %v430, %v429
    %v440 = vpack.c.b16 %v432, %v431
    %449 = vmatprep.subr.bf16.mxu0 0
    %450 = vmatpush1.bf16.msra.mxu0 %v433
    %451 = vmatprep.subr.bf16.mxu0 0
    %452 = vmatpush1.bf16.msra.mxu0 %v434
    %453 = vmatprep.subr.bf16.mxu0 0
    %454 = vmatpush1.bf16.msra.mxu0 %v435
    %455 = vmatprep.subr.bf16.mxu0 0
    %456 = vmatpush1.bf16.msra.mxu0 %v436
    %457 = vmatprep.subr.bf16.mxu0 0
    %458 = vmatpush1.bf16.msra.mxu0 %v437
    %459 = vmatprep.subr.bf16.mxu0 0
    %460 = vmatpush1.bf16.msra.mxu0 %v438
    %461 = vmatprep.subr.bf16.mxu0 0
    %462 = vmatpush1.bf16.msra.mxu0 %v439
    %463 = vmatprep.subr.bf16.mxu0 0
    %464 = vmatpush1.bf16.msra.mxu0 %v440
    %465 = vmatprep.subr.bf16.mxu0 0
    %466 = vmatpush1.bf16.msra.mxu0 0
    %467 = vmatprep.subr.bf16.mxu0 0
    %468 = vmatpush1.bf16.msra.mxu0 0
    %469 = vmatprep.subr.bf16.mxu0 0
    %470 = vmatpush1.bf16.msra.mxu0 0
    %471 = vmatprep.subr.bf16.mxu0 0
    %472 = vmatpush1.bf16.msra.mxu0 0
    %473 = vmatprep.subr.bf16.mxu0 0
    %474 = vmatpush1.bf16.msra.mxu0 0
    %475 = vmatprep.subr.bf16.mxu0 0
    %476 = vmatpush1.bf16.msra.mxu0 0
    %477 = vmatprep.subr.bf16.mxu0 0
    %478 = vmatpush1.bf16.msra.mxu0 0
    %479 = vmatprep.subr.bf16.mxu0 0
    %480 = vmatpush1.bf16.msra.mxu0 0
    %481 = vmatprep.mubr.bf16.mxu0 0
    %482 = vmatmul.mubr.bf16.gmra.mrb[0].mxu0 %v337
    %v483 = vpop.f32.mrb[0].mxu0
    %v484 = vadd.f32 %v207, %v483
    %v485 = vpop.f32.mrb[0].mxu0
    %v486 = vpop.f32.mrb[0].mxu0
    %v487 = vadd.f32 %v207, %v486
    %v488 = vpop.f32.mrb[0].mxu0
    %489 = vmatprep.mubr.bf16.mxu0 0
    %490 = vmatmul.mubr.bf16.gmra.mrb[0].mxu0 %v338
    %v491 = vpop.f32.mrb[0].mxu0
    %v492 = vadd.f32 %v207, %v491
    %v493 = vpop.f32.mrb[0].mxu0
    %v494 = vpop.f32.mrb[0].mxu0
    %v495 = vadd.f32 %v207, %v494
    %v496 = vpop.f32.mrb[0].mxu0
    %497 = vmatprep.mubr.bf16.mxu0 0
    %498 = vmatmul.mubr.bf16.gmra.mrb[0].mxu0 %v339
    %v499 = vpop.f32.mrb[0].mxu0
    %v500 = vadd.f32 %v207, %v499
    %v501 = vpop.f32.mrb[0].mxu0
    %v502 = vpop.f32.mrb[0].mxu0
    %v503 = vadd.f32 %v207, %v502
    %v504 = vpop.f32.mrb[0].mxu0
    %505 = vmatprep.mubr.bf16.mxu0 0
    %506 = vmatmul.mubr.bf16.gmra.mrb[0].mxu0 %v340
    %v507 = vpop.f32.mrb[0].mxu0
    %v508 = vadd.f32 %v207, %v507
    %v509 = vpop.f32.mrb[0].mxu0
    %v510 = vpop.f32.mrb[0].mxu0
    %v511 = vadd.f32 %v207, %v510
    %v512 = vpop.f32.mrb[0].mxu0
    %513 = vmatprep.mubr.bf16.mxu0 0
    %514 = vmatmul.mubr.bf16.gmra.mrb[0].mxu0 %v341
    %v515 = vpop.f32.mrb[0].mxu0
    %v516 = vadd.f32 %v207, %v515
    %v517 = vpop.f32.mrb[0].mxu0
    %v518 = vpop.f32.mrb[0].mxu0
    %v519 = vadd.f32 %v207, %v518
    %v520 = vpop.f32.mrb[0].mxu0
    %521 = vmatprep.mubr.bf16.mxu0 0
    %522 = vmatmul.mubr.bf16.gmra.mrb[0].mxu0 %v342
    %v523 = vpop.f32.mrb[0].mxu0
    %v524 = vadd.f32 %v207, %v523
    %v525 = vpop.f32.mrb[0].mxu0
    %v526 = vpop.f32.mrb[0].mxu0
    %v527 = vadd.f32 %v207, %v526
    %v528 = vpop.f32.mrb[0].mxu0
    %529 = vmatprep.mubr.bf16.mxu0 0
    %530 = vmatmul.mubr.bf16.gmra.mrb[0].mxu0 %v343
    %v531 = vpop.f32.mrb[0].mxu0
    %v532 = vadd.f32 %v207, %v531
    %v533 = vpop.f32.mrb[0].mxu0
    %v534 = vpop.f32.mrb[0].mxu0
    %v535 = vadd.f32 %v207, %v534
    %v536 = vpop.f32.mrb[0].mxu0
    %537 = vmatprep.mubr.bf16.mxu0 0
    %538 = vmatmul.mubr.bf16.gmra.mrb[0].mxu0 %v344
    %v539 = vpop.f32.mrb[0].mxu0
    %v540 = vadd.f32 %v207, %v539
    %v541 = vpop.f32.mrb[0].mxu0
    %v542 = vpop.f32.mrb[0].mxu0
    %v543 = vadd.f32 %v207, %v542
    %v544 = vpop.f32.mrb[0].mxu0
    %545 = vmatprep.mubr.bf16.mxu0 0
    %546 = vmatmul.mubr.bf16.gmra.mrb[0].mxu0 %v345
    %v547 = vpop.f32.mrb[0].mxu0
    %v548 = vadd.f32 %v207, %v547
    %v549 = vpop.f32.mrb[0].mxu0
    %v550 = vpop.f32.mrb[0].mxu0
    %v551 = vadd.f32 %v207, %v550
    %v552 = vpop.f32.mrb[0].mxu0
    %553 = vmatprep.mubr.bf16.mxu0 0
    %554 = vmatmul.mubr.bf16.gmra.mrb[0].mxu0 %v346
    %v555 = vpop.f32.mrb[0].mxu0
    %v556 = vadd.f32 %v207, %v555
    %v557 = vpop.f32.mrb[0].mxu0
    %v558 = vpop.f32.mrb[0].mxu0
    %v559 = vadd.f32 %v207, %v558
    %v560 = vpop.f32.mrb[0].mxu0
    %561 = vmatprep.mubr.bf16.mxu0 0
    %562 = vmatmul.mubr.bf16.gmra.mrb[0].mxu0 %v347
    %v563 = vpop.f32.mrb[0].mxu0
    %v564 = vadd.f32 %v207, %v563
    %v565 = vpop.f32.mrb[0].mxu0
    %v566 = vpop.f32.mrb[0].mxu0
    %v567 = vadd.f32 %v207, %v566
    %v568 = vpop.f32.mrb[0].mxu0
    %569 = vmatprep.mubr.bf16.mxu0 0
    %570 = vmatmul.mubr.bf16.gmra.mrb[0].mxu0 %v348
    %v571 = vpop.f32.mrb[0].mxu0
    %v572 = vadd.f32 %v207, %v571
    %v573 = vpop.f32.mrb[0].mxu0
    %v574 = vpop.f32.mrb[0].mxu0
    %v575 = vadd.f32 %v207, %v574
    %v576 = vpop.f32.mrb[0].mxu0
    %577 = vmatprep.mubr.bf16.mxu0 0
    %578 = vmatmul.mubr.bf16.gmra.mrb[0].mxu0 %v349
    %v579 = vpop.f32.mrb[0].mxu0
    %v580 = vadd.f32 %v207, %v579
    %v581 = vpop.f32.mrb[0].mxu0
    %v582 = vpop.f32.mrb[0].mxu0
    %v583 = vadd.f32 %v207, %v582
    %v584 = vpop.f32.mrb[0].mxu0
    %585 = vmatprep.mubr.bf16.mxu0 0
    %586 = vmatmul.mubr.bf16.gmra.mrb[0].mxu0 %v350
    %v587 = vpop.f32.mrb[0].mxu0
    %v588 = vadd.f32 %v207, %v587
    %v589 = vpop.f32.mrb[0].mxu0
    %v590 = vpop.f32.mrb[0].mxu0
    %v591 = vadd.f32 %v207, %v590
    %v592 = vpop.f32.mrb[0].mxu0
    %593 = vmatprep.mubr.bf16.mxu0 0
    %594 = vmatmul.mubr.bf16.gmra.mrb[0].mxu0 %v351
    %v595 = vpop.f32.mrb[0].mxu0
    %v596 = vadd.f32 %v207, %v595
    %v597 = vpop.f32.mrb[0].mxu0
    %v598 = vpop.f32.mrb[0].mxu0
    %v599 = vadd.f32 %v207, %v598
    %v600 = vpop.f32.mrb[0].mxu0
    %601 = vmatprep.mubr.bf16.mxu0 0
    %602 = vmatmul.mubr.bf16.gmra.mrb[0].mxu0 %v352
    %v603 = vpop.f32.mrb[0].mxu0
    %v604 = vadd.f32 %v207, %v603
    %v605 = vpop.f32.mrb[0].mxu0
    %v606 = vpop.f32.mrb[0].mxu0
    %v607 = vadd.f32 %v207, %v606
    %v608 = vpop.f32.mrb[0].mxu0
    %609 = vmatprep.mubr.bf16.mxu0 0
    %610 = vmatmul.mubr.bf16.gmra.mrb[0].mxu0 %v353
    %v611 = vpop.f32.mrb[0].mxu0
    %v612 = vadd.f32 %v207, %v611
    %v613 = vpop.f32.mrb[0].mxu0
    %v614 = vpop.f32.mrb[0].mxu0
    %v615 = vadd.f32 %v207, %v614
    %v616 = vpop.f32.mrb[0].mxu0
    %617 = vmatprep.mubr.bf16.mxu0 0
    %618 = vmatmul.mubr.bf16.gmra.mrb[0].mxu0 %v354
    %v619 = vpop.f32.mrb[0].mxu0
    %v620 = vadd.f32 %v207, %v619
    %v621 = vpop.f32.mrb[0].mxu0
    %v622 = vpop.f32.mrb[0].mxu0
    %v623 = vadd.f32 %v207, %v622
    %v624 = vpop.f32.mrb[0].mxu0
    %625 = vmatprep.mubr.bf16.mxu0 0
    %626 = vmatmul.mubr.bf16.gmra.mrb[0].mxu0 %v355
    %v627 = vpop.f32.mrb[0].mxu0
    %v628 = vadd.f32 %v207, %v627
    %v629 = vpop.f32.mrb[0].mxu0
    %v630 = vpop.f32.mrb[0].mxu0
    %v631 = vadd.f32 %v207, %v630
    %v632 = vpop.f32.mrb[0].mxu0
    %633 = vmatprep.mubr.bf16.mxu0 0
    %634 = vmatmul.mubr.bf16.gmra.mrb[0].mxu0 %v356
    %v635 = vpop.f32.mrb[0].mxu0
    %v636 = vadd.f32 %v207, %v635
    %v637 = vpop.f32.mrb[0].mxu0
    %v638 = vpop.f32.mrb[0].mxu0
    %v639 = vadd.f32 %v207, %v638
    %v640 = vpop.f32.mrb[0].mxu0
    %641 = vmatprep.mubr.bf16.mxu0 0
    %642 = vmatmul.mubr.bf16.gmra.mrb[0].mxu0 %v357
    %v643 = vpop.f32.mrb[0].mxu0
    %v644 = vadd.f32 %v207, %v643
    %v645 = vpop.f32.mrb[0].mxu0
    %v646 = vpop.f32.mrb[0].mxu0
    %v647 = vadd.f32 %v207, %v646
    %v648 = vpop.f32.mrb[0].mxu0
    %649 = vmatprep.mubr.bf16.mxu0 0
    %650 = vmatmul.mubr.bf16.gmra.mrb[0].mxu0 %v358
    %v651 = vpop.f32.mrb[0].mxu0
    %v652 = vadd.f32 %v207, %v651
    %v653 = vpop.f32.mrb[0].mxu0
    %v654 = vpop.f32.mrb[0].mxu0
    %v655 = vadd.f32 %v207, %v654
    %v656 = vpop.f32.mrb[0].mxu0
    %657 = vmatprep.mubr.bf16.mxu0 0
    %658 = vmatmul.mubr.bf16.gmra.mrb[0].mxu0 %v359
    %v659 = vpop.f32.mrb[0].mxu0
    %v660 = vadd.f32 %v207, %v659
    %v661 = vpop.f32.mrb[0].mxu0
    %v662 = vpop.f32.mrb[0].mxu0
    %v663 = vadd.f32 %v207, %v662
    %v664 = vpop.f32.mrb[0].mxu0
    %665 = vmatprep.mubr.bf16.mxu0 0
    %666 = vmatmul.mubr.bf16.gmra.mrb[0].mxu0 %v360
    %v667 = vpop.f32.mrb[0].mxu0
    %v668 = vadd.f32 %v207, %v667
    %v669 = vpop.f32.mrb[0].mxu0
    %v670 = vpop.f32.mrb[0].mxu0
    %v671 = vadd.f32 %v207, %v670
    %v672 = vpop.f32.mrb[0].mxu0
    %673 = vmatprep.mubr.bf16.mxu0 0
    %674 = vmatmul.mubr.bf16.gmra.mrb[0].mxu0 %v361
    %v675 = vpop.f32.mrb[0].mxu0
    %v676 = vadd.f32 %v207, %v675
    %v677 = vpop.f32.mrb[0].mxu0
    %v678 = vpop.f32.mrb[0].mxu0
    %v679 = vadd.f32 %v207, %v678
    %v680 = vpop.f32.mrb[0].mxu0
    %681 = vmatprep.mubr.bf16.mxu0 0
    %682 = vmatmul.mubr.bf16.gmra.mrb[0].mxu0 %v362
    %v683 = vpop.f32.mrb[0].mxu0
    %v684 = vadd.f32 %v207, %v683
    %v685 = vpop.f32.mrb[0].mxu0
    %v686 = vpop.f32.mrb[0].mxu0
    %v687 = vadd.f32 %v207, %v686
    %v688 = vpop.f32.mrb[0].mxu0
    %689 = vmatprep.mubr.bf16.mxu0 0
    %690 = vmatmul.mubr.bf16.gmra.mrb[0].mxu0 %v363
    %v691 = vpop.f32.mrb[0].mxu0
    %v692 = vadd.f32 %v207, %v691
    %v693 = vpop.f32.mrb[0].mxu0
    %v694 = vpop.f32.mrb[0].mxu0
    %v695 = vadd.f32 %v207, %v694
    %v696 = vpop.f32.mrb[0].mxu0
    %697 = vmatprep.mubr.bf16.mxu0 0
    %698 = vmatmul.mubr.bf16.gmra.mrb[0].mxu0 %v364
    %v699 = vpop.f32.mrb[0].mxu0
    %v700 = vadd.f32 %v207, %v699
    %v701 = vpop.f32.mrb[0].mxu0
    %v702 = vpop.f32.mrb[0].mxu0
    %v703 = vadd.f32 %v207, %v702
    %v704 = vpop.f32.mrb[0].mxu0
    %705 = vmatprep.mubr.bf16.mxu0 0
    %706 = vmatmul.mubr.bf16.gmra.mrb[0].mxu0 %v365
    %v707 = vpop.f32.mrb[0].mxu0
    %v708 = vadd.f32 %v207, %v707
    %v709 = vpop.f32.mrb[0].mxu0
    %v710 = vpop.f32.mrb[0].mxu0
    %v711 = vadd.f32 %v207, %v710
    %v712 = vpop.f32.mrb[0].mxu0
    %713 = vmatprep.mubr.bf16.mxu0 0
    %714 = vmatmul.mubr.bf16.gmra.mrb[0].mxu0 %v366
    %v715 = vpop.f32.mrb[0].mxu0
    %v716 = vadd.f32 %v207, %v715
    %v717 = vpop.f32.mrb[0].mxu0
    %v718 = vpop.f32.mrb[0].mxu0
    %v719 = vadd.f32 %v207, %v718
    %v720 = vpop.f32.mrb[0].mxu0
    %721 = vmatprep.mubr.bf16.mxu0 0
    %722 = vmatmul.mubr.bf16.gmra.mrb[0].mxu0 %v367
    %v723 = vpop.f32.mrb[0].mxu0
    %v724 = vadd.f32 %v207, %v723
    %v725 = vpop.f32.mrb[0].mxu0
    %v726 = vpop.f32.mrb[0].mxu0
    %v727 = vadd.f32 %v207, %v726
    %v728 = vpop.f32.mrb[0].mxu0
    %729 = vmatprep.mubr.bf16.mxu0 0
    %730 = vmatmul.mubr.bf16.gmra.mrb[0].mxu0 %v368
    %v731 = vpop.f32.mrb[0].mxu0
    %v732 = vadd.f32 %v207, %v731
    %v733 = vpop.f32.mrb[0].mxu0
    %v734 = vpop.f32.mrb[0].mxu0
    %v735 = vadd.f32 %v207, %v734
    %v736 = vpop.f32.mrb[0].mxu0
    %737 = vdwg.mxu0
    %v738 = vsub.f32 0.0, %v484
    %v739 = vsub.f32 0.0, %v487
    %v740 = vsub.f32 0.0, %v492
    %v741 = vsub.f32 0.0, %v495
    %v742 = vsub.f32 0.0, %v500
    %v743 = vsub.f32 0.0, %v503
    %v744 = vsub.f32 0.0, %v508
    %v745 = vsub.f32 0.0, %v511
    %v746 = vsub.f32 0.0, %v516
    %v747 = vsub.f32 0.0, %v519
    %v748 = vsub.f32 0.0, %v524
    %v749 = vsub.f32 0.0, %v527
    %v750 = vsub.f32 0.0, %v532
    %v751 = vsub.f32 0.0, %v535
    %v752 = vsub.f32 0.0, %v540
    %v753 = vsub.f32 0.0, %v543
    %v754 = vsub.f32 0.0, %v548
    %v755 = vsub.f32 0.0, %v551
    %v756 = vsub.f32 0.0, %v556
    %v757 = vsub.f32 0.0, %v559
    %v758 = vsub.f32 0.0, %v564
    %v759 = vsub.f32 0.0, %v567
    %v760 = vsub.f32 0.0, %v572
    %v761 = vsub.f32 0.0, %v575
    %v762 = vsub.f32 0.0, %v580
    %v763 = vsub.f32 0.0, %v583
    %v764 = vsub.f32 0.0, %v588
    %v765 = vsub.f32 0.0, %v591
    %v766 = vsub.f32 0.0, %v596
    %v767 = vsub.f32 0.0, %v599
    %v768 = vsub.f32 0.0, %v604
    %v769 = vsub.f32 0.0, %v607
    %v770 = vsub.f32 0.0, %v612
    %v771 = vsub.f32 0.0, %v615
    %v772 = vsub.f32 0.0, %v620
    %v773 = vsub.f32 0.0, %v623
    %v774 = vsub.f32 0.0, %v628
    %v775 = vsub.f32 0.0, %v631
    %v776 = vsub.f32 0.0, %v636
    %v777 = vsub.f32 0.0, %v639
    %v778 = vsub.f32 0.0, %v644
    %v779 = vsub.f32 0.0, %v647
    %v780 = vsub.f32 0.0, %v652
    %v781 = vsub.f32 0.0, %v655
    %v782 = vsub.f32 0.0, %v660
    %v783 = vsub.f32 0.0, %v663
    %v784 = vsub.f32 0.0, %v668
    %v785 = vsub.f32 0.0, %v671
    %v786 = vsub.f32 0.0, %v676
    %v787 = vsub.f32 0.0, %v679
    %v788 = vsub.f32 0.0, %v684
    %v789 = vsub.f32 0.0, %v687
    %v790 = vsub.f32 0.0, %v692
    %v791 = vsub.f32 0.0, %v695
    %v792 = vsub.f32 0.0, %v700
    %v793 = vsub.f32 0.0, %v703
    %v794 = vsub.f32 0.0, %v708
    %v795 = vsub.f32 0.0, %v711
    %v796 = vsub.f32 0.0, %v716
    %v797 = vsub.f32 0.0, %v719
    %v798 = vsub.f32 0.0, %v724
    %v799 = vsub.f32 0.0, %v727
    %v800 = vsub.f32 0.0, %v732
    %v801 = vsub.f32 0.0, %v735
    %v802 = vmul.f32 %v738, 1.442695
    %v803 = vpow.pop %v802
    %v804 = vmul.f32 %v739, 1.442695
    %v805 = vpow.pop %v804
    %v806 = vmul.f32 %v740, 1.442695
    %v807 = vpow.pop %v806
    %v808 = vmul.f32 %v741, 1.442695
    %v809 = vpow.pop %v808
    %v810 = vmul.f32 %v742, 1.442695
    %v811 = vpow.pop %v810
    %v812 = vmul.f32 %v743, 1.442695
    %v813 = vpow.pop %v812
    %v814 = vmul.f32 %v744, 1.442695
    %v815 = vpow.pop %v814
    %v816 = vmul.f32 %v745, 1.442695
    %v817 = vpow.pop %v816
    %v818 = vmul.f32 %v746, 1.442695
    %v819 = vpow.pop %v818
    %v820 = vmul.f32 %v747, 1.442695
    %v821 = vpow.pop %v820
    %v822 = vmul.f32 %v748, 1.442695
    %v823 = vpow.pop %v822
    %v824 = vmul.f32 %v749, 1.442695
    %v825 = vpow.pop %v824
    %v826 = vmul.f32 %v750, 1.442695
    %v827 = vpow.pop %v826
    %v828 = vmul.f32 %v751, 1.442695
    %v829 = vpow.pop %v828
    %v830 = vmul.f32 %v752, 1.442695
    %v831 = vpow.pop %v830
    %v832 = vmul.f32 %v753, 1.442695
    %v833 = vpow.pop %v832
    %v834 = vmul.f32 %v754, 1.442695
    %v835 = vpow.pop %v834
    %v836 = vmul.f32 %v755, 1.442695
    %v837 = vpow.pop %v836
    %v838 = vmul.f32 %v756, 1.442695
    %v839 = vpow.pop %v838
    %v840 = vmul.f32 %v757, 1.442695
    %v841 = vpow.pop %v840
    %v842 = vmul.f32 %v758, 1.442695
    %v843 = vpow.pop %v842
    %v844 = vmul.f32 %v759, 1.442695
    %v845 = vpow.pop %v844
    %v846 = vmul.f32 %v760, 1.442695
    %v847 = vpow.pop %v846
    %v848 = vmul.f32 %v761, 1.442695
    %v849 = vpow.pop %v848
    %v850 = vmul.f32 %v762, 1.442695
    %v851 = vpow.pop %v850
    %v852 = vmul.f32 %v763, 1.442695
    %v853 = vpow.pop %v852
    %v854 = vmul.f32 %v764, 1.442695
    %v855 = vpow.pop %v854
    %v856 = vmul.f32 %v765, 1.442695
    %v857 = vpow.pop %v856
    %v858 = vmul.f32 %v766, 1.442695
    %v859 = vpow.pop %v858
    %v860 = vmul.f32 %v767, 1.442695
    %v861 = vpow.pop %v860
    %v862 = vmul.f32 %v768, 1.442695
    %v863 = vpow.pop %v862
    %v864 = vmul.f32 %v769, 1.442695
    %v865 = vpow.pop %v864
    %v866 = vmul.f32 %v770, 1.442695
    %v867 = vpow.pop %v866
    %v868 = vmul.f32 %v771, 1.442695
    %v869 = vpow.pop %v868
    %v870 = vmul.f32 %v772, 1.442695
    %v871 = vpow.pop %v870
    %v872 = vmul.f32 %v773, 1.442695
    %v873 = vpow.pop %v872
    %v874 = vmul.f32 %v774, 1.442695
    %v875 = vpow.pop %v874
    %v876 = vmul.f32 %v775, 1.442695
    %v877 = vpow.pop %v876
    %v878 = vmul.f32 %v776, 1.442695
    %v879 = vpow.pop %v878
    %v880 = vmul.f32 %v777, 1.442695
    %v881 = vpow.pop %v880
    %v882 = vmul.f32 %v778, 1.442695
    %v883 = vpow.pop %v882
    %v884 = vmul.f32 %v779, 1.442695
    %v885 = vpow.pop %v884
    %v886 = vmul.f32 %v780, 1.442695
    %v887 = vpow.pop %v886
    %v888 = vmul.f32 %v781, 1.442695
    %v889 = vpow.pop %v888
    %v890 = vmul.f32 %v782, 1.442695
    %v891 = vpow.pop %v890
    %v892 = vmul.f32 %v783, 1.442695
    %v893 = vpow.pop %v892
    %v894 = vmul.f32 %v784, 1.442695
    %v895 = vpow.pop %v894
    %v896 = vmul.f32 %v785, 1.442695
    %v897 = vpow.pop %v896
    %v898 = vmul.f32 %v786, 1.442695
    %v899 = vpow.pop %v898
    %v900 = vmul.f32 %v787, 1.442695
    %v901 = vpow.pop %v900
    %v902 = vmul.f32 %v788, 1.442695
    %v903 = vpow.pop %v902
    %v904 = vmul.f32 %v789, 1.442695
    %v905 = vpow.pop %v904
    %v906 = vmul.f32 %v790, 1.442695
    %v907 = vpow.pop %v906
    %v908 = vmul.f32 %v791, 1.442695
    %v909 = vpow.pop %v908
    %v910 = vmul.f32 %v792, 1.442695
    %v911 = vpow.pop %v910
    %v912 = vmul.f32 %v793, 1.442695
    %v913 = vpow.pop %v912
    %v914 = vmul.f32 %v794, 1.442695
    %v915 = vpow.pop %v914
    %v916 = vmul.f32 %v795, 1.442695
    %v917 = vpow.pop %v916
    %v918 = vmul.f32 %v796, 1.442695
    %v919 = vpow.pop %v918
    %v920 = vmul.f32 %v797, 1.442695
    %v921 = vpow.pop %v920
    %v922 = vmul.f32 %v798, 1.442695
    %v923 = vpow.pop %v922
    %v924 = vmul.f32 %v799, 1.442695
    %v925 = vpow.pop %v924
    %v926 = vmul.f32 %v800, 1.442695
    %v927 = vpow.pop %v926
    %v928 = vmul.f32 %v801, 1.442695
    %v929 = vpow.pop %v928
    %v930 = vadd.f32 %v803, 1.0
    %v931 = vadd.f32 %v805, 1.0
    %v932 = vadd.f32 %v807, 1.0
    %v933 = vadd.f32 %v809, 1.0
    %v934 = vadd.f32 %v811, 1.0
    %v935 = vadd.f32 %v813, 1.0
    %v936 = vadd.f32 %v815, 1.0
    %v937 = vadd.f32 %v817, 1.0
    %v938 = vadd.f32 %v819, 1.0
    %v939 = vadd.f32 %v821, 1.0
    %v940 = vadd.f32 %v823, 1.0
    %v941 = vadd.f32 %v825, 1.0
    %v942 = vadd.f32 %v827, 1.0
    %v943 = vadd.f32 %v829, 1.0
    %v944 = vadd.f32 %v831, 1.0
    %v945 = vadd.f32 %v833, 1.0
    %v946 = vadd.f32 %v835, 1.0
    %v947 = vadd.f32 %v837, 1.0
    %v948 = vadd.f32 %v839, 1.0
    %v949 = vadd.f32 %v841, 1.0
    %v950 = vadd.f32 %v843, 1.0
    %v951 = vadd.f32 %v845, 1.0
    %v952 = vadd.f32 %v847, 1.0
    %v953 = vadd.f32 %v849, 1.0
    %v954 = vadd.f32 %v851, 1.0
    %v955 = vadd.f32 %v853, 1.0
    %v956 = vadd.f32 %v855, 1.0
    %v957 = vadd.f32 %v857, 1.0
    %v958 = vadd.f32 %v859, 1.0
    %v959 = vadd.f32 %v861, 1.0
    %v960 = vadd.f32 %v863, 1.0
    %v961 = vadd.f32 %v865, 1.0
    %v962 = vadd.f32 %v867, 1.0
    %v963 = vadd.f32 %v869, 1.0
    %v964 = vadd.f32 %v871, 1.0
    %v965 = vadd.f32 %v873, 1.0
    %v966 = vadd.f32 %v875, 1.0
    %v967 = vadd.f32 %v877, 1.0
    %v968 = vadd.f32 %v879, 1.0
    %v969 = vadd.f32 %v881, 1.0
    %v970 = vadd.f32 %v883, 1.0
    %v971 = vadd.f32 %v885, 1.0
    %v972 = vadd.f32 %v887, 1.0
    %v973 = vadd.f32 %v889, 1.0
    %v974 = vadd.f32 %v891, 1.0
    %v975 = vadd.f32 %v893, 1.0
    %v976 = vadd.f32 %v895, 1.0
    %v977 = vadd.f32 %v897, 1.0
    %v978 = vadd.f32 %v899, 1.0
    %v979 = vadd.f32 %v901, 1.0
    %v980 = vadd.f32 %v903, 1.0
    %v981 = vadd.f32 %v905, 1.0
    %v982 = vadd.f32 %v907, 1.0
    %v983 = vadd.f32 %v909, 1.0
    %v984 = vadd.f32 %v911, 1.0
    %v985 = vadd.f32 %v913, 1.0
    %v986 = vadd.f32 %v915, 1.0
    %v987 = vadd.f32 %v917, 1.0
    %v988 = vadd.f32 %v919, 1.0
    %v989 = vadd.f32 %v921, 1.0
    %v990 = vadd.f32 %v923, 1.0
    %v991 = vadd.f32 %v925, 1.0
    %v992 = vadd.f32 %v927, 1.0
    %v993 = vadd.f32 %v929, 1.0
    %v994 = vrcp.pop %v930
    %v995 = vrcp.pop %v931
    %v996 = vrcp.pop %v932
    %v997 = vrcp.pop %v933
    %v998 = vrcp.pop %v934
    %v999 = vrcp.pop %v935
    %v1000 = vrcp.pop %v936
    %v1001 = vrcp.pop %v937
    %v1002 = vrcp.pop %v938
    %v1003 = vrcp.pop %v939
    %v1004 = vrcp.pop %v940
    %v1005 = vrcp.pop %v941
    %v1006 = vrcp.pop %v942
    %v1007 = vrcp.pop %v943
    %v1008 = vrcp.pop %v944
    %v1009 = vrcp.pop %v945
    %v1010 = vrcp.pop %v946
    %v1011 = vrcp.pop %v947
    %v1012 = vrcp.pop %v948
    %v1013 = vrcp.pop %v949
    %v1014 = vrcp.pop %v950
    %v1015 = vrcp.pop %v951
    %v1016 = vrcp.pop %v952
    %v1017 = vrcp.pop %v953
    %v1018 = vrcp.pop %v954
    %v1019 = vrcp.pop %v955
    %v1020 = vrcp.pop %v956
    %v1021 = vrcp.pop %v957
    %v1022 = vrcp.pop %v958
    %v1023 = vrcp.pop %v959
    %v1024 = vrcp.pop %v960
    %v1025 = vrcp.pop %v961
    %v1026 = vrcp.pop %v962
    %v1027 = vrcp.pop %v963
    %v1028 = vrcp.pop %v964
    %v1029 = vrcp.pop %v965
    %v1030 = vrcp.pop %v966
    %v1031 = vrcp.pop %v967
    %v1032 = vrcp.pop %v968
    %v1033 = vrcp.pop %v969
    %v1034 = vrcp.pop %v970
    %v1035 = vrcp.pop %v971
    %v1036 = vrcp.pop %v972
    %v1037 = vrcp.pop %v973
    %v1038 = vrcp.pop %v974
    %v1039 = vrcp.pop %v975
    %v1040 = vrcp.pop %v976
    %v1041 = vrcp.pop %v977
    %v1042 = vrcp.pop %v978
    %v1043 = vrcp.pop %v979
    %v1044 = vrcp.pop %v980
    %v1045 = vrcp.pop %v981
    %v1046 = vrcp.pop %v982
    %v1047 = vrcp.pop %v983
    %v1048 = vrcp.pop %v984
    %v1049 = vrcp.pop %v985
    %v1050 = vrcp.pop %v986
    %v1051 = vrcp.pop %v987
    %v1052 = vrcp.pop %v988
    %v1053 = vrcp.pop %v989
    %v1054 = vrcp.pop %v990
    %v1055 = vrcp.pop %v991
    %v1056 = vrcp.pop %v992
    %v1057 = vrcp.pop %v993
    %v1058 = vmul.f32 %v484, %v994
    %v1059 = vmul.f32 %v487, %v995
    %v1060 = vmul.f32 %v492, %v996
    %v1061 = vmul.f32 %v495, %v997
    %v1062 = vmul.f32 %v500, %v998
    %v1063 = vmul.f32 %v503, %v999
    %v1064 = vmul.f32 %v508, %v1000
    %v1065 = vmul.f32 %v511, %v1001
    %v1066 = vmul.f32 %v516, %v1002
    %v1067 = vmul.f32 %v519, %v1003
    %v1068 = vmul.f32 %v524, %v1004
    %v1069 = vmul.f32 %v527, %v1005
    %v1070 = vmul.f32 %v532, %v1006
    %v1071 = vmul.f32 %v535, %v1007
    %v1072 = vmul.f32 %v540, %v1008
    %v1073 = vmul.f32 %v543, %v1009
    %v1074 = vmul.f32 %v548, %v1010
    %v1075 = vmul.f32 %v551, %v1011
    %v1076 = vmul.f32 %v556, %v1012
    %v1077 = vmul.f32 %v559, %v1013
    %v1078 = vmul.f32 %v564, %v1014
    %v1079 = vmul.f32 %v567, %v1015
    %v1080 = vmul.f32 %v572, %v1016
    %v1081 = vmul.f32 %v575, %v1017
    %v1082 = vmul.f32 %v580, %v1018
    %v1083 = vmul.f32 %v583, %v1019
    %v1084 = vmul.f32 %v588, %v1020
    %v1085 = vmul.f32 %v591, %v1021
    %v1086 = vmul.f32 %v596, %v1022
    %v1087 = vmul.f32 %v599, %v1023
    %v1088 = vmul.f32 %v604, %v1024
    %v1089 = vmul.f32 %v607, %v1025
    %v1090 = vmul.f32 %v612, %v1026
    %v1091 = vmul.f32 %v615, %v1027
    %v1092 = vmul.f32 %v620, %v1028
    %v1093 = vmul.f32 %v623, %v1029
    %v1094 = vmul.f32 %v628, %v1030
    %v1095 = vmul.f32 %v631, %v1031
    %v1096 = vmul.f32 %v636, %v1032
    %v1097 = vmul.f32 %v639, %v1033
    %v1098 = vmul.f32 %v644, %v1034
    %v1099 = vmul.f32 %v647, %v1035
    %v1100 = vmul.f32 %v652, %v1036
    %v1101 = vmul.f32 %v655, %v1037
    %v1102 = vmul.f32 %v660, %v1038
    %v1103 = vmul.f32 %v663, %v1039
    %v1104 = vmul.f32 %v668, %v1040
    %v1105 = vmul.f32 %v671, %v1041
    %v1106 = vmul.f32 %v676, %v1042
    %v1107 = vmul.f32 %v679, %v1043
    %v1108 = vmul.f32 %v684, %v1044
    %v1109 = vmul.f32 %v687, %v1045
    %v1110 = vmul.f32 %v692, %v1046
    %v1111 = vmul.f32 %v695, %v1047
    %v1112 = vmul.f32 %v700, %v1048
    %v1113 = vmul.f32 %v703, %v1049
    %v1114 = vmul.f32 %v708, %v1050
    %v1115 = vmul.f32 %v711, %v1051
    %v1116 = vmul.f32 %v716, %v1052
    %v1117 = vmul.f32 %v719, %v1053
    %v1118 = vmul.f32 %v724, %v1054
    %v1119 = vmul.f32 %v727, %v1055
    %v1120 = vmul.f32 %v732, %v1056
    %v1121 = vmul.f32 %v735, %v1057
    %1122 = vst [vmem:[#allocation2 + $0x7] sm:$0xff] 0.0
    %1123 = vst [vmem:[#allocation2 + $0xf] sm:$0xff] 0.0
    %1124 = vst [vmem:[#allocation2 + $0x17] sm:$0x3] 0.0
    %1125 = vst [vmem:[#allocation2 + $0x247] sm:$0xff] 0.0
    %1126 = vst [vmem:[#allocation2 + $0x24f] sm:$0xff] 0.0
    %1127 = vst [vmem:[#allocation2 + $0x257] sm:$0x3] 0.0
    %s1128 = scalar_lea.vmem [#allocation2], 544
    %1129 = vst [vmem:[%s1128 + $0x7] sm:$0xff] 0.0
    %1130 = vst [vmem:[%s1128 + $0xf] sm:$0xff] 0.0
    %1131 = vst [vmem:[%s1128 + $0x17] sm:$0x3] 0.0
    %1132 = vst [vmem:[%s1128 + $0x247] sm:$0xff] 0.0
    %1133 = vst [vmem:[%s1128 + $0x24f] sm:$0xff] 0.0
    %1134 = vst [vmem:[%s1128 + $0x257] sm:$0x3] 0.0
    %1135 = vst [vmem:[#allocation2 + $0x7] sm:$0x1] 0.0
    %1136 = vst [vmem:[#allocation2 + $0x27] sm:$0x1] 0.0
    %1137 = vst [vmem:[#allocation2 + $0x47] sm:$0x1] 0.0
    %1138 = vst [vmem:[#allocation2 + $0x67] sm:$0x1] 0.0
    %1139 = vst [vmem:[#allocation2 + $0x87] sm:$0x1] 0.0
    %1140 = vst [vmem:[#allocation2 + $0xa7] sm:$0x1] 0.0
    %1141 = vst [vmem:[#allocation2 + $0xc7] sm:$0x1] 0.0
    %1142 = vst [vmem:[#allocation2 + $0xe7] sm:$0x1] 0.0
    %1143 = vst [vmem:[#allocation2 + $0x107] sm:$0x1] 0.0
    %1144 = vst [vmem:[#allocation2 + $0x127] sm:$0x1] 0.0
    %1145 = vst [vmem:[#allocation2 + $0x147] sm:$0x1] 0.0
    %1146 = vst [vmem:[#allocation2 + $0x167] sm:$0x1] 0.0
    %1147 = vst [vmem:[#allocation2 + $0x187] sm:$0x1] 0.0
    %1148 = vst [vmem:[#allocation2 + $0x1a7] sm:$0x1] 0.0
    %1149 = vst [vmem:[#allocation2 + $0x1c7] sm:$0x1] 0.0
    %1150 = vst [vmem:[#allocation2 + $0x1e7] sm:$0x1] 0.0
    %1151 = vst [vmem:[#allocation2 + $0x207] sm:$0x1] 0.0
    %1152 = vst [vmem:[#allocation2 + $0x227] sm:$0x1] 0.0
    %1153 = vst [vmem:[#allocation2 + $0x247] sm:$0x1] 0.0
    %1154 = vst [vmem:[#allocation2 + $0x267] sm:$0x1] 0.0
    %1155 = vst [vmem:[#allocation2 + $0x287] sm:$0x1] 0.0
    %1156 = vst [vmem:[#allocation2 + $0x2a7] sm:$0x1] 0.0
    %1157 = vst [vmem:[#allocation2 + $0x2c7] sm:$0x1] 0.0
    %1158 = vst [vmem:[#allocation2 + $0x2e7] sm:$0x1] 0.0
    %1159 = vst [vmem:[#allocation2 + $0x307] sm:$0x1] 0.0
    %1160 = vst [vmem:[#allocation2 + $0x327] sm:$0x1] 0.0
    %1161 = vst [vmem:[#allocation2 + $0x347] sm:$0x1] 0.0
    %1162 = vst [vmem:[#allocation2 + $0x367] sm:$0x1] 0.0
    %1163 = vst [vmem:[#allocation2 + $0x387] sm:$0x1] 0.0
    %1164 = vst [vmem:[#allocation2 + $0x3a7] sm:$0x1] 0.0
    %1165 = vst [vmem:[#allocation2 + $0x3c7] sm:$0x1] 0.0
    %1166 = vst [vmem:[#allocation2 + $0x3e7] sm:$0x1] 0.0
    %1167 = vst [vmem:[#allocation2 + $0x407] sm:$0x1] 0.0
    %1168 = vst [vmem:[#allocation2 + $0x427] sm:$0x1] 0.0
    %1169 = vst [vmem:[#allocation2 + $0x447] sm:$0x1] 0.0
    %1170 = vst [vmem:[#allocation2 + $0x467] sm:$0x1] 0.0
    %1171 = vst [vmem:[#allocation2 + $0x18] sm:$0x1] 0.0
    %1172 = vst [vmem:[#allocation2 + $0x38] sm:$0x1] 0.0
    %1173 = vst [vmem:[#allocation2 + $0x58] sm:$0x1] 0.0
    %1174 = vst [vmem:[#allocation2 + $0x78] sm:$0x1] 0.0
    %1175 = vst [vmem:[#allocation2 + $0x98] sm:$0x1] 0.0
    %1176 = vst [vmem:[#allocation2 + $0xb8] sm:$0x1] 0.0
    %1177 = vst [vmem:[#allocation2 + $0xd8] sm:$0x1] 0.0
    %1178 = vst [vmem:[#allocation2 + $0xf8] sm:$0x1] 0.0
    %1179 = vst [vmem:[#allocation2 + $0x118] sm:$0x1] 0.0
    %1180 = vst [vmem:[#allocation2 + $0x138] sm:$0x1] 0.0
    %1181 = vst [vmem:[#allocation2 + $0x158] sm:$0x1] 0.0
    %1182 = vst [vmem:[#allocation2 + $0x178] sm:$0x1] 0.0
    %1183 = vst [vmem:[#allocation2 + $0x198] sm:$0x1] 0.0
    %1184 = vst [vmem:[#allocation2 + $0x1b8] sm:$0x1] 0.0
    %1185 = vst [vmem:[#allocation2 + $0x1d8] sm:$0x1] 0.0
    %1186 = vst [vmem:[#allocation2 + $0x1f8] sm:$0x1] 0.0
    %1187 = vst [vmem:[#allocation2 + $0x218] sm:$0x1] 0.0
    %1188 = vst [vmem:[#allocation2 + $0x238] sm:$0x1] 0.0
    %1189 = vst [vmem:[#allocation2 + $0x258] sm:$0x1] 0.0
    %1190 = vst [vmem:[#allocation2 + $0x278] sm:$0x1] 0.0
    %1191 = vst [vmem:[#allocation2 + $0x298] sm:$0x1] 0.0
    %1192 = vst [vmem:[#allocation2 + $0x2b8] sm:$0x1] 0.0
    %1193 = vst [vmem:[#allocation2 + $0x2d8] sm:$0x1] 0.0
    %1194 = vst [vmem:[#allocation2 + $0x2f8] sm:$0x1] 0.0
    %1195 = vst [vmem:[#allocation2 + $0x318] sm:$0x1] 0.0
    %1196 = vst [vmem:[#allocation2 + $0x338] sm:$0x1] 0.0
    %1197 = vst [vmem:[#allocation2 + $0x358] sm:$0x1] 0.0
    %1198 = vst [vmem:[#allocation2 + $0x378] sm:$0x1] 0.0
    %1199 = vst [vmem:[#allocation2 + $0x398] sm:$0x1] 0.0
    %1200 = vst [vmem:[#allocation2 + $0x3b8] sm:$0x1] 0.0
    %1201 = vst [vmem:[#allocation2 + $0x3d8] sm:$0x1] 0.0
    %1202 = vst [vmem:[#allocation2 + $0x3f8] sm:$0x1] 0.0
    %1203 = vst [vmem:[#allocation2 + $0x418] sm:$0x1] 0.0
    %1204 = vst [vmem:[#allocation2 + $0x438] sm:$0x1] 0.0
    %1205 = vst [vmem:[#allocation2 + $0x458] sm:$0x1] 0.0
    %1206 = vst [vmem:[#allocation2 + $0x478] sm:$0x1] 0.0
    %s1207 = scalar_lea.vmem [#allocation2], 32
    %1208 = vst [vmem:[%s1207 + $0x8] sm:$0xff] %v1058
    %1209 = vst [vmem:[%s1207 + $0x10] sm:$0xff] %v1059
    %1210 = vst [vmem:[%s1207 + $0x28] sm:$0xff] %v1060
    %1211 = vst [vmem:[%s1207 + $0x30] sm:$0xff] %v1061
    %1212 = vst [vmem:[%s1207 + $0x48] sm:$0xff] %v1062
    %1213 = vst [vmem:[%s1207 + $0x50] sm:$0xff] %v1063
    %1214 = vst [vmem:[%s1207 + $0x68] sm:$0xff] %v1064
    %1215 = vst [vmem:[%s1207 + $0x70] sm:$0xff] %v1065
    %1216 = vst [vmem:[%s1207 + $0x88] sm:$0xff] %v1066
    %1217 = vst [vmem:[%s1207 + $0x90] sm:$0xff] %v1067
    %1218 = vst [vmem:[%s1207 + $0xa8] sm:$0xff] %v1068
    %1219 = vst [vmem:[%s1207 + $0xb0] sm:$0xff] %v1069
    %1220 = vst [vmem:[%s1207 + $0xc8] sm:$0xff] %v1070
    %1221 = vst [vmem:[%s1207 + $0xd0] sm:$0xff] %v1071
    %1222 = vst [vmem:[%s1207 + $0xe8] sm:$0xff] %v1072
    %1223 = vst [vmem:[%s1207 + $0xf0] sm:$0xff] %v1073
    %1224 = vst [vmem:[%s1207 + $0x108] sm:$0xff] %v1074
    %1225 = vst [vmem:[%s1207 + $0x110] sm:$0xff] %v1075
    %1226 = vst [vmem:[%s1207 + $0x128] sm:$0xff] %v1076
    %1227 = vst [vmem:[%s1207 + $0x130] sm:$0xff] %v1077
    %1228 = vst [vmem:[%s1207 + $0x148] sm:$0xff] %v1078
    %1229 = vst [vmem:[%s1207 + $0x150] sm:$0xff] %v1079
    %1230 = vst [vmem:[%s1207 + $0x168] sm:$0xff] %v1080
    %1231 = vst [vmem:[%s1207 + $0x170] sm:$0xff] %v1081
    %1232 = vst [vmem:[%s1207 + $0x188] sm:$0xff] %v1082
    %1233 = vst [vmem:[%s1207 + $0x190] sm:$0xff] %v1083
    %1234 = vst [vmem:[%s1207 + $0x1a8] sm:$0xff] %v1084
    %1235 = vst [vmem:[%s1207 + $0x1b0] sm:$0xff] %v1085
    %1236 = vst [vmem:[%s1207 + $0x1c8] sm:$0xff] %v1086
    %1237 = vst [vmem:[%s1207 + $0x1d0] sm:$0xff] %v1087
    %1238 = vst [vmem:[%s1207 + $0x1e8] sm:$0xff] %v1088
    %1239 = vst [vmem:[%s1207 + $0x1f0] sm:$0xff] %v1089
    %1240 = vst [vmem:[%s1207 + $0x248] sm:$0xff] %v1090
    %1241 = vst [vmem:[%s1207 + $0x250] sm:$0xff] %v1091
    %1242 = vst [vmem:[%s1207 + $0x268] sm:$0xff] %v1092
    %1243 = vst [vmem:[%s1207 + $0x270] sm:$0xff] %v1093
    %1244 = vst [vmem:[%s1207 + $0x288] sm:$0xff] %v1094
    %1245 = vst [vmem:[%s1207 + $0x290] sm:$0xff] %v1095
    %1246 = vst [vmem:[%s1207 + $0x2a8] sm:$0xff] %v1096
    %1247 = vst [vmem:[%s1207 + $0x2b0] sm:$0xff] %v1097
    %1248 = vst [vmem:[%s1207 + $0x2c8] sm:$0xff] %v1098
    %1249 = vst [vmem:[%s1207 + $0x2d0] sm:$0xff] %v1099
    %1250 = vst [vmem:[%s1207 + $0x2e8] sm:$0xff] %v1100
    %1251 = vst [vmem:[%s1207 + $0x2f0] sm:$0xff] %v1101
    %1252 = vst [vmem:[%s1207 + $0x308] sm:$0xff] %v1102
    %1253 = vst [vmem:[%s1207 + $0x310] sm:$0xff] %v1103
    %1254 = vst [vmem:[%s1207 + $0x328] sm:$0xff] %v1104
    %1255 = vst [vmem:[%s1207 + $0x330] sm:$0xff] %v1105
    %1256 = vst [vmem:[%s1207 + $0x348] sm:$0xff] %v1106
    %1257 = vst [vmem:[%s1207 + $0x350] sm:$0xff] %v1107
    %1258 = vst [vmem:[%s1207 + $0x368] sm:$0xff] %v1108
    %1259 = vst [vmem:[%s1207 + $0x370] sm:$0xff] %v1109
    %1260 = vst [vmem:[%s1207 + $0x388] sm:$0xff] %v1110
    %1261 = vst [vmem:[%s1207 + $0x390] sm:$0xff] %v1111
    %1262 = vst [vmem:[%s1207 + $0x3a8] sm:$0xff] %v1112
    %1263 = vst [vmem:[%s1207 + $0x3b0] sm:$0xff] %v1113
    %1264 = vst [vmem:[%s1207 + $0x3c8] sm:$0xff] %v1114
    %1265 = vst [vmem:[%s1207 + $0x3d0] sm:$0xff] %v1115
    %1266 = vst [vmem:[%s1207 + $0x3e8] sm:$0xff] %v1116
    %1267 = vst [vmem:[%s1207 + $0x3f0] sm:$0xff] %v1117
    %1268 = vst [vmem:[%s1207 + $0x408] sm:$0xff] %v1118
    %1269 = vst [vmem:[%s1207 + $0x410] sm:$0xff] %v1119
    %1270 = vst [vmem:[%s1207 + $0x428] sm:$0xff] %v1120
    %1271 = vst [vmem:[%s1207 + $0x430] sm:$0xff] %v1121
    %v1272 = vld [vmem:[#allocation8] sm:$0x7]
    %v1273 = vld [vmem:[#allocation8 + $0x4] sm:$0x7]
    %v1274 = vld [vmem:[#allocation8 + $0x8] sm:$0x7]
    %v1275 = vld [vmem:[#allocation2 + $0x7] sm:$0xff]
    %v1276 = vld [vmem:[#allocation2 + $0xf] sm:$0xff]
    %v1277 = vld [vmem:[#allocation2 + $0x27] sm:$0xff]
    %v1278 = vld [vmem:[#allocation2 + $0x2f] sm:$0xff]
    %v1279 = vld [vmem:[#allocation2 + $0x47] sm:$0xff]
    %v1280 = vld [vmem:[#allocation2 + $0x4f] sm:$0xff]
    %v1281 = vld [vmem:[#allocation2 + $0x67] sm:$0xff]
    %v1282 = vld [vmem:[#allocation2 + $0x6f] sm:$0xff]
    %v1283 = vld [vmem:[#allocation2 + $0x87] sm:$0xff]
    %v1284 = vld [vmem:[#allocation2 + $0x8f] sm:$0xff]
    %v1285 = vld [vmem:[#allocation2 + $0xa7] sm:$0xff]
    %v1286 = vld [vmem:[#allocation2 + $0xaf] sm:$0xff]
    %v1287 = vld [vmem:[#allocation2 + $0xc7] sm:$0xff]
    %v1288 = vld [vmem:[#allocation2 + $0xcf] sm:$0xff]
    %v1289 = vld [vmem:[#allocation2 + $0xe7] sm:$0xff]
    %v1290 = vld [vmem:[#allocation2 + $0xef] sm:$0xff]
    %v1291 = vld [vmem:[#allocation2 + $0x107] sm:$0xff]
    %v1292 = vld [vmem:[#allocation2 + $0x10f] sm:$0xff]
    %v1293 = vld [vmem:[#allocation2 + $0x127] sm:$0xff]
    %v1294 = vld [vmem:[#allocation2 + $0x12f] sm:$0xff]
    %v1295 = vld [vmem:[#allocation2 + $0x147] sm:$0xff]
    %v1296 = vld [vmem:[#allocation2 + $0x14f] sm:$0xff]
    %v1297 = vld [vmem:[#allocation2 + $0x167] sm:$0xff]
    %v1298 = vld [vmem:[#allocation2 + $0x16f] sm:$0xff]
    %v1299 = vld [vmem:[#allocation2 + $0x187] sm:$0xff]
    %v1300 = vld [vmem:[#allocation2 + $0x18f] sm:$0xff]
    %v1301 = vld [vmem:[#allocation2 + $0x1a7] sm:$0xff]
    %v1302 = vld [vmem:[#allocation2 + $0x1af] sm:$0xff]
    %v1303 = vld [vmem:[#allocation2 + $0x1c7] sm:$0xff]
    %v1304 = vld [vmem:[#allocation2 + $0x1cf] sm:$0xff]
    %v1305 = vld [vmem:[#allocation2 + $0x1e7] sm:$0xff]
    %v1306 = vld [vmem:[#allocation2 + $0x1ef] sm:$0xff]
    %v1307 = vld [vmem:[#allocation2 + $0x247] sm:$0xff]
    %v1308 = vld [vmem:[#allocation2 + $0x24f] sm:$0xff]
    %v1309 = vld [vmem:[#allocation2 + $0x267] sm:$0xff]
    %v1310 = vld [vmem:[#allocation2 + $0x26f] sm:$0xff]
    %v1311 = vld [vmem:[#allocation2 + $0x287] sm:$0xff]
    %v1312 = vld [vmem:[#allocation2 + $0x28f] sm:$0xff]
    %v1313 = vld [vmem:[#allocation2 + $0x2a7] sm:$0xff]
    %v1314 = vld [vmem:[#allocation2 + $0x2af] sm:$0xff]
    %v1315 = vld [vmem:[#allocation2 + $0x2c7] sm:$0xff]
    %v1316 = vld [vmem:[#allocation2 + $0x2cf] sm:$0xff]
    %v1317 = vld [vmem:[#allocation2 + $0x2e7] sm:$0xff]
    %v1318 = vld [vmem:[#allocation2 + $0x2ef] sm:$0xff]
    %v1319 = vld [vmem:[#allocation2 + $0x307] sm:$0xff]
    %v1320 = vld [vmem:[#allocation2 + $0x30f] sm:$0xff]
    %v1321 = vld [vmem:[#allocation2 + $0x327] sm:$0xff]
    %v1322 = vld [vmem:[#allocation2 + $0x32f] sm:$0xff]
    %v1323 = vld [vmem:[#allocation2 + $0x347] sm:$0xff]
    %v1324 = vld [vmem:[#allocation2 + $0x34f] sm:$0xff]
    %v1325 = vld [vmem:[#allocation2 + $0x367] sm:$0xff]
    %v1326 = vld [vmem:[#allocation2 + $0x36f] sm:$0xff]
    %v1327 = vld [vmem:[#allocation2 + $0x387] sm:$0xff]
    %v1328 = vld [vmem:[#allocation2 + $0x38f] sm:$0xff]
    %v1329 = vld [vmem:[#allocation2 + $0x3a7] sm:$0xff]
    %v1330 = vld [vmem:[#allocation2 + $0x3af] sm:$0xff]
    %v1331 = vld [vmem:[#allocation2 + $0x3c7] sm:$0xff]
    %v1332 = vld [vmem:[#allocation2 + $0x3cf] sm:$0xff]
    %v1333 = vld [vmem:[#allocation2 + $0x3e7] sm:$0xff]
    %v1334 = vld [vmem:[#allocation2 + $0x3ef] sm:$0xff]
    %v1335 = vld [vmem:[#allocation2 + $0x407] sm:$0xff]
    %v1336 = vld [vmem:[#allocation2 + $0x40f] sm:$0xff]
    %v1337 = vld [vmem:[#allocation2 + $0x427] sm:$0xff]
    %v1338 = vld [vmem:[#allocation2 + $0x42f] sm:$0xff]
    %v1339 = vlaneseq
    %v1340 = vshrl.u32 %v1339, 7
    %v1341 = vsub.s32 0, %v1340
    %v1342 = vrot.slane %v1272, %v1341
    %v1343 = vmul.f32 %v1275, %v1342
    %v1344 = vmul.f32 %v1276, %v1342
    %v1345 = vmul.f32 %v1277, %v1342
    %v1346 = vmul.f32 %v1278, %v1342
    %v1347 = vmul.f32 %v1279, %v1342
    %v1348 = vmul.f32 %v1280, %v1342
    %v1349 = vmul.f32 %v1281, %v1342
    %v1350 = vmul.f32 %v1282, %v1342
    %v1351 = vmul.f32 %v1283, %v1342
    %v1352 = vmul.f32 %v1284, %v1342
    %v1353 = vmul.f32 %v1285, %v1342
    %v1354 = vmul.f32 %v1286, %v1342
    %v1355 = vmul.f32 %v1287, %v1342
    %v1356 = vmul.f32 %v1288, %v1342
    %v1357 = vmul.f32 %v1289, %v1342
    %v1358 = vmul.f32 %v1290, %v1342
    %v1359 = vmul.f32 %v1291, %v1342
    %v1360 = vmul.f32 %v1292, %v1342
    %v1361 = vmul.f32 %v1293, %v1342
    %v1362 = vmul.f32 %v1294, %v1342
    %v1363 = vmul.f32 %v1295, %v1342
    %v1364 = vmul.f32 %v1296, %v1342
    %v1365 = vmul.f32 %v1297, %v1342
    %v1366 = vmul.f32 %v1298, %v1342
    %v1367 = vmul.f32 %v1299, %v1342
    %v1368 = vmul.f32 %v1300, %v1342
    %v1369 = vmul.f32 %v1301, %v1342
    %v1370 = vmul.f32 %v1302, %v1342
    %v1371 = vmul.f32 %v1303, %v1342
    %v1372 = vmul.f32 %v1304, %v1342
    %v1373 = vmul.f32 %v1305, %v1342
    %v1374 = vmul.f32 %v1306, %v1342
    %v1375 = vmul.f32 %v1307, %v1342
    %v1376 = vmul.f32 %v1308, %v1342
    %v1377 = vmul.f32 %v1309, %v1342
    %v1378 = vmul.f32 %v1310, %v1342
    %v1379 = vmul.f32 %v1311, %v1342
    %v1380 = vmul.f32 %v1312, %v1342
    %v1381 = vmul.f32 %v1313, %v1342
    %v1382 = vmul.f32 %v1314, %v1342
    %v1383 = vmul.f32 %v1315, %v1342
    %v1384 = vmul.f32 %v1316, %v1342
    %v1385 = vmul.f32 %v1317, %v1342
    %v1386 = vmul.f32 %v1318, %v1342
    %v1387 = vmul.f32 %v1319, %v1342
    %v1388 = vmul.f32 %v1320, %v1342
    %v1389 = vmul.f32 %v1321, %v1342
    %v1390 = vmul.f32 %v1322, %v1342
    %v1391 = vmul.f32 %v1323, %v1342
    %v1392 = vmul.f32 %v1324, %v1342
    %v1393 = vmul.f32 %v1325, %v1342
    %v1394 = vmul.f32 %v1326, %v1342
    %v1395 = vmul.f32 %v1327, %v1342
    %v1396 = vmul.f32 %v1328, %v1342
    %v1397 = vmul.f32 %v1329, %v1342
    %v1398 = vmul.f32 %v1330, %v1342
    %v1399 = vmul.f32 %v1331, %v1342
    %v1400 = vmul.f32 %v1332, %v1342
    %v1401 = vmul.f32 %v1333, %v1342
    %v1402 = vmul.f32 %v1334, %v1342
    %v1403 = vmul.f32 %v1335, %v1342
    %v1404 = vmul.f32 %v1336, %v1342
    %v1405 = vmul.f32 %v1337, %v1342
    %v1406 = vmul.f32 %v1338, %v1342
    %v1407 = vadd.f32 %v1343, 0.0
    %v1408 = vadd.f32 %v1344, 0.0
    %v1409 = vadd.f32 %v1345, 0.0
    %v1410 = vadd.f32 %v1346, 0.0
    %v1411 = vadd.f32 %v1347, 0.0
    %v1412 = vadd.f32 %v1348, 0.0
    %v1413 = vadd.f32 %v1349, 0.0
    %v1414 = vadd.f32 %v1350, 0.0
    %v1415 = vadd.f32 %v1351, 0.0
    %v1416 = vadd.f32 %v1352, 0.0
    %v1417 = vadd.f32 %v1353, 0.0
    %v1418 = vadd.f32 %v1354, 0.0
    %v1419 = vadd.f32 %v1355, 0.0
    %v1420 = vadd.f32 %v1356, 0.0
    %v1421 = vadd.f32 %v1357, 0.0
    %v1422 = vadd.f32 %v1358, 0.0
    %v1423 = vadd.f32 %v1359, 0.0
    %v1424 = vadd.f32 %v1360, 0.0
    %v1425 = vadd.f32 %v1361, 0.0
    %v1426 = vadd.f32 %v1362, 0.0
    %v1427 = vadd.f32 %v1363, 0.0
    %v1428 = vadd.f32 %v1364, 0.0
    %v1429 = vadd.f32 %v1365, 0.0
    %v1430 = vadd.f32 %v1366, 0.0
    %v1431 = vadd.f32 %v1367, 0.0
    %v1432 = vadd.f32 %v1368, 0.0
    %v1433 = vadd.f32 %v1369, 0.0
    %v1434 = vadd.f32 %v1370, 0.0
    %v1435 = vadd.f32 %v1371, 0.0
    %v1436 = vadd.f32 %v1372, 0.0
    %v1437 = vadd.f32 %v1373, 0.0
    %v1438 = vadd.f32 %v1374, 0.0
    %v1439 = vadd.f32 %v1375, 0.0
    %v1440 = vadd.f32 %v1376, 0.0
    %v1441 = vadd.f32 %v1377, 0.0
    %v1442 = vadd.f32 %v1378, 0.0
    %v1443 = vadd.f32 %v1379, 0.0
    %v1444 = vadd.f32 %v1380, 0.0
    %v1445 = vadd.f32 %v1381, 0.0
    %v1446 = vadd.f32 %v1382, 0.0
    %v1447 = vadd.f32 %v1383, 0.0
    %v1448 = vadd.f32 %v1384, 0.0
    %v1449 = vadd.f32 %v1385, 0.0
    %v1450 = vadd.f32 %v1386, 0.0
    %v1451 = vadd.f32 %v1387, 0.0
    %v1452 = vadd.f32 %v1388, 0.0
    %v1453 = vadd.f32 %v1389, 0.0
    %v1454 = vadd.f32 %v1390, 0.0
    %v1455 = vadd.f32 %v1391, 0.0
    %v1456 = vadd.f32 %v1392, 0.0
    %v1457 = vadd.f32 %v1393, 0.0
    %v1458 = vadd.f32 %v1394, 0.0
    %v1459 = vadd.f32 %v1395, 0.0
    %v1460 = vadd.f32 %v1396, 0.0
    %v1461 = vadd.f32 %v1397, 0.0
    %v1462 = vadd.f32 %v1398, 0.0
    %v1463 = vadd.f32 %v1399, 0.0
    %v1464 = vadd.f32 %v1400, 0.0
    %v1465 = vadd.f32 %v1401, 0.0
    %v1466 = vadd.f32 %v1402, 0.0
    %v1467 = vadd.f32 %v1403, 0.0
    %v1468 = vadd.f32 %v1404, 0.0
    %v1469 = vadd.f32 %v1405, 0.0
    %v1470 = vadd.f32 %v1406, 0.0
    %v1471 = vld [vmem:[#allocation2 + $0x8] sm:$0xff]
    %v1472 = vld [vmem:[#allocation2 + $0x10] sm:$0xff]
    %v1473 = vld [vmem:[#allocation2 + $0x28] sm:$0xff]
    %v1474 = vld [vmem:[#allocation2 + $0x30] sm:$0xff]
    %v1475 = vld [vmem:[#allocation2 + $0x48] sm:$0xff]
    %v1476 = vld [vmem:[#allocation2 + $0x50] sm:$0xff]
    %v1477 = vld [vmem:[#allocation2 + $0x68] sm:$0xff]
    %v1478 = vld [vmem:[#allocation2 + $0x70] sm:$0xff]
    %v1479 = vld [vmem:[#allocation2 + $0x88] sm:$0xff]
    %v1480 = vld [vmem:[#allocation2 + $0x90] sm:$0xff]
    %v1481 = vld [vmem:[#allocation2 + $0xa8] sm:$0xff]
    %v1482 = vld [vmem:[#allocation2 + $0xb0] sm:$0xff]
    %v1483 = vld [vmem:[#allocation2 + $0xc8] sm:$0xff]
    %v1484 = vld [vmem:[#allocation2 + $0xd0] sm:$0xff]
    %v1485 = vld [vmem:[#allocation2 + $0xe8] sm:$0xff]
    %v1486 = vld [vmem:[#allocation2 + $0xf0] sm:$0xff]
    %v1487 = vld [vmem:[#allocation2 + $0x108] sm:$0xff]
    %v1488 = vld [vmem:[#allocation2 + $0x110] sm:$0xff]
    %v1489 = vld [vmem:[#allocation2 + $0x128] sm:$0xff]
    %v1490 = vld [vmem:[#allocation2 + $0x130] sm:$0xff]
    %v1491 = vld [vmem:[#allocation2 + $0x148] sm:$0xff]
    %v1492 = vld [vmem:[#allocation2 + $0x150] sm:$0xff]
    %v1493 = vld [vmem:[#allocation2 + $0x168] sm:$0xff]
    %v1494 = vld [vmem:[#allocation2 + $0x170] sm:$0xff]
    %v1495 = vld [vmem:[#allocation2 + $0x188] sm:$0xff]
    %v1496 = vld [vmem:[#allocation2 + $0x190] sm:$0xff]
    %v1497 = vld [vmem:[#allocation2 + $0x1a8] sm:$0xff]
    %v1498 = vld [vmem:[#allocation2 + $0x1b0] sm:$0xff]
    %v1499 = vld [vmem:[#allocation2 + $0x1c8] sm:$0xff]
    %v1500 = vld [vmem:[#allocation2 + $0x1d0] sm:$0xff]
    %v1501 = vld [vmem:[#allocation2 + $0x1e8] sm:$0xff]
    %v1502 = vld [vmem:[#allocation2 + $0x1f0] sm:$0xff]
    %v1503 = vld [vmem:[#allocation2 + $0x248] sm:$0xff]
    %v1504 = vld [vmem:[#allocation2 + $0x250] sm:$0xff]
    %v1505 = vld [vmem:[#allocation2 + $0x268] sm:$0xff]
    %v1506 = vld [vmem:[#allocation2 + $0x270] sm:$0xff]
    %v1507 = vld [vmem:[#allocation2 + $0x288] sm:$0xff]
    %v1508 = vld [vmem:[#allocation2 + $0x290] sm:$0xff]
    %v1509 = vld [vmem:[#allocation2 + $0x2a8] sm:$0xff]
    %v1510 = vld [vmem:[#allocation2 + $0x2b0] sm:$0xff]
    %v1511 = vld [vmem:[#allocation2 + $0x2c8] sm:$0xff]
    %v1512 = vld [vmem:[#allocation2 + $0x2d0] sm:$0xff]
    %v1513 = vld [vmem:[#allocation2 + $0x2e8] sm:$0xff]
    %v1514 = vld [vmem:[#allocation2 + $0x2f0] sm:$0xff]
    %v1515 = vld [vmem:[#allocation2 + $0x308] sm:$0xff]
    %v1516 = vld [vmem:[#allocation2 + $0x310] sm:$0xff]
    %v1517 = vld [vmem:[#allocation2 + $0x328] sm:$0xff]
    %v1518 = vld [vmem:[#allocation2 + $0x330] sm:$0xff]
    %v1519 = vld [vmem:[#allocation2 + $0x348] sm:$0xff]
    %v1520 = vld [vmem:[#allocation2 + $0x350] sm:$0xff]
    %v1521 = vld [vmem:[#allocation2 + $0x368] sm:$0xff]
    %v1522 = vld [vmem:[#allocation2 + $0x370] sm:$0xff]
    %v1523 = vld [vmem:[#allocation2 + $0x388] sm:$0xff]
    %v1524 = vld [vmem:[#allocation2 + $0x390] sm:$0xff]
    %v1525 = vld [vmem:[#allocation2 + $0x3a8] sm:$0xff]
    %v1526 = vld [vmem:[#allocation2 + $0x3b0] sm:$0xff]
    %v1527 = vld [vmem:[#allocation2 + $0x3c8] sm:$0xff]
    %v1528 = vld [vmem:[#allocation2 + $0x3d0] sm:$0xff]
    %v1529 = vld [vmem:[#allocation2 + $0x3e8] sm:$0xff]
    %v1530 = vld [vmem:[#allocation2 + $0x3f0] sm:$0xff]
    %v1531 = vld [vmem:[#allocation2 + $0x408] sm:$0xff]
    %v1532 = vld [vmem:[#allocation2 + $0x410] sm:$0xff]
    %v1533 = vld [vmem:[#allocation2 + $0x428] sm:$0xff]
    %v1534 = vld [vmem:[#allocation2 + $0x430] sm:$0xff]
    %v1535 = vlaneseq
    %v1536 = vshrl.u32 %v1535, 7
    %v1537 = vsub.s32 1, %v1536
    %v1538 = vrot.slane %v1272, %v1537
    %v1539 = vmul.f32 %v1471, %v1538
    %v1540 = vmul.f32 %v1472, %v1538
    %v1541 = vmul.f32 %v1473, %v1538
    %v1542 = vmul.f32 %v1474, %v1538
    %v1543 = vmul.f32 %v1475, %v1538
    %v1544 = vmul.f32 %v1476, %v1538
    %v1545 = vmul.f32 %v1477, %v1538
    %v1546 = vmul.f32 %v1478, %v1538
    %v1547 = vmul.f32 %v1479, %v1538
    %v1548 = vmul.f32 %v1480, %v1538
    %v1549 = vmul.f32 %v1481, %v1538
    %v1550 = vmul.f32 %v1482, %v1538
    %v1551 = vmul.f32 %v1483, %v1538
    %v1552 = vmul.f32 %v1484, %v1538
    %v1553 = vmul.f32 %v1485, %v1538
    %v1554 = vmul.f32 %v1486, %v1538
    %v1555 = vmul.f32 %v1487, %v1538
    %v1556 = vmul.f32 %v1488, %v1538
    %v1557 = vmul.f32 %v1489, %v1538
    %v1558 = vmul.f32 %v1490, %v1538
    %v1559 = vmul.f32 %v1491, %v1538
    %v1560 = vmul.f32 %v1492, %v1538
    %v1561 = vmul.f32 %v1493, %v1538
    %v1562 = vmul.f32 %v1494, %v1538
    %v1563 = vmul.f32 %v1495, %v1538
    %v1564 = vmul.f32 %v1496, %v1538
    %v1565 = vmul.f32 %v1497, %v1538
    %v1566 = vmul.f32 %v1498, %v1538
    %v1567 = vmul.f32 %v1499, %v1538
    %v1568 = vmul.f32 %v1500, %v1538
    %v1569 = vmul.f32 %v1501, %v1538
    %v1570 = vmul.f32 %v1502, %v1538
    %v1571 = vmul.f32 %v1503, %v1538
    %v1572 = vmul.f32 %v1504, %v1538
    %v1573 = vmul.f32 %v1505, %v1538
    %v1574 = vmul.f32 %v1506, %v1538
    %v1575 = vmul.f32 %v1507, %v1538
    %v1576 = vmul.f32 %v1508, %v1538
    %v1577 = vmul.f32 %v1509, %v1538
    %v1578 = vmul.f32 %v1510, %v1538
    %v1579 = vmul.f32 %v1511, %v1538
    %v1580 = vmul.f32 %v1512, %v1538
    %v1581 = vmul.f32 %v1513, %v1538
    %v1582 = vmul.f32 %v1514, %v1538
    %v1583 = vmul.f32 %v1515, %v1538
    %v1584 = vmul.f32 %v1516, %v1538
    %v1585 = vmul.f32 %v1517, %v1538
    %v1586 = vmul.f32 %v1518, %v1538
    %v1587 = vmul.f32 %v1519, %v1538
    %v1588 = vmul.f32 %v1520, %v1538
    %v1589 = vmul.f32 %v1521, %v1538
    %v1590 = vmul.f32 %v1522, %v1538
    %v1591 = vmul.f32 %v1523, %v1538
    %v1592 = vmul.f32 %v1524, %v1538
    %v1593 = vmul.f32 %v1525, %v1538
    %v1594 = vmul.f32 %v1526, %v1538
    %v1595 = vmul.f32 %v1527, %v1538
    %v1596 = vmul.f32 %v1528, %v1538
    %v1597 = vmul.f32 %v1529, %v1538
    %v1598 = vmul.f32 %v1530, %v1538
    %v1599 = vmul.f32 %v1531, %v1538
    %v1600 = vmul.f32 %v1532, %v1538
    %v1601 = vmul.f32 %v1533, %v1538
    %v1602 = vmul.f32 %v1534, %v1538
    %v1603 = vadd.f32 %v1407, %v1539
    %v1604 = vadd.f32 %v1408, %v1540
    %v1605 = vadd.f32 %v1409, %v1541
    %v1606 = vadd.f32 %v1410, %v1542
    %v1607 = vadd.f32 %v1411, %v1543
    %v1608 = vadd.f32 %v1412, %v1544
    %v1609 = vadd.f32 %v1413, %v1545
    %v1610 = vadd.f32 %v1414, %v1546
    %v1611 = vadd.f32 %v1415, %v1547
    %v1612 = vadd.f32 %v1416, %v1548
    %v1613 = vadd.f32 %v1417, %v1549
    %v1614 = vadd.f32 %v1418, %v1550
    %v1615 = vadd.f32 %v1419, %v1551
    %v1616 = vadd.f32 %v1420, %v1552
    %v1617 = vadd.f32 %v1421, %v1553
    %v1618 = vadd.f32 %v1422, %v1554
    %v1619 = vadd.f32 %v1423, %v1555
    %v1620 = vadd.f32 %v1424, %v1556
    %v1621 = vadd.f32 %v1425, %v1557
    %v1622 = vadd.f32 %v1426, %v1558
    %v1623 = vadd.f32 %v1427, %v1559
    %v1624 = vadd.f32 %v1428, %v1560
    %v1625 = vadd.f32 %v1429, %v1561
    %v1626 = vadd.f32 %v1430, %v1562
    %v1627 = vadd.f32 %v1431, %v1563
    %v1628 = vadd.f32 %v1432, %v1564
    %v1629 = vadd.f32 %v1433, %v1565
    %v1630 = vadd.f32 %v1434, %v1566
    %v1631 = vadd.f32 %v1435, %v1567
    %v1632 = vadd.f32 %v1436, %v1568
    %v1633 = vadd.f32 %v1437, %v1569
    %v1634 = vadd.f32 %v1438, %v1570
    %v1635 = vadd.f32 %v1439, %v1571
    %v1636 = vadd.f32 %v1440, %v1572
    %v1637 = vadd.f32 %v1441, %v1573
    %v1638 = vadd.f32 %v1442, %v1574
    %v1639 = vadd.f32 %v1443, %v1575
    %v1640 = vadd.f32 %v1444, %v1576
    %v1641 = vadd.f32 %v1445, %v1577
    %v1642 = vadd.f32 %v1446, %v1578
    %v1643 = vadd.f32 %v1447, %v1579
    %v1644 = vadd.f32 %v1448, %v1580
    %v1645 = vadd.f32 %v1449, %v1581
    %v1646 = vadd.f32 %v1450, %v1582
    %v1647 = vadd.f32 %v1451, %v1583
    %v1648 = vadd.f32 %v1452, %v1584
    %v1649 = vadd.f32 %v1453, %v1585
    %v1650 = vadd.f32 %v1454, %v1586
    %v1651 = vadd.f32 %v1455, %v1587
    %v1652 = vadd.f32 %v1456, %v1588
    %v1653 = vadd.f32 %v1457, %v1589
    %v1654 = vadd.f32 %v1458, %v1590
    %v1655 = vadd.f32 %v1459, %v1591
    %v1656 = vadd.f32 %v1460, %v1592
    %v1657 = vadd.f32 %v1461, %v1593
    %v1658 = vadd.f32 %v1462, %v1594
    %v1659 = vadd.f32 %v1463, %v1595
    %v1660 = vadd.f32 %v1464, %v1596
    %v1661 = vadd.f32 %v1465, %v1597
    %v1662 = vadd.f32 %v1466, %v1598
    %v1663 = vadd.f32 %v1467, %v1599
    %v1664 = vadd.f32 %v1468, %v1600
    %v1665 = vadd.f32 %v1469, %v1601
    %v1666 = vadd.f32 %v1470, %v1602
    %v1667 = vld [vmem:[#allocation2 + $0x9] sm:$0xff]
    %v1668 = vld [vmem:[#allocation2 + $0x11] sm:$0xff]
    %v1669 = vld [vmem:[#allocation2 + $0x29] sm:$0xff]
    %v1670 = vld [vmem:[#allocation2 + $0x31] sm:$0xff]
    %v1671 = vld [vmem:[#allocation2 + $0x49] sm:$0xff]
    %v1672 = vld [vmem:[#allocation2 + $0x51] sm:$0xff]
    %v1673 = vld [vmem:[#allocation2 + $0x69] sm:$0xff]
    %v1674 = vld [vmem:[#allocation2 + $0x71] sm:$0xff]
    %v1675 = vld [vmem:[#allocation2 + $0x89] sm:$0xff]
    %v1676 = vld [vmem:[#allocation2 + $0x91] sm:$0xff]
    %v1677 = vld [vmem:[#allocation2 + $0xa9] sm:$0xff]
    %v1678 = vld [vmem:[#allocation2 + $0xb1] sm:$0xff]
    %v1679 = vld [vmem:[#allocation2 + $0xc9] sm:$0xff]
    %v1680 = vld [vmem:[#allocation2 + $0xd1] sm:$0xff]
    %v1681 = vld [vmem:[#allocation2 + $0xe9] sm:$0xff]
    %v1682 = vld [vmem:[#allocation2 + $0xf1] sm:$0xff]
    %v1683 = vld [vmem:[#allocation2 + $0x109] sm:$0xff]
    %v1684 = vld [vmem:[#allocation2 + $0x111] sm:$0xff]
    %v1685 = vld [vmem:[#allocation2 + $0x129] sm:$0xff]
    %v1686 = vld [vmem:[#allocation2 + $0x131] sm:$0xff]
    %v1687 = vld [vmem:[#allocation2 + $0x149] sm:$0xff]
    %v1688 = vld [vmem:[#allocation2 + $0x151] sm:$0xff]
    %v1689 = vld [vmem:[#allocation2 + $0x169] sm:$0xff]
    %v1690 = vld [vmem:[#allocation2 + $0x171] sm:$0xff]
    %v1691 = vld [vmem:[#allocation2 + $0x189] sm:$0xff]
    %v1692 = vld [vmem:[#allocation2 + $0x191] sm:$0xff]
    %v1693 = vld [vmem:[#allocation2 + $0x1a9] sm:$0xff]
    %v1694 = vld [vmem:[#allocation2 + $0x1b1] sm:$0xff]
    %v1695 = vld [vmem:[#allocation2 + $0x1c9] sm:$0xff]
    %v1696 = vld [vmem:[#allocation2 + $0x1d1] sm:$0xff]
    %v1697 = vld [vmem:[#allocation2 + $0x1e9] sm:$0xff]
    %v1698 = vld [vmem:[#allocation2 + $0x1f1] sm:$0xff]
    %v1699 = vld [vmem:[#allocation2 + $0x249] sm:$0xff]
    %v1700 = vld [vmem:[#allocation2 + $0x251] sm:$0xff]
    %v1701 = vld [vmem:[#allocation2 + $0x269] sm:$0xff]
    %v1702 = vld [vmem:[#allocation2 + $0x271] sm:$0xff]
    %v1703 = vld [vmem:[#allocation2 + $0x289] sm:$0xff]
    %v1704 = vld [vmem:[#allocation2 + $0x291] sm:$0xff]
    %v1705 = vld [vmem:[#allocation2 + $0x2a9] sm:$0xff]
    %v1706 = vld [vmem:[#allocation2 + $0x2b1] sm:$0xff]
    %v1707 = vld [vmem:[#allocation2 + $0x2c9] sm:$0xff]
    %v1708 = vld [vmem:[#allocation2 + $0x2d1] sm:$0xff]
    %v1709 = vld [vmem:[#allocation2 + $0x2e9] sm:$0xff]
    %v1710 = vld [vmem:[#allocation2 + $0x2f1] sm:$0xff]
    %v1711 = vld [vmem:[#allocation2 + $0x309] sm:$0xff]
    %v1712 = vld [vmem:[#allocation2 + $0x311] sm:$0xff]
    %v1713 = vld [vmem:[#allocation2 + $0x329] sm:$0xff]
    %v1714 = vld [vmem:[#allocation2 + $0x331] sm:$0xff]
    %v1715 = vld [vmem:[#allocation2 + $0x349] sm:$0xff]
    %v1716 = vld [vmem:[#allocation2 + $0x351] sm:$0xff]
    %v1717 = vld [vmem:[#allocation2 + $0x369] sm:$0xff]
    %v1718 = vld [vmem:[#allocation2 + $0x371] sm:$0xff]
    %v1719 = vld [vmem:[#allocation2 + $0x389] sm:$0xff]
    %v1720 = vld [vmem:[#allocation2 + $0x391] sm:$0xff]
    %v1721 = vld [vmem:[#allocation2 + $0x3a9] sm:$0xff]
    %v1722 = vld [vmem:[#allocation2 + $0x3b1] sm:$0xff]
    %v1723 = vld [vmem:[#allocation2 + $0x3c9] sm:$0xff]
    %v1724 = vld [vmem:[#allocation2 + $0x3d1] sm:$0xff]
    %v1725 = vld [vmem:[#allocation2 + $0x3e9] sm:$0xff]
    %v1726 = vld [vmem:[#allocation2 + $0x3f1] sm:$0xff]
    %v1727 = vld [vmem:[#allocation2 + $0x409] sm:$0xff]
    %v1728 = vld [vmem:[#allocation2 + $0x411] sm:$0xff]
    %v1729 = vld [vmem:[#allocation2 + $0x429] sm:$0xff]
    %v1730 = vld [vmem:[#allocation2 + $0x431] sm:$0xff]
    %v1731 = vlaneseq
    %v1732 = vshrl.u32 %v1731, 7
    %v1733 = vsub.s32 2, %v1732
    %v1734 = vrot.slane %v1272, %v1733
    %v1735 = vmul.f32 %v1667, %v1734
    %v1736 = vmul.f32 %v1668, %v1734
    %v1737 = vmul.f32 %v1669, %v1734
    %v1738 = vmul.f32 %v1670, %v1734
    %v1739 = vmul.f32 %v1671, %v1734
    %v1740 = vmul.f32 %v1672, %v1734
    %v1741 = vmul.f32 %v1673, %v1734
    %v1742 = vmul.f32 %v1674, %v1734
    %v1743 = vmul.f32 %v1675, %v1734
    %v1744 = vmul.f32 %v1676, %v1734
    %v1745 = vmul.f32 %v1677, %v1734
    %v1746 = vmul.f32 %v1678, %v1734
    %v1747 = vmul.f32 %v1679, %v1734
    %v1748 = vmul.f32 %v1680, %v1734
    %v1749 = vmul.f32 %v1681, %v1734
    %v1750 = vmul.f32 %v1682, %v1734
    %v1751 = vmul.f32 %v1683, %v1734
    %v1752 = vmul.f32 %v1684, %v1734
    %v1753 = vmul.f32 %v1685, %v1734
    %v1754 = vmul.f32 %v1686, %v1734
    %v1755 = vmul.f32 %v1687, %v1734
    %v1756 = vmul.f32 %v1688, %v1734
    %v1757 = vmul.f32 %v1689, %v1734
    %v1758 = vmul.f32 %v1690, %v1734
    %v1759 = vmul.f32 %v1691, %v1734
    %v1760 = vmul.f32 %v1692, %v1734
    %v1761 = vmul.f32 %v1693, %v1734
    %v1762 = vmul.f32 %v1694, %v1734
    %v1763 = vmul.f32 %v1695, %v1734
    %v1764 = vmul.f32 %v1696, %v1734
    %v1765 = vmul.f32 %v1697, %v1734
    %v1766 = vmul.f32 %v1698, %v1734
    %v1767 = vmul.f32 %v1699, %v1734
    %v1768 = vmul.f32 %v1700, %v1734
    %v1769 = vmul.f32 %v1701, %v1734
    %v1770 = vmul.f32 %v1702, %v1734
    %v1771 = vmul.f32 %v1703, %v1734
    %v1772 = vmul.f32 %v1704, %v1734
    %v1773 = vmul.f32 %v1705, %v1734
    %v1774 = vmul.f32 %v1706, %v1734
    %v1775 = vmul.f32 %v1707, %v1734
    %v1776 = vmul.f32 %v1708, %v1734
    %v1777 = vmul.f32 %v1709, %v1734
    %v1778 = vmul.f32 %v1710, %v1734
    %v1779 = vmul.f32 %v1711, %v1734
    %v1780 = vmul.f32 %v1712, %v1734
    %v1781 = vmul.f32 %v1713, %v1734
    %v1782 = vmul.f32 %v1714, %v1734
    %v1783 = vmul.f32 %v1715, %v1734
    %v1784 = vmul.f32 %v1716, %v1734
    %v1785 = vmul.f32 %v1717, %v1734
    %v1786 = vmul.f32 %v1718, %v1734
    %v1787 = vmul.f32 %v1719, %v1734
    %v1788 = vmul.f32 %v1720, %v1734
    %v1789 = vmul.f32 %v1721, %v1734
    %v1790 = vmul.f32 %v1722, %v1734
    %v1791 = vmul.f32 %v1723, %v1734
    %v1792 = vmul.f32 %v1724, %v1734
    %v1793 = vmul.f32 %v1725, %v1734
    %v1794 = vmul.f32 %v1726, %v1734
    %v1795 = vmul.f32 %v1727, %v1734
    %v1796 = vmul.f32 %v1728, %v1734
    %v1797 = vmul.f32 %v1729, %v1734
    %v1798 = vmul.f32 %v1730, %v1734
    %v1799 = vadd.f32 %v1603, %v1735
    %v1800 = vadd.f32 %v1604, %v1736
    %v1801 = vadd.f32 %v1605, %v1737
    %v1802 = vadd.f32 %v1606, %v1738
    %v1803 = vadd.f32 %v1607, %v1739
    %v1804 = vadd.f32 %v1608, %v1740
    %v1805 = vadd.f32 %v1609, %v1741
    %v1806 = vadd.f32 %v1610, %v1742
    %v1807 = vadd.f32 %v1611, %v1743
    %v1808 = vadd.f32 %v1612, %v1744
    %v1809 = vadd.f32 %v1613, %v1745
    %v1810 = vadd.f32 %v1614, %v1746
    %v1811 = vadd.f32 %v1615, %v1747
    %v1812 = vadd.f32 %v1616, %v1748
    %v1813 = vadd.f32 %v1617, %v1749
    %v1814 = vadd.f32 %v1618, %v1750
    %v1815 = vadd.f32 %v1619, %v1751
    %v1816 = vadd.f32 %v1620, %v1752
    %v1817 = vadd.f32 %v1621, %v1753
    %v1818 = vadd.f32 %v1622, %v1754
    %v1819 = vadd.f32 %v1623, %v1755
    %v1820 = vadd.f32 %v1624, %v1756
    %v1821 = vadd.f32 %v1625, %v1757
    %v1822 = vadd.f32 %v1626, %v1758
    %v1823 = vadd.f32 %v1627, %v1759
    %v1824 = vadd.f32 %v1628, %v1760
    %v1825 = vadd.f32 %v1629, %v1761
    %v1826 = vadd.f32 %v1630, %v1762
    %v1827 = vadd.f32 %v1631, %v1763
    %v1828 = vadd.f32 %v1632, %v1764
    %v1829 = vadd.f32 %v1633, %v1765
    %v1830 = vadd.f32 %v1634, %v1766
    %v1831 = vadd.f32 %v1635, %v1767
    %v1832 = vadd.f32 %v1636, %v1768
    %v1833 = vadd.f32 %v1637, %v1769
    %v1834 = vadd.f32 %v1638, %v1770
    %v1835 = vadd.f32 %v1639, %v1771
    %v1836 = vadd.f32 %v1640, %v1772
    %v1837 = vadd.f32 %v1641, %v1773
    %v1838 = vadd.f32 %v1642, %v1774
    %v1839 = vadd.f32 %v1643, %v1775
    %v1840 = vadd.f32 %v1644, %v1776
    %v1841 = vadd.f32 %v1645, %v1777
    %v1842 = vadd.f32 %v1646, %v1778
    %v1843 = vadd.f32 %v1647, %v1779
    %v1844 = vadd.f32 %v1648, %v1780
    %v1845 = vadd.f32 %v1649, %v1781
    %v1846 = vadd.f32 %v1650, %v1782
    %v1847 = vadd.f32 %v1651, %v1783
    %v1848 = vadd.f32 %v1652, %v1784
    %v1849 = vadd.f32 %v1653, %v1785
    %v1850 = vadd.f32 %v1654, %v1786
    %v1851 = vadd.f32 %v1655, %v1787
    %v1852 = vadd.f32 %v1656, %v1788
    %v1853 = vadd.f32 %v1657, %v1789
    %v1854 = vadd.f32 %v1658, %v1790
    %v1855 = vadd.f32 %v1659, %v1791
    %v1856 = vadd.f32 %v1660, %v1792
    %v1857 = vadd.f32 %v1661, %v1793
    %v1858 = vadd.f32 %v1662, %v1794
    %v1859 = vadd.f32 %v1663, %v1795
    %v1860 = vadd.f32 %v1664, %v1796
    %v1861 = vadd.f32 %v1665, %v1797
    %v1862 = vadd.f32 %v1666, %v1798
    %v1863 = vld [vmem:[%s1207 + $0x7] sm:$0xff]
    %v1864 = vld [vmem:[%s1207 + $0xf] sm:$0xff]
    %v1865 = vld [vmem:[%s1207 + $0x27] sm:$0xff]
    %v1866 = vld [vmem:[%s1207 + $0x2f] sm:$0xff]
    %v1867 = vld [vmem:[%s1207 + $0x47] sm:$0xff]
    %v1868 = vld [vmem:[%s1207 + $0x4f] sm:$0xff]
    %v1869 = vld [vmem:[%s1207 + $0x67] sm:$0xff]
    %v1870 = vld [vmem:[%s1207 + $0x6f] sm:$0xff]
    %v1871 = vld [vmem:[%s1207 + $0x87] sm:$0xff]
    %v1872 = vld [vmem:[%s1207 + $0x8f] sm:$0xff]
    %v1873 = vld [vmem:[%s1207 + $0xa7] sm:$0xff]
    %v1874 = vld [vmem:[%s1207 + $0xaf] sm:$0xff]
    %v1875 = vld [vmem:[%s1207 + $0xc7] sm:$0xff]
    %v1876 = vld [vmem:[%s1207 + $0xcf] sm:$0xff]
    %v1877 = vld [vmem:[%s1207 + $0xe7] sm:$0xff]
    %v1878 = vld [vmem:[%s1207 + $0xef] sm:$0xff]
    %v1879 = vld [vmem:[%s1207 + $0x107] sm:$0xff]
    %v1880 = vld [vmem:[%s1207 + $0x10f] sm:$0xff]
    %v1881 = vld [vmem:[%s1207 + $0x127] sm:$0xff]
    %v1882 = vld [vmem:[%s1207 + $0x12f] sm:$0xff]
    %v1883 = vld [vmem:[%s1207 + $0x147] sm:$0xff]
    %v1884 = vld [vmem:[%s1207 + $0x14f] sm:$0xff]
    %v1885 = vld [vmem:[%s1207 + $0x167] sm:$0xff]
    %v1886 = vld [vmem:[%s1207 + $0x16f] sm:$0xff]
    %v1887 = vld [vmem:[%s1207 + $0x187] sm:$0xff]
    %v1888 = vld [vmem:[%s1207 + $0x18f] sm:$0xff]
    %v1889 = vld [vmem:[%s1207 + $0x1a7] sm:$0xff]
    %v1890 = vld [vmem:[%s1207 + $0x1af] sm:$0xff]
    %v1891 = vld [vmem:[%s1207 + $0x1c7] sm:$0xff]
    %v1892 = vld [vmem:[%s1207 + $0x1cf] sm:$0xff]
    %v1893 = vld [vmem:[%s1207 + $0x1e7] sm:$0xff]
    %v1894 = vld [vmem:[%s1207 + $0x1ef] sm:$0xff]
    %v1895 = vld [vmem:[%s1207 + $0x247] sm:$0xff]
    %v1896 = vld [vmem:[%s1207 + $0x24f] sm:$0xff]
    %v1897 = vld [vmem:[%s1207 + $0x267] sm:$0xff]
    %v1898 = vld [vmem:[%s1207 + $0x26f] sm:$0xff]
    %v1899 = vld [vmem:[%s1207 + $0x287] sm:$0xff]
    %v1900 = vld [vmem:[%s1207 + $0x28f] sm:$0xff]
    %v1901 = vld [vmem:[%s1207 + $0x2a7] sm:$0xff]
    %v1902 = vld [vmem:[%s1207 + $0x2af] sm:$0xff]
    %v1903 = vld [vmem:[%s1207 + $0x2c7] sm:$0xff]
    %v1904 = vld [vmem:[%s1207 + $0x2cf] sm:$0xff]
    %v1905 = vld [vmem:[%s1207 + $0x2e7] sm:$0xff]
    %v1906 = vld [vmem:[%s1207 + $0x2ef] sm:$0xff]
    %v1907 = vld [vmem:[%s1207 + $0x307] sm:$0xff]
    %v1908 = vld [vmem:[%s1207 + $0x30f] sm:$0xff]
    %v1909 = vld [vmem:[%s1207 + $0x327] sm:$0xff]
    %v1910 = vld [vmem:[%s1207 + $0x32f] sm:$0xff]
    %v1911 = vld [vmem:[%s1207 + $0x347] sm:$0xff]
    %v1912 = vld [vmem:[%s1207 + $0x34f] sm:$0xff]
    %v1913 = vld [vmem:[%s1207 + $0x367] sm:$0xff]
    %v1914 = vld [vmem:[%s1207 + $0x36f] sm:$0xff]
    %v1915 = vld [vmem:[%s1207 + $0x387] sm:$0xff]
    %v1916 = vld [vmem:[%s1207 + $0x38f] sm:$0xff]
    %v1917 = vld [vmem:[%s1207 + $0x3a7] sm:$0xff]
    %v1918 = vld [vmem:[%s1207 + $0x3af] sm:$0xff]
    %v1919 = vld [vmem:[%s1207 + $0x3c7] sm:$0xff]
    %v1920 = vld [vmem:[%s1207 + $0x3cf] sm:$0xff]
    %v1921 = vld [vmem:[%s1207 + $0x3e7] sm:$0xff]
    %v1922 = vld [vmem:[%s1207 + $0x3ef] sm:$0xff]
    %v1923 = vld [vmem:[%s1207 + $0x407] sm:$0xff]
    %v1924 = vld [vmem:[%s1207 + $0x40f] sm:$0xff]
    %v1925 = vld [vmem:[%s1207 + $0x427] sm:$0xff]
    %v1926 = vld [vmem:[%s1207 + $0x42f] sm:$0xff]
    %v1927 = vlaneseq
    %v1928 = vshrl.u32 %v1927, 7
    %v1929 = vsub.s32 0, %v1928
    %v1930 = vrot.slane %v1273, %v1929
    %v1931 = vmul.f32 %v1863, %v1930
    %v1932 = vmul.f32 %v1864, %v1930
    %v1933 = vmul.f32 %v1865, %v1930
    %v1934 = vmul.f32 %v1866, %v1930
    %v1935 = vmul.f32 %v1867, %v1930
    %v1936 = vmul.f32 %v1868, %v1930
    %v1937 = vmul.f32 %v1869, %v1930
    %v1938 = vmul.f32 %v1870, %v1930
    %v1939 = vmul.f32 %v1871, %v1930
    %v1940 = vmul.f32 %v1872, %v1930
    %v1941 = vmul.f32 %v1873, %v1930
    %v1942 = vmul.f32 %v1874, %v1930
    %v1943 = vmul.f32 %v1875, %v1930
    %v1944 = vmul.f32 %v1876, %v1930
    %v1945 = vmul.f32 %v1877, %v1930
    %v1946 = vmul.f32 %v1878, %v1930
    %v1947 = vmul.f32 %v1879, %v1930
    %v1948 = vmul.f32 %v1880, %v1930
    %v1949 = vmul.f32 %v1881, %v1930
    %v1950 = vmul.f32 %v1882, %v1930
    %v1951 = vmul.f32 %v1883, %v1930
    %v1952 = vmul.f32 %v1884, %v1930
    %v1953 = vmul.f32 %v1885, %v1930
    %v1954 = vmul.f32 %v1886, %v1930
    %v1955 = vmul.f32 %v1887, %v1930
    %v1956 = vmul.f32 %v1888, %v1930
    %v1957 = vmul.f32 %v1889, %v1930
    %v1958 = vmul.f32 %v1890, %v1930
    %v1959 = vmul.f32 %v1891, %v1930
    %v1960 = vmul.f32 %v1892, %v1930
    %v1961 = vmul.f32 %v1893, %v1930
    %v1962 = vmul.f32 %v1894, %v1930
    %v1963 = vmul.f32 %v1895, %v1930
    %v1964 = vmul.f32 %v1896, %v1930
    %v1965 = vmul.f32 %v1897, %v1930
    %v1966 = vmul.f32 %v1898, %v1930
    %v1967 = vmul.f32 %v1899, %v1930
    %v1968 = vmul.f32 %v1900, %v1930
    %v1969 = vmul.f32 %v1901, %v1930
    %v1970 = vmul.f32 %v1902, %v1930
    %v1971 = vmul.f32 %v1903, %v1930
    %v1972 = vmul.f32 %v1904, %v1930
    %v1973 = vmul.f32 %v1905, %v1930
    %v1974 = vmul.f32 %v1906, %v1930
    %v1975 = vmul.f32 %v1907, %v1930
    %v1976 = vmul.f32 %v1908, %v1930
    %v1977 = vmul.f32 %v1909, %v1930
    %v1978 = vmul.f32 %v1910, %v1930
    %v1979 = vmul.f32 %v1911, %v1930
    %v1980 = vmul.f32 %v1912, %v1930
    %v1981 = vmul.f32 %v1913, %v1930
    %v1982 = vmul.f32 %v1914, %v1930
    %v1983 = vmul.f32 %v1915, %v1930
    %v1984 = vmul.f32 %v1916, %v1930
    %v1985 = vmul.f32 %v1917, %v1930
    %v1986 = vmul.f32 %v1918, %v1930
    %v1987 = vmul.f32 %v1919, %v1930
    %v1988 = vmul.f32 %v1920, %v1930
    %v1989 = vmul.f32 %v1921, %v1930
    %v1990 = vmul.f32 %v1922, %v1930
    %v1991 = vmul.f32 %v1923, %v1930
    %v1992 = vmul.f32 %v1924, %v1930
    %v1993 = vmul.f32 %v1925, %v1930
    %v1994 = vmul.f32 %v1926, %v1930
    %v1995 = vadd.f32 %v1799, %v1931
    %v1996 = vadd.f32 %v1800, %v1932
    %v1997 = vadd.f32 %v1801, %v1933
    %v1998 = vadd.f32 %v1802, %v1934
    %v1999 = vadd.f32 %v1803, %v1935
    %v2000 = vadd.f32 %v1804, %v1936
    %v2001 = vadd.f32 %v1805, %v1937
    %v2002 = vadd.f32 %v1806, %v1938
    %v2003 = vadd.f32 %v1807, %v1939
    %v2004 = vadd.f32 %v1808, %v1940
    %v2005 = vadd.f32 %v1809, %v1941
    %v2006 = vadd.f32 %v1810, %v1942
    %v2007 = vadd.f32 %v1811, %v1943
    %v2008 = vadd.f32 %v1812, %v1944
    %v2009 = vadd.f32 %v1813, %v1945
    %v2010 = vadd.f32 %v1814, %v1946
    %v2011 = vadd.f32 %v1815, %v1947
    %v2012 = vadd.f32 %v1816, %v1948
    %v2013 = vadd.f32 %v1817, %v1949
    %v2014 = vadd.f32 %v1818, %v1950
    %v2015 = vadd.f32 %v1819, %v1951
    %v2016 = vadd.f32 %v1820, %v1952
    %v2017 = vadd.f32 %v1821, %v1953
    %v2018 = vadd.f32 %v1822, %v1954
    %v2019 = vadd.f32 %v1823, %v1955
    %v2020 = vadd.f32 %v1824, %v1956
    %v2021 = vadd.f32 %v1825, %v1957
    %v2022 = vadd.f32 %v1826, %v1958
    %v2023 = vadd.f32 %v1827, %v1959
    %v2024 = vadd.f32 %v1828, %v1960
    %v2025 = vadd.f32 %v1829, %v1961
    %v2026 = vadd.f32 %v1830, %v1962
    %v2027 = vadd.f32 %v1831, %v1963
    %v2028 = vadd.f32 %v1832, %v1964
    %v2029 = vadd.f32 %v1833, %v1965
    %v2030 = vadd.f32 %v1834, %v1966
    %v2031 = vadd.f32 %v1835, %v1967
    %v2032 = vadd.f32 %v1836, %v1968
    %v2033 = vadd.f32 %v1837, %v1969
    %v2034 = vadd.f32 %v1838, %v1970
    %v2035 = vadd.f32 %v1839, %v1971
    %v2036 = vadd.f32 %v1840, %v1972
    %v2037 = vadd.f32 %v1841, %v1973
    %v2038 = vadd.f32 %v1842, %v1974
    %v2039 = vadd.f32 %v1843, %v1975
    %v2040 = vadd.f32 %v1844, %v1976
    %v2041 = vadd.f32 %v1845, %v1977
    %v2042 = vadd.f32 %v1846, %v1978
    %v2043 = vadd.f32 %v1847, %v1979
    %v2044 = vadd.f32 %v1848, %v1980
    %v2045 = vadd.f32 %v1849, %v1981
    %v2046 = vadd.f32 %v1850, %v1982
    %v2047 = vadd.f32 %v1851, %v1983
    %v2048 = vadd.f32 %v1852, %v1984
    %v2049 = vadd.f32 %v1853, %v1985
    %v2050 = vadd.f32 %v1854, %v1986
    %v2051 = vadd.f32 %v1855, %v1987
    %v2052 = vadd.f32 %v1856, %v1988
    %v2053 = vadd.f32 %v1857, %v1989
    %v2054 = vadd.f32 %v1858, %v1990
    %v2055 = vadd.f32 %v1859, %v1991
    %v2056 = vadd.f32 %v1860, %v1992
    %v2057 = vadd.f32 %v1861, %v1993
    %v2058 = vadd.f32 %v1862, %v1994
    %v2059 = vld [vmem:[%s1207 + $0x8] sm:$0xff]
    %v2060 = vld [vmem:[%s1207 + $0x10] sm:$0xff]
    %v2061 = vld [vmem:[%s1207 + $0x28] sm:$0xff]
    %v2062 = vld [vmem:[%s1207 + $0x30] sm:$0xff]
    %v2063 = vld [vmem:[%s1207 + $0x48] sm:$0xff]
    %v2064 = vld [vmem:[%s1207 + $0x50] sm:$0xff]
    %v2065 = vld [vmem:[%s1207 + $0x68] sm:$0xff]
    %v2066 = vld [vmem:[%s1207 + $0x70] sm:$0xff]
    %v2067 = vld [vmem:[%s1207 + $0x88] sm:$0xff]
    %v2068 = vld [vmem:[%s1207 + $0x90] sm:$0xff]
    %v2069 = vld [vmem:[%s1207 + $0xa8] sm:$0xff]
    %v2070 = vld [vmem:[%s1207 + $0xb0] sm:$0xff]
    %v2071 = vld [vmem:[%s1207 + $0xc8] sm:$0xff]
    %v2072 = vld [vmem:[%s1207 + $0xd0] sm:$0xff]
    %v2073 = vld [vmem:[%s1207 + $0xe8] sm:$0xff]
    %v2074 = vld [vmem:[%s1207 + $0xf0] sm:$0xff]
    %v2075 = vld [vmem:[%s1207 + $0x108] sm:$0xff]
    %v2076 = vld [vmem:[%s1207 + $0x110] sm:$0xff]
    %v2077 = vld [vmem:[%s1207 + $0x128] sm:$0xff]
    %v2078 = vld [vmem:[%s1207 + $0x130] sm:$0xff]
    %v2079 = vld [vmem:[%s1207 + $0x148] sm:$0xff]
    %v2080 = vld [vmem:[%s1207 + $0x150] sm:$0xff]
    %v2081 = vld [vmem:[%s1207 + $0x168] sm:$0xff]
    %v2082 = vld [vmem:[%s1207 + $0x170] sm:$0xff]
    %v2083 = vld [vmem:[%s1207 + $0x188] sm:$0xff]
    %v2084 = vld [vmem:[%s1207 + $0x190] sm:$0xff]
    %v2085 = vld [vmem:[%s1207 + $0x1a8] sm:$0xff]
    %v2086 = vld [vmem:[%s1207 + $0x1b0] sm:$0xff]
    %v2087 = vld [vmem:[%s1207 + $0x1c8] sm:$0xff]
    %v2088 = vld [vmem:[%s1207 + $0x1d0] sm:$0xff]
    %v2089 = vld [vmem:[%s1207 + $0x1e8] sm:$0xff]
    %v2090 = vld [vmem:[%s1207 + $0x1f0] sm:$0xff]
    %v2091 = vld [vmem:[%s1207 + $0x248] sm:$0xff]
    %v2092 = vld [vmem:[%s1207 + $0x250] sm:$0xff]
    %v2093 = vld [vmem:[%s1207 + $0x268] sm:$0xff]
    %v2094 = vld [vmem:[%s1207 + $0x270] sm:$0xff]
    %v2095 = vld [vmem:[%s1207 + $0x288] sm:$0xff]
    %v2096 = vld [vmem:[%s1207 + $0x290] sm:$0xff]
    %v2097 = vld [vmem:[%s1207 + $0x2a8] sm:$0xff]
    %v2098 = vld [vmem:[%s1207 + $0x2b0] sm:$0xff]
    %v2099 = vld [vmem:[%s1207 + $0x2c8] sm:$0xff]
    %v2100 = vld [vmem:[%s1207 + $0x2d0] sm:$0xff]
    %v2101 = vld [vmem:[%s1207 + $0x2e8] sm:$0xff]
    %v2102 = vld [vmem:[%s1207 + $0x2f0] sm:$0xff]
    %v2103 = vld [vmem:[%s1207 + $0x308] sm:$0xff]
    %v2104 = vld [vmem:[%s1207 + $0x310] sm:$0xff]
    %v2105 = vld [vmem:[%s1207 + $0x328] sm:$0xff]
    %v2106 = vld [vmem:[%s1207 + $0x330] sm:$0xff]
    %v2107 = vld [vmem:[%s1207 + $0x348] sm:$0xff]
    %v2108 = vld [vmem:[%s1207 + $0x350] sm:$0xff]
    %v2109 = vld [vmem:[%s1207 + $0x368] sm:$0xff]
    %v2110 = vld [vmem:[%s1207 + $0x370] sm:$0xff]
    %v2111 = vld [vmem:[%s1207 + $0x388] sm:$0xff]
    %v2112 = vld [vmem:[%s1207 + $0x390] sm:$0xff]
    %v2113 = vld [vmem:[%s1207 + $0x3a8] sm:$0xff]
    %v2114 = vld [vmem:[%s1207 + $0x3b0] sm:$0xff]
    %v2115 = vld [vmem:[%s1207 + $0x3c8] sm:$0xff]
    %v2116 = vld [vmem:[%s1207 + $0x3d0] sm:$0xff]
    %v2117 = vld [vmem:[%s1207 + $0x3e8] sm:$0xff]
    %v2118 = vld [vmem:[%s1207 + $0x3f0] sm:$0xff]
    %v2119 = vld [vmem:[%s1207 + $0x408] sm:$0xff]
    %v2120 = vld [vmem:[%s1207 + $0x410] sm:$0xff]
    %v2121 = vld [vmem:[%s1207 + $0x428] sm:$0xff]
    %v2122 = vld [vmem:[%s1207 + $0x430] sm:$0xff]
    %v2123 = vlaneseq
    %v2124 = vshrl.u32 %v2123, 7
    %v2125 = vsub.s32 1, %v2124
    %v2126 = vrot.slane %v1273, %v2125
    %v2127 = vmul.f32 %v2059, %v2126
    %v2128 = vmul.f32 %v2060, %v2126
    %v2129 = vmul.f32 %v2061, %v2126
    %v2130 = vmul.f32 %v2062, %v2126
    %v2131 = vmul.f32 %v2063, %v2126
    %v2132 = vmul.f32 %v2064, %v2126
    %v2133 = vmul.f32 %v2065, %v2126
    %v2134 = vmul.f32 %v2066, %v2126
    %v2135 = vmul.f32 %v2067, %v2126
    %v2136 = vmul.f32 %v2068, %v2126
    %v2137 = vmul.f32 %v2069, %v2126
    %v2138 = vmul.f32 %v2070, %v2126
    %v2139 = vmul.f32 %v2071, %v2126
    %v2140 = vmul.f32 %v2072, %v2126
    %v2141 = vmul.f32 %v2073, %v2126
    %v2142 = vmul.f32 %v2074, %v2126
    %v2143 = vmul.f32 %v2075, %v2126
    %v2144 = vmul.f32 %v2076, %v2126
    %v2145 = vmul.f32 %v2077, %v2126
    %v2146 = vmul.f32 %v2078, %v2126
    %v2147 = vmul.f32 %v2079, %v2126
    %v2148 = vmul.f32 %v2080, %v2126
    %v2149 = vmul.f32 %v2081, %v2126
    %v2150 = vmul.f32 %v2082, %v2126
    %v2151 = vmul.f32 %v2083, %v2126
    %v2152 = vmul.f32 %v2084, %v2126
    %v2153 = vmul.f32 %v2085, %v2126
    %v2154 = vmul.f32 %v2086, %v2126
    %v2155 = vmul.f32 %v2087, %v2126
    %v2156 = vmul.f32 %v2088, %v2126
    %v2157 = vmul.f32 %v2089, %v2126
    %v2158 = vmul.f32 %v2090, %v2126
    %v2159 = vmul.f32 %v2091, %v2126
    %v2160 = vmul.f32 %v2092, %v2126
    %v2161 = vmul.f32 %v2093, %v2126
    %v2162 = vmul.f32 %v2094, %v2126
    %v2163 = vmul.f32 %v2095, %v2126
    %v2164 = vmul.f32 %v2096, %v2126
    %v2165 = vmul.f32 %v2097, %v2126
    %v2166 = vmul.f32 %v2098, %v2126
    %v2167 = vmul.f32 %v2099, %v2126
    %v2168 = vmul.f32 %v2100, %v2126
    %v2169 = vmul.f32 %v2101, %v2126
    %v2170 = vmul.f32 %v2102, %v2126
    %v2171 = vmul.f32 %v2103, %v2126
    %v2172 = vmul.f32 %v2104, %v2126
    %v2173 = vmul.f32 %v2105, %v2126
    %v2174 = vmul.f32 %v2106, %v2126
    %v2175 = vmul.f32 %v2107, %v2126
    %v2176 = vmul.f32 %v2108, %v2126
    %v2177 = vmul.f32 %v2109, %v2126
    %v2178 = vmul.f32 %v2110, %v2126
    %v2179 = vmul.f32 %v2111, %v2126
    %v2180 = vmul.f32 %v2112, %v2126
    %v2181 = vmul.f32 %v2113, %v2126
    %v2182 = vmul.f32 %v2114, %v2126
    %v2183 = vmul.f32 %v2115, %v2126
    %v2184 = vmul.f32 %v2116, %v2126
    %v2185 = vmul.f32 %v2117, %v2126
    %v2186 = vmul.f32 %v2118, %v2126
    %v2187 = vmul.f32 %v2119, %v2126
    %v2188 = vmul.f32 %v2120, %v2126
    %v2189 = vmul.f32 %v2121, %v2126
    %v2190 = vmul.f32 %v2122, %v2126
    %v2191 = vadd.f32 %v1995, %v2127
    %v2192 = vadd.f32 %v1996, %v2128
    %v2193 = vadd.f32 %v1997, %v2129
    %v2194 = vadd.f32 %v1998, %v2130
    %v2195 = vadd.f32 %v1999, %v2131
    %v2196 = vadd.f32 %v2000, %v2132
    %v2197 = vadd.f32 %v2001, %v2133
    %v2198 = vadd.f32 %v2002, %v2134
    %v2199 = vadd.f32 %v2003, %v2135
    %v2200 = vadd.f32 %v2004, %v2136
    %v2201 = vadd.f32 %v2005, %v2137
    %v2202 = vadd.f32 %v2006, %v2138
    %v2203 = vadd.f32 %v2007, %v2139
    %v2204 = vadd.f32 %v2008, %v2140
    %v2205 = vadd.f32 %v2009, %v2141
    %v2206 = vadd.f32 %v2010, %v2142
    %v2207 = vadd.f32 %v2011, %v2143
    %v2208 = vadd.f32 %v2012, %v2144
    %v2209 = vadd.f32 %v2013, %v2145
    %v2210 = vadd.f32 %v2014, %v2146
    %v2211 = vadd.f32 %v2015, %v2147
    %v2212 = vadd.f32 %v2016, %v2148
    %v2213 = vadd.f32 %v2017, %v2149
    %v2214 = vadd.f32 %v2018, %v2150
    %v2215 = vadd.f32 %v2019, %v2151
    %v2216 = vadd.f32 %v2020, %v2152
    %v2217 = vadd.f32 %v2021, %v2153
    %v2218 = vadd.f32 %v2022, %v2154
    %v2219 = vadd.f32 %v2023, %v2155
    %v2220 = vadd.f32 %v2024, %v2156
    %v2221 = vadd.f32 %v2025, %v2157
    %v2222 = vadd.f32 %v2026, %v2158
    %v2223 = vadd.f32 %v2027, %v2159
    %v2224 = vadd.f32 %v2028, %v2160
    %v2225 = vadd.f32 %v2029, %v2161
    %v2226 = vadd.f32 %v2030, %v2162
    %v2227 = vadd.f32 %v2031, %v2163
    %v2228 = vadd.f32 %v2032, %v2164
    %v2229 = vadd.f32 %v2033, %v2165
    %v2230 = vadd.f32 %v2034, %v2166
    %v2231 = vadd.f32 %v2035, %v2167
    %v2232 = vadd.f32 %v2036, %v2168
    %v2233 = vadd.f32 %v2037, %v2169
    %v2234 = vadd.f32 %v2038, %v2170
    %v2235 = vadd.f32 %v2039, %v2171
    %v2236 = vadd.f32 %v2040, %v2172
    %v2237 = vadd.f32 %v2041, %v2173
    %v2238 = vadd.f32 %v2042, %v2174
    %v2239 = vadd.f32 %v2043, %v2175
    %v2240 = vadd.f32 %v2044, %v2176
    %v2241 = vadd.f32 %v2045, %v2177
    %v2242 = vadd.f32 %v2046, %v2178
    %v2243 = vadd.f32 %v2047, %v2179
    %v2244 = vadd.f32 %v2048, %v2180
    %v2245 = vadd.f32 %v2049, %v2181
    %v2246 = vadd.f32 %v2050, %v2182
    %v2247 = vadd.f32 %v2051, %v2183
    %v2248 = vadd.f32 %v2052, %v2184
    %v2249 = vadd.f32 %v2053, %v2185
    %v2250 = vadd.f32 %v2054, %v2186
    %v2251 = vadd.f32 %v2055, %v2187
    %v2252 = vadd.f32 %v2056, %v2188
    %v2253 = vadd.f32 %v2057, %v2189
    %v2254 = vadd.f32 %v2058, %v2190
    %v2255 = vld [vmem:[%s1207 + $0x9] sm:$0xff]
    %v2256 = vld [vmem:[%s1207 + $0x11] sm:$0xff]
    %v2257 = vld [vmem:[%s1207 + $0x29] sm:$0xff]
    %v2258 = vld [vmem:[%s1207 + $0x31] sm:$0xff]
    %v2259 = vld [vmem:[%s1207 + $0x49] sm:$0xff]
    %v2260 = vld [vmem:[%s1207 + $0x51] sm:$0xff]
    %v2261 = vld [vmem:[%s1207 + $0x69] sm:$0xff]
    %v2262 = vld [vmem:[%s1207 + $0x71] sm:$0xff]
    %v2263 = vld [vmem:[%s1207 + $0x89] sm:$0xff]
    %v2264 = vld [vmem:[%s1207 + $0x91] sm:$0xff]
    %v2265 = vld [vmem:[%s1207 + $0xa9] sm:$0xff]
    %v2266 = vld [vmem:[%s1207 + $0xb1] sm:$0xff]
    %v2267 = vld [vmem:[%s1207 + $0xc9] sm:$0xff]
    %v2268 = vld [vmem:[%s1207 + $0xd1] sm:$0xff]
    %v2269 = vld [vmem:[%s1207 + $0xe9] sm:$0xff]
    %v2270 = vld [vmem:[%s1207 + $0xf1] sm:$0xff]
    %v2271 = vld [vmem:[%s1207 + $0x109] sm:$0xff]
    %v2272 = vld [vmem:[%s1207 + $0x111] sm:$0xff]
    %v2273 = vld [vmem:[%s1207 + $0x129] sm:$0xff]
    %v2274 = vld [vmem:[%s1207 + $0x131] sm:$0xff]
    %v2275 = vld [vmem:[%s1207 + $0x149] sm:$0xff]
    %v2276 = vld [vmem:[%s1207 + $0x151] sm:$0xff]
    %v2277 = vld [vmem:[%s1207 + $0x169] sm:$0xff]
    %v2278 = vld [vmem:[%s1207 + $0x171] sm:$0xff]
    %v2279 = vld [vmem:[%s1207 + $0x189] sm:$0xff]
    %v2280 = vld [vmem:[%s1207 + $0x191] sm:$0xff]
    %v2281 = vld [vmem:[%s1207 + $0x1a9] sm:$0xff]
    %v2282 = vld [vmem:[%s1207 + $0x1b1] sm:$0xff]
    %v2283 = vld [vmem:[%s1207 + $0x1c9] sm:$0xff]
    %v2284 = vld [vmem:[%s1207 + $0x1d1] sm:$0xff]
    %v2285 = vld [vmem:[%s1207 + $0x1e9] sm:$0xff]
    %v2286 = vld [vmem:[%s1207 + $0x1f1] sm:$0xff]
    %v2287 = vld [vmem:[%s1207 + $0x249] sm:$0xff]
    %v2288 = vld [vmem:[%s1207 + $0x251] sm:$0xff]
    %v2289 = vld [vmem:[%s1207 + $0x269] sm:$0xff]
    %v2290 = vld [vmem:[%s1207 + $0x271] sm:$0xff]
    %v2291 = vld [vmem:[%s1207 + $0x289] sm:$0xff]
    %v2292 = vld [vmem:[%s1207 + $0x291] sm:$0xff]
    %v2293 = vld [vmem:[%s1207 + $0x2a9] sm:$0xff]
    %v2294 = vld [vmem:[%s1207 + $0x2b1] sm:$0xff]
    %v2295 = vld [vmem:[%s1207 + $0x2c9] sm:$0xff]
    %v2296 = vld [vmem:[%s1207 + $0x2d1] sm:$0xff]
    %v2297 = vld [vmem:[%s1207 + $0x2e9] sm:$0xff]
    %v2298 = vld [vmem:[%s1207 + $0x2f1] sm:$0xff]
    %v2299 = vld [vmem:[%s1207 + $0x309] sm:$0xff]
    %v2300 = vld [vmem:[%s1207 + $0x311] sm:$0xff]
    %v2301 = vld [vmem:[%s1207 + $0x329] sm:$0xff]
    %v2302 = vld [vmem:[%s1207 + $0x331] sm:$0xff]
    %v2303 = vld [vmem:[%s1207 + $0x349] sm:$0xff]
    %v2304 = vld [vmem:[%s1207 + $0x351] sm:$0xff]
    %v2305 = vld [vmem:[%s1207 + $0x369] sm:$0xff]
    %v2306 = vld [vmem:[%s1207 + $0x371] sm:$0xff]
    %v2307 = vld [vmem:[%s1207 + $0x389] sm:$0xff]
    %v2308 = vld [vmem:[%s1207 + $0x391] sm:$0xff]
    %v2309 = vld [vmem:[%s1207 + $0x3a9] sm:$0xff]
    %v2310 = vld [vmem:[%s1207 + $0x3b1] sm:$0xff]
    %v2311 = vld [vmem:[%s1207 + $0x3c9] sm:$0xff]
    %v2312 = vld [vmem:[%s1207 + $0x3d1] sm:$0xff]
    %v2313 = vld [vmem:[%s1207 + $0x3e9] sm:$0xff]
    %v2314 = vld [vmem:[%s1207 + $0x3f1] sm:$0xff]
    %v2315 = vld [vmem:[%s1207 + $0x409] sm:$0xff]
    %v2316 = vld [vmem:[%s1207 + $0x411] sm:$0xff]
    %v2317 = vld [vmem:[%s1207 + $0x429] sm:$0xff]
    %v2318 = vld [vmem:[%s1207 + $0x431] sm:$0xff]
    %v2319 = vlaneseq
    %v2320 = vshrl.u32 %v2319, 7
    %v2321 = vsub.s32 2, %v2320
    %v2322 = vrot.slane %v1273, %v2321
    %v2323 = vmul.f32 %v2255, %v2322
    %v2324 = vmul.f32 %v2256, %v2322
    %v2325 = vmul.f32 %v2257, %v2322
    %v2326 = vmul.f32 %v2258, %v2322
    %v2327 = vmul.f32 %v2259, %v2322
    %v2328 = vmul.f32 %v2260, %v2322
    %v2329 = vmul.f32 %v2261, %v2322
    %v2330 = vmul.f32 %v2262, %v2322
    %v2331 = vmul.f32 %v2263, %v2322
    %v2332 = vmul.f32 %v2264, %v2322
    %v2333 = vmul.f32 %v2265, %v2322
    %v2334 = vmul.f32 %v2266, %v2322
    %v2335 = vmul.f32 %v2267, %v2322
    %v2336 = vmul.f32 %v2268, %v2322
    %v2337 = vmul.f32 %v2269, %v2322
    %v2338 = vmul.f32 %v2270, %v2322
    %v2339 = vmul.f32 %v2271, %v2322
    %v2340 = vmul.f32 %v2272, %v2322
    %v2341 = vmul.f32 %v2273, %v2322
    %v2342 = vmul.f32 %v2274, %v2322
    %v2343 = vmul.f32 %v2275, %v2322
    %v2344 = vmul.f32 %v2276, %v2322
    %v2345 = vmul.f32 %v2277, %v2322
    %v2346 = vmul.f32 %v2278, %v2322
    %v2347 = vmul.f32 %v2279, %v2322
    %v2348 = vmul.f32 %v2280, %v2322
    %v2349 = vmul.f32 %v2281, %v2322
    %v2350 = vmul.f32 %v2282, %v2322
    %v2351 = vmul.f32 %v2283, %v2322
    %v2352 = vmul.f32 %v2284, %v2322
    %v2353 = vmul.f32 %v2285, %v2322
    %v2354 = vmul.f32 %v2286, %v2322
    %v2355 = vmul.f32 %v2287, %v2322
    %v2356 = vmul.f32 %v2288, %v2322
    %v2357 = vmul.f32 %v2289, %v2322
    %v2358 = vmul.f32 %v2290, %v2322
    %v2359 = vmul.f32 %v2291, %v2322
    %v2360 = vmul.f32 %v2292, %v2322
    %v2361 = vmul.f32 %v2293, %v2322
    %v2362 = vmul.f32 %v2294, %v2322
    %v2363 = vmul.f32 %v2295, %v2322
    %v2364 = vmul.f32 %v2296, %v2322
    %v2365 = vmul.f32 %v2297, %v2322
    %v2366 = vmul.f32 %v2298, %v2322
    %v2367 = vmul.f32 %v2299, %v2322
    %v2368 = vmul.f32 %v2300, %v2322
    %v2369 = vmul.f32 %v2301, %v2322
    %v2370 = vmul.f32 %v2302, %v2322
    %v2371 = vmul.f32 %v2303, %v2322
    %v2372 = vmul.f32 %v2304, %v2322
    %v2373 = vmul.f32 %v2305, %v2322
    %v2374 = vmul.f32 %v2306, %v2322
    %v2375 = vmul.f32 %v2307, %v2322
    %v2376 = vmul.f32 %v2308, %v2322
    %v2377 = vmul.f32 %v2309, %v2322
    %v2378 = vmul.f32 %v2310, %v2322
    %v2379 = vmul.f32 %v2311, %v2322
    %v2380 = vmul.f32 %v2312, %v2322
    %v2381 = vmul.f32 %v2313, %v2322
    %v2382 = vmul.f32 %v2314, %v2322
    %v2383 = vmul.f32 %v2315, %v2322
    %v2384 = vmul.f32 %v2316, %v2322
    %v2385 = vmul.f32 %v2317, %v2322
    %v2386 = vmul.f32 %v2318, %v2322
    %v2387 = vadd.f32 %v2191, %v2323
    %v2388 = vadd.f32 %v2192, %v2324
    %v2389 = vadd.f32 %v2193, %v2325
    %v2390 = vadd.f32 %v2194, %v2326
    %v2391 = vadd.f32 %v2195, %v2327
    %v2392 = vadd.f32 %v2196, %v2328
    %v2393 = vadd.f32 %v2197, %v2329
    %v2394 = vadd.f32 %v2198, %v2330
    %v2395 = vadd.f32 %v2199, %v2331
    %v2396 = vadd.f32 %v2200, %v2332
    %v2397 = vadd.f32 %v2201, %v2333
    %v2398 = vadd.f32 %v2202, %v2334
    %v2399 = vadd.f32 %v2203, %v2335
    %v2400 = vadd.f32 %v2204, %v2336
    %v2401 = vadd.f32 %v2205, %v2337
    %v2402 = vadd.f32 %v2206, %v2338
    %v2403 = vadd.f32 %v2207, %v2339
    %v2404 = vadd.f32 %v2208, %v2340
    %v2405 = vadd.f32 %v2209, %v2341
    %v2406 = vadd.f32 %v2210, %v2342
    %v2407 = vadd.f32 %v2211, %v2343
    %v2408 = vadd.f32 %v2212, %v2344
    %v2409 = vadd.f32 %v2213, %v2345
    %v2410 = vadd.f32 %v2214, %v2346
    %v2411 = vadd.f32 %v2215, %v2347
    %v2412 = vadd.f32 %v2216, %v2348
    %v2413 = vadd.f32 %v2217, %v2349
    %v2414 = vadd.f32 %v2218, %v2350
    %v2415 = vadd.f32 %v2219, %v2351
    %v2416 = vadd.f32 %v2220, %v2352
    %v2417 = vadd.f32 %v2221, %v2353
    %v2418 = vadd.f32 %v2222, %v2354
    %v2419 = vadd.f32 %v2223, %v2355
    %v2420 = vadd.f32 %v2224, %v2356
    %v2421 = vadd.f32 %v2225, %v2357
    %v2422 = vadd.f32 %v2226, %v2358
    %v2423 = vadd.f32 %v2227, %v2359
    %v2424 = vadd.f32 %v2228, %v2360
    %v2425 = vadd.f32 %v2229, %v2361
    %v2426 = vadd.f32 %v2230, %v2362
    %v2427 = vadd.f32 %v2231, %v2363
    %v2428 = vadd.f32 %v2232, %v2364
    %v2429 = vadd.f32 %v2233, %v2365
    %v2430 = vadd.f32 %v2234, %v2366
    %v2431 = vadd.f32 %v2235, %v2367
    %v2432 = vadd.f32 %v2236, %v2368
    %v2433 = vadd.f32 %v2237, %v2369
    %v2434 = vadd.f32 %v2238, %v2370
    %v2435 = vadd.f32 %v2239, %v2371
    %v2436 = vadd.f32 %v2240, %v2372
    %v2437 = vadd.f32 %v2241, %v2373
    %v2438 = vadd.f32 %v2242, %v2374
    %v2439 = vadd.f32 %v2243, %v2375
    %v2440 = vadd.f32 %v2244, %v2376
    %v2441 = vadd.f32 %v2245, %v2377
    %v2442 = vadd.f32 %v2246, %v2378
    %v2443 = vadd.f32 %v2247, %v2379
    %v2444 = vadd.f32 %v2248, %v2380
    %v2445 = vadd.f32 %v2249, %v2381
    %v2446 = vadd.f32 %v2250, %v2382
    %v2447 = vadd.f32 %v2251, %v2383
    %v2448 = vadd.f32 %v2252, %v2384
    %v2449 = vadd.f32 %v2253, %v2385
    %v2450 = vadd.f32 %v2254, %v2386
    %s2451 = scalar_lea.vmem [#allocation2], 64
    %v2452 = vld [vmem:[%s2451 + $0x7] sm:$0xff]
    %v2453 = vld [vmem:[%s2451 + $0xf] sm:$0xff]
    %v2454 = vld [vmem:[%s2451 + $0x27] sm:$0xff]
    %v2455 = vld [vmem:[%s2451 + $0x2f] sm:$0xff]
    %v2456 = vld [vmem:[%s2451 + $0x47] sm:$0xff]
    %v2457 = vld [vmem:[%s2451 + $0x4f] sm:$0xff]
    %v2458 = vld [vmem:[%s2451 + $0x67] sm:$0xff]
    %v2459 = vld [vmem:[%s2451 + $0x6f] sm:$0xff]
    %v2460 = vld [vmem:[%s2451 + $0x87] sm:$0xff]
    %v2461 = vld [vmem:[%s2451 + $0x8f] sm:$0xff]
    %v2462 = vld [vmem:[%s2451 + $0xa7] sm:$0xff]
    %v2463 = vld [vmem:[%s2451 + $0xaf] sm:$0xff]
    %v2464 = vld [vmem:[%s2451 + $0xc7] sm:$0xff]
    %v2465 = vld [vmem:[%s2451 + $0xcf] sm:$0xff]
    %v2466 = vld [vmem:[%s2451 + $0xe7] sm:$0xff]
    %v2467 = vld [vmem:[%s2451 + $0xef] sm:$0xff]
    %v2468 = vld [vmem:[%s2451 + $0x107] sm:$0xff]
    %v2469 = vld [vmem:[%s2451 + $0x10f] sm:$0xff]
    %v2470 = vld [vmem:[%s2451 + $0x127] sm:$0xff]
    %v2471 = vld [vmem:[%s2451 + $0x12f] sm:$0xff]
    %v2472 = vld [vmem:[%s2451 + $0x147] sm:$0xff]
    %v2473 = vld [vmem:[%s2451 + $0x14f] sm:$0xff]
    %v2474 = vld [vmem:[%s2451 + $0x167] sm:$0xff]
    %v2475 = vld [vmem:[%s2451 + $0x16f] sm:$0xff]
    %v2476 = vld [vmem:[%s2451 + $0x187] sm:$0xff]
    %v2477 = vld [vmem:[%s2451 + $0x18f] sm:$0xff]
    %v2478 = vld [vmem:[%s2451 + $0x1a7] sm:$0xff]
    %v2479 = vld [vmem:[%s2451 + $0x1af] sm:$0xff]
    %v2480 = vld [vmem:[%s2451 + $0x1c7] sm:$0xff]
    %v2481 = vld [vmem:[%s2451 + $0x1cf] sm:$0xff]
    %v2482 = vld [vmem:[%s2451 + $0x1e7] sm:$0xff]
    %v2483 = vld [vmem:[%s2451 + $0x1ef] sm:$0xff]
    %v2484 = vld [vmem:[%s2451 + $0x247] sm:$0xff]
    %v2485 = vld [vmem:[%s2451 + $0x24f] sm:$0xff]
    %v2486 = vld [vmem:[%s2451 + $0x267] sm:$0xff]
    %v2487 = vld [vmem:[%s2451 + $0x26f] sm:$0xff]
    %v2488 = vld [vmem:[%s2451 + $0x287] sm:$0xff]
    %v2489 = vld [vmem:[%s2451 + $0x28f] sm:$0xff]
    %v2490 = vld [vmem:[%s2451 + $0x2a7] sm:$0xff]
    %v2491 = vld [vmem:[%s2451 + $0x2af] sm:$0xff]
    %v2492 = vld [vmem:[%s2451 + $0x2c7] sm:$0xff]
    %v2493 = vld [vmem:[%s2451 + $0x2cf] sm:$0xff]
    %v2494 = vld [vmem:[%s2451 + $0x2e7] sm:$0xff]
    %v2495 = vld [vmem:[%s2451 + $0x2ef] sm:$0xff]
    %v2496 = vld [vmem:[%s2451 + $0x307] sm:$0xff]
    %v2497 = vld [vmem:[%s2451 + $0x30f] sm:$0xff]
    %v2498 = vld [vmem:[%s2451 + $0x327] sm:$0xff]
    %v2499 = vld [vmem:[%s2451 + $0x32f] sm:$0xff]
    %v2500 = vld [vmem:[%s2451 + $0x347] sm:$0xff]
    %v2501 = vld [vmem:[%s2451 + $0x34f] sm:$0xff]
    %v2502 = vld [vmem:[%s2451 + $0x367] sm:$0xff]
    %v2503 = vld [vmem:[%s2451 + $0x36f] sm:$0xff]
    %v2504 = vld [vmem:[%s2451 + $0x387] sm:$0xff]
    %v2505 = vld [vmem:[%s2451 + $0x38f] sm:$0xff]
    %v2506 = vld [vmem:[%s2451 + $0x3a7] sm:$0xff]
    %v2507 = vld [vmem:[%s2451 + $0x3af] sm:$0xff]
    %v2508 = vld [vmem:[%s2451 + $0x3c7] sm:$0xff]
    %v2509 = vld [vmem:[%s2451 + $0x3cf] sm:$0xff]
    %v2510 = vld [vmem:[%s2451 + $0x3e7] sm:$0xff]
    %v2511 = vld [vmem:[%s2451 + $0x3ef] sm:$0xff]
    %v2512 = vld [vmem:[%s2451 + $0x407] sm:$0xff]
    %v2513 = vld [vmem:[%s2451 + $0x40f] sm:$0xff]
    %v2514 = vld [vmem:[%s2451 + $0x427] sm:$0xff]
    %v2515 = vld [vmem:[%s2451 + $0x42f] sm:$0xff]
    %v2516 = vlaneseq
    %v2517 = vshrl.u32 %v2516, 7
    %v2518 = vsub.s32 0, %v2517
    %v2519 = vrot.slane %v1274, %v2518
    %v2520 = vmul.f32 %v2452, %v2519
    %v2521 = vmul.f32 %v2453, %v2519
    %v2522 = vmul.f32 %v2454, %v2519
    %v2523 = vmul.f32 %v2455, %v2519
    %v2524 = vmul.f32 %v2456, %v2519
    %v2525 = vmul.f32 %v2457, %v2519
    %v2526 = vmul.f32 %v2458, %v2519
    %v2527 = vmul.f32 %v2459, %v2519
    %v2528 = vmul.f32 %v2460, %v2519
    %v2529 = vmul.f32 %v2461, %v2519
    %v2530 = vmul.f32 %v2462, %v2519
    %v2531 = vmul.f32 %v2463, %v2519
    %v2532 = vmul.f32 %v2464, %v2519
    %v2533 = vmul.f32 %v2465, %v2519
    %v2534 = vmul.f32 %v2466, %v2519
    %v2535 = vmul.f32 %v2467, %v2519
    %v2536 = vmul.f32 %v2468, %v2519
    %v2537 = vmul.f32 %v2469, %v2519
    %v2538 = vmul.f32 %v2470, %v2519
    %v2539 = vmul.f32 %v2471, %v2519
    %v2540 = vmul.f32 %v2472, %v2519
    %v2541 = vmul.f32 %v2473, %v2519
    %v2542 = vmul.f32 %v2474, %v2519
    %v2543 = vmul.f32 %v2475, %v2519
    %v2544 = vmul.f32 %v2476, %v2519
    %v2545 = vmul.f32 %v2477, %v2519
    %v2546 = vmul.f32 %v2478, %v2519
    %v2547 = vmul.f32 %v2479, %v2519
    %v2548 = vmul.f32 %v2480, %v2519
    %v2549 = vmul.f32 %v2481, %v2519
    %v2550 = vmul.f32 %v2482, %v2519
    %v2551 = vmul.f32 %v2483, %v2519
    %v2552 = vmul.f32 %v2484, %v2519
    %v2553 = vmul.f32 %v2485, %v2519
    %v2554 = vmul.f32 %v2486, %v2519
    %v2555 = vmul.f32 %v2487, %v2519
    %v2556 = vmul.f32 %v2488, %v2519
    %v2557 = vmul.f32 %v2489, %v2519
    %v2558 = vmul.f32 %v2490, %v2519
    %v2559 = vmul.f32 %v2491, %v2519
    %v2560 = vmul.f32 %v2492, %v2519
    %v2561 = vmul.f32 %v2493, %v2519
    %v2562 = vmul.f32 %v2494, %v2519
    %v2563 = vmul.f32 %v2495, %v2519
    %v2564 = vmul.f32 %v2496, %v2519
    %v2565 = vmul.f32 %v2497, %v2519
    %v2566 = vmul.f32 %v2498, %v2519
    %v2567 = vmul.f32 %v2499, %v2519
    %v2568 = vmul.f32 %v2500, %v2519
    %v2569 = vmul.f32 %v2501, %v2519
    %v2570 = vmul.f32 %v2502, %v2519
    %v2571 = vmul.f32 %v2503, %v2519
    %v2572 = vmul.f32 %v2504, %v2519
    %v2573 = vmul.f32 %v2505, %v2519
    %v2574 = vmul.f32 %v2506, %v2519
    %v2575 = vmul.f32 %v2507, %v2519
    %v2576 = vmul.f32 %v2508, %v2519
    %v2577 = vmul.f32 %v2509, %v2519
    %v2578 = vmul.f32 %v2510, %v2519
    %v2579 = vmul.f32 %v2511, %v2519
    %v2580 = vmul.f32 %v2512, %v2519
    %v2581 = vmul.f32 %v2513, %v2519
    %v2582 = vmul.f32 %v2514, %v2519
    %v2583 = vmul.f32 %v2515, %v2519
    %v2584 = vadd.f32 %v2387, %v2520
    %v2585 = vadd.f32 %v2388, %v2521
    %v2586 = vadd.f32 %v2389, %v2522
    %v2587 = vadd.f32 %v2390, %v2523
    %v2588 = vadd.f32 %v2391, %v2524
    %v2589 = vadd.f32 %v2392, %v2525
    %v2590 = vadd.f32 %v2393, %v2526
    %v2591 = vadd.f32 %v2394, %v2527
    %v2592 = vadd.f32 %v2395, %v2528
    %v2593 = vadd.f32 %v2396, %v2529
    %v2594 = vadd.f32 %v2397, %v2530
    %v2595 = vadd.f32 %v2398, %v2531
    %v2596 = vadd.f32 %v2399, %v2532
    %v2597 = vadd.f32 %v2400, %v2533
    %v2598 = vadd.f32 %v2401, %v2534
    %v2599 = vadd.f32 %v2402, %v2535
    %v2600 = vadd.f32 %v2403, %v2536
    %v2601 = vadd.f32 %v2404, %v2537
    %v2602 = vadd.f32 %v2405, %v2538
    %v2603 = vadd.f32 %v2406, %v2539
    %v2604 = vadd.f32 %v2407, %v2540
    %v2605 = vadd.f32 %v2408, %v2541
    %v2606 = vadd.f32 %v2409, %v2542
    %v2607 = vadd.f32 %v2410, %v2543
    %v2608 = vadd.f32 %v2411, %v2544
    %v2609 = vadd.f32 %v2412, %v2545
    %v2610 = vadd.f32 %v2413, %v2546
    %v2611 = vadd.f32 %v2414, %v2547
    %v2612 = vadd.f32 %v2415, %v2548
    %v2613 = vadd.f32 %v2416, %v2549
    %v2614 = vadd.f32 %v2417, %v2550
    %v2615 = vadd.f32 %v2418, %v2551
    %v2616 = vadd.f32 %v2419, %v2552
    %v2617 = vadd.f32 %v2420, %v2553
    %v2618 = vadd.f32 %v2421, %v2554
    %v2619 = vadd.f32 %v2422, %v2555
    %v2620 = vadd.f32 %v2423, %v2556
    %v2621 = vadd.f32 %v2424, %v2557
    %v2622 = vadd.f32 %v2425, %v2558
    %v2623 = vadd.f32 %v2426, %v2559
    %v2624 = vadd.f32 %v2427, %v2560
    %v2625 = vadd.f32 %v2428, %v2561
    %v2626 = vadd.f32 %v2429, %v2562
    %v2627 = vadd.f32 %v2430, %v2563
    %v2628 = vadd.f32 %v2431, %v2564
    %v2629 = vadd.f32 %v2432, %v2565
    %v2630 = vadd.f32 %v2433, %v2566
    %v2631 = vadd.f32 %v2434, %v2567
    %v2632 = vadd.f32 %v2435, %v2568
    %v2633 = vadd.f32 %v2436, %v2569
    %v2634 = vadd.f32 %v2437, %v2570
    %v2635 = vadd.f32 %v2438, %v2571
    %v2636 = vadd.f32 %v2439, %v2572
    %v2637 = vadd.f32 %v2440, %v2573
    %v2638 = vadd.f32 %v2441, %v2574
    %v2639 = vadd.f32 %v2442, %v2575
    %v2640 = vadd.f32 %v2443, %v2576
    %v2641 = vadd.f32 %v2444, %v2577
    %v2642 = vadd.f32 %v2445, %v2578
    %v2643 = vadd.f32 %v2446, %v2579
    %v2644 = vadd.f32 %v2447, %v2580
    %v2645 = vadd.f32 %v2448, %v2581
    %v2646 = vadd.f32 %v2449, %v2582
    %v2647 = vadd.f32 %v2450, %v2583
    %v2648 = vld [vmem:[%s2451 + $0x8] sm:$0xff]
    %v2649 = vld [vmem:[%s2451 + $0x10] sm:$0xff]
    %v2650 = vld [vmem:[%s2451 + $0x28] sm:$0xff]
    %v2651 = vld [vmem:[%s2451 + $0x30] sm:$0xff]
    %v2652 = vld [vmem:[%s2451 + $0x48] sm:$0xff]
    %v2653 = vld [vmem:[%s2451 + $0x50] sm:$0xff]
    %v2654 = vld [vmem:[%s2451 + $0x68] sm:$0xff]
    %v2655 = vld [vmem:[%s2451 + $0x70] sm:$0xff]
    %v2656 = vld [vmem:[%s2451 + $0x88] sm:$0xff]
    %v2657 = vld [vmem:[%s2451 + $0x90] sm:$0xff]
    %v2658 = vld [vmem:[%s2451 + $0xa8] sm:$0xff]
    %v2659 = vld [vmem:[%s2451 + $0xb0] sm:$0xff]
    %v2660 = vld [vmem:[%s2451 + $0xc8] sm:$0xff]
    %v2661 = vld [vmem:[%s2451 + $0xd0] sm:$0xff]
    %v2662 = vld [vmem:[%s2451 + $0xe8] sm:$0xff]
    %v2663 = vld [vmem:[%s2451 + $0xf0] sm:$0xff]
    %v2664 = vld [vmem:[%s2451 + $0x108] sm:$0xff]
    %v2665 = vld [vmem:[%s2451 + $0x110] sm:$0xff]
    %v2666 = vld [vmem:[%s2451 + $0x128] sm:$0xff]
    %v2667 = vld [vmem:[%s2451 + $0x130] sm:$0xff]
    %v2668 = vld [vmem:[%s2451 + $0x148] sm:$0xff]
    %v2669 = vld [vmem:[%s2451 + $0x150] sm:$0xff]
    %v2670 = vld [vmem:[%s2451 + $0x168] sm:$0xff]
    %v2671 = vld [vmem:[%s2451 + $0x170] sm:$0xff]
    %v2672 = vld [vmem:[%s2451 + $0x188] sm:$0xff]
    %v2673 = vld [vmem:[%s2451 + $0x190] sm:$0xff]
    %v2674 = vld [vmem:[%s2451 + $0x1a8] sm:$0xff]
    %v2675 = vld [vmem:[%s2451 + $0x1b0] sm:$0xff]
    %v2676 = vld [vmem:[%s2451 + $0x1c8] sm:$0xff]
    %v2677 = vld [vmem:[%s2451 + $0x1d0] sm:$0xff]
    %v2678 = vld [vmem:[%s2451 + $0x1e8] sm:$0xff]
    %v2679 = vld [vmem:[%s2451 + $0x1f0] sm:$0xff]
    %v2680 = vld [vmem:[%s2451 + $0x248] sm:$0xff]
    %v2681 = vld [vmem:[%s2451 + $0x250] sm:$0xff]
    %v2682 = vld [vmem:[%s2451 + $0x268] sm:$0xff]
    %v2683 = vld [vmem:[%s2451 + $0x270] sm:$0xff]
    %v2684 = vld [vmem:[%s2451 + $0x288] sm:$0xff]
    %v2685 = vld [vmem:[%s2451 + $0x290] sm:$0xff]
    %v2686 = vld [vmem:[%s2451 + $0x2a8] sm:$0xff]
    %v2687 = vld [vmem:[%s2451 + $0x2b0] sm:$0xff]
    %v2688 = vld [vmem:[%s2451 + $0x2c8] sm:$0xff]
    %v2689 = vld [vmem:[%s2451 + $0x2d0] sm:$0xff]
    %v2690 = vld [vmem:[%s2451 + $0x2e8] sm:$0xff]
    %v2691 = vld [vmem:[%s2451 + $0x2f0] sm:$0xff]
    %v2692 = vld [vmem:[%s2451 + $0x308] sm:$0xff]
    %v2693 = vld [vmem:[%s2451 + $0x310] sm:$0xff]
    %v2694 = vld [vmem:[%s2451 + $0x328] sm:$0xff]
    %v2695 = vld [vmem:[%s2451 + $0x330] sm:$0xff]
    %v2696 = vld [vmem:[%s2451 + $0x348] sm:$0xff]
    %v2697 = vld [vmem:[%s2451 + $0x350] sm:$0xff]
    %v2698 = vld [vmem:[%s2451 + $0x368] sm:$0xff]
    %v2699 = vld [vmem:[%s2451 + $0x370] sm:$0xff]
    %v2700 = vld [vmem:[%s2451 + $0x388] sm:$0xff]
    %v2701 = vld [vmem:[%s2451 + $0x390] sm:$0xff]
    %v2702 = vld [vmem:[%s2451 + $0x3a8] sm:$0xff]
    %v2703 = vld [vmem:[%s2451 + $0x3b0] sm:$0xff]
    %v2704 = vld [vmem:[%s2451 + $0x3c8] sm:$0xff]
    %v2705 = vld [vmem:[%s2451 + $0x3d0] sm:$0xff]
    %v2706 = vld [vmem:[%s2451 + $0x3e8] sm:$0xff]
    %v2707 = vld [vmem:[%s2451 + $0x3f0] sm:$0xff]
    %v2708 = vld [vmem:[%s2451 + $0x408] sm:$0xff]
    %v2709 = vld [vmem:[%s2451 + $0x410] sm:$0xff]
    %v2710 = vld [vmem:[%s2451 + $0x428] sm:$0xff]
    %v2711 = vld [vmem:[%s2451 + $0x430] sm:$0xff]
    %v2712 = vlaneseq
    %v2713 = vshrl.u32 %v2712, 7
    %v2714 = vsub.s32 1, %v2713
    %v2715 = vrot.slane %v1274, %v2714
    %v2716 = vmul.f32 %v2648, %v2715
    %v2717 = vmul.f32 %v2649, %v2715
    %v2718 = vmul.f32 %v2650, %v2715
    %v2719 = vmul.f32 %v2651, %v2715
    %v2720 = vmul.f32 %v2652, %v2715
    %v2721 = vmul.f32 %v2653, %v2715
    %v2722 = vmul.f32 %v2654, %v2715
    %v2723 = vmul.f32 %v2655, %v2715
    %v2724 = vmul.f32 %v2656, %v2715
    %v2725 = vmul.f32 %v2657, %v2715
    %v2726 = vmul.f32 %v2658, %v2715
    %v2727 = vmul.f32 %v2659, %v2715
    %v2728 = vmul.f32 %v2660, %v2715
    %v2729 = vmul.f32 %v2661, %v2715
    %v2730 = vmul.f32 %v2662, %v2715
    %v2731 = vmul.f32 %v2663, %v2715
    %v2732 = vmul.f32 %v2664, %v2715
    %v2733 = vmul.f32 %v2665, %v2715
    %v2734 = vmul.f32 %v2666, %v2715
    %v2735 = vmul.f32 %v2667, %v2715
    %v2736 = vmul.f32 %v2668, %v2715
    %v2737 = vmul.f32 %v2669, %v2715
    %v2738 = vmul.f32 %v2670, %v2715
    %v2739 = vmul.f32 %v2671, %v2715
    %v2740 = vmul.f32 %v2672, %v2715
    %v2741 = vmul.f32 %v2673, %v2715
    %v2742 = vmul.f32 %v2674, %v2715
    %v2743 = vmul.f32 %v2675, %v2715
    %v2744 = vmul.f32 %v2676, %v2715
    %v2745 = vmul.f32 %v2677, %v2715
    %v2746 = vmul.f32 %v2678, %v2715
    %v2747 = vmul.f32 %v2679, %v2715
    %v2748 = vmul.f32 %v2680, %v2715
    %v2749 = vmul.f32 %v2681, %v2715
    %v2750 = vmul.f32 %v2682, %v2715
    %v2751 = vmul.f32 %v2683, %v2715
    %v2752 = vmul.f32 %v2684, %v2715
    %v2753 = vmul.f32 %v2685, %v2715
    %v2754 = vmul.f32 %v2686, %v2715
    %v2755 = vmul.f32 %v2687, %v2715
    %v2756 = vmul.f32 %v2688, %v2715
    %v2757 = vmul.f32 %v2689, %v2715
    %v2758 = vmul.f32 %v2690, %v2715
    %v2759 = vmul.f32 %v2691, %v2715
    %v2760 = vmul.f32 %v2692, %v2715
    %v2761 = vmul.f32 %v2693, %v2715
    %v2762 = vmul.f32 %v2694, %v2715
    %v2763 = vmul.f32 %v2695, %v2715
    %v2764 = vmul.f32 %v2696, %v2715
    %v2765 = vmul.f32 %v2697, %v2715
    %v2766 = vmul.f32 %v2698, %v2715
    %v2767 = vmul.f32 %v2699, %v2715
    %v2768 = vmul.f32 %v2700, %v2715
    %v2769 = vmul.f32 %v2701, %v2715
    %v2770 = vmul.f32 %v2702, %v2715
    %v2771 = vmul.f32 %v2703, %v2715
    %v2772 = vmul.f32 %v2704, %v2715
    %v2773 = vmul.f32 %v2705, %v2715
    %v2774 = vmul.f32 %v2706, %v2715
    %v2775 = vmul.f32 %v2707, %v2715
    %v2776 = vmul.f32 %v2708, %v2715
    %v2777 = vmul.f32 %v2709, %v2715
    %v2778 = vmul.f32 %v2710, %v2715
    %v2779 = vmul.f32 %v2711, %v2715
    %v2780 = vadd.f32 %v2584, %v2716
    %v2781 = vadd.f32 %v2585, %v2717
    %v2782 = vadd.f32 %v2586, %v2718
    %v2783 = vadd.f32 %v2587, %v2719
    %v2784 = vadd.f32 %v2588, %v2720
    %v2785 = vadd.f32 %v2589, %v2721
    %v2786 = vadd.f32 %v2590, %v2722
    %v2787 = vadd.f32 %v2591, %v2723
    %v2788 = vadd.f32 %v2592, %v2724
    %v2789 = vadd.f32 %v2593, %v2725
    %v2790 = vadd.f32 %v2594, %v2726
    %v2791 = vadd.f32 %v2595, %v2727
    %v2792 = vadd.f32 %v2596, %v2728
    %v2793 = vadd.f32 %v2597, %v2729
    %v2794 = vadd.f32 %v2598, %v2730
    %v2795 = vadd.f32 %v2599, %v2731
    %v2796 = vadd.f32 %v2600, %v2732
    %v2797 = vadd.f32 %v2601, %v2733
    %v2798 = vadd.f32 %v2602, %v2734
    %v2799 = vadd.f32 %v2603, %v2735
    %v2800 = vadd.f32 %v2604, %v2736
    %v2801 = vadd.f32 %v2605, %v2737
    %v2802 = vadd.f32 %v2606, %v2738
    %v2803 = vadd.f32 %v2607, %v2739
    %v2804 = vadd.f32 %v2608, %v2740
    %v2805 = vadd.f32 %v2609, %v2741
    %v2806 = vadd.f32 %v2610, %v2742
    %v2807 = vadd.f32 %v2611, %v2743
    %v2808 = vadd.f32 %v2612, %v2744
    %v2809 = vadd.f32 %v2613, %v2745
    %v2810 = vadd.f32 %v2614, %v2746
    %v2811 = vadd.f32 %v2615, %v2747
    %v2812 = vadd.f32 %v2616, %v2748
    %v2813 = vadd.f32 %v2617, %v2749
    %v2814 = vadd.f32 %v2618, %v2750
    %v2815 = vadd.f32 %v2619, %v2751
    %v2816 = vadd.f32 %v2620, %v2752
    %v2817 = vadd.f32 %v2621, %v2753
    %v2818 = vadd.f32 %v2622, %v2754
    %v2819 = vadd.f32 %v2623, %v2755
    %v2820 = vadd.f32 %v2624, %v2756
    %v2821 = vadd.f32 %v2625, %v2757
    %v2822 = vadd.f32 %v2626, %v2758
    %v2823 = vadd.f32 %v2627, %v2759
    %v2824 = vadd.f32 %v2628, %v2760
    %v2825 = vadd.f32 %v2629, %v2761
    %v2826 = vadd.f32 %v2630, %v2762
    %v2827 = vadd.f32 %v2631, %v2763
    %v2828 = vadd.f32 %v2632, %v2764
    %v2829 = vadd.f32 %v2633, %v2765
    %v2830 = vadd.f32 %v2634, %v2766
    %v2831 = vadd.f32 %v2635, %v2767
    %v2832 = vadd.f32 %v2636, %v2768
    %v2833 = vadd.f32 %v2637, %v2769
    %v2834 = vadd.f32 %v2638, %v2770
    %v2835 = vadd.f32 %v2639, %v2771
    %v2836 = vadd.f32 %v2640, %v2772
    %v2837 = vadd.f32 %v2641, %v2773
    %v2838 = vadd.f32 %v2642, %v2774
    %v2839 = vadd.f32 %v2643, %v2775
    %v2840 = vadd.f32 %v2644, %v2776
    %v2841 = vadd.f32 %v2645, %v2777
    %v2842 = vadd.f32 %v2646, %v2778
    %v2843 = vadd.f32 %v2647, %v2779
    %v2844 = vld [vmem:[%s2451 + $0x9] sm:$0xff]
    %v2845 = vld [vmem:[%s2451 + $0x11] sm:$0xff]
    %v2846 = vld [vmem:[%s2451 + $0x29] sm:$0xff]
    %v2847 = vld [vmem:[%s2451 + $0x31] sm:$0xff]
    %v2848 = vld [vmem:[%s2451 + $0x49] sm:$0xff]
    %v2849 = vld [vmem:[%s2451 + $0x51] sm:$0xff]
    %v2850 = vld [vmem:[%s2451 + $0x69] sm:$0xff]
    %v2851 = vld [vmem:[%s2451 + $0x71] sm:$0xff]
    %v2852 = vld [vmem:[%s2451 + $0x89] sm:$0xff]
    %v2853 = vld [vmem:[%s2451 + $0x91] sm:$0xff]
    %v2854 = vld [vmem:[%s2451 + $0xa9] sm:$0xff]
    %v2855 = vld [vmem:[%s2451 + $0xb1] sm:$0xff]
    %v2856 = vld [vmem:[%s2451 + $0xc9] sm:$0xff]
    %v2857 = vld [vmem:[%s2451 + $0xd1] sm:$0xff]
    %v2858 = vld [vmem:[%s2451 + $0xe9] sm:$0xff]
    %v2859 = vld [vmem:[%s2451 + $0xf1] sm:$0xff]
    %v2860 = vld [vmem:[%s2451 + $0x109] sm:$0xff]
    %v2861 = vld [vmem:[%s2451 + $0x111] sm:$0xff]
    %v2862 = vld [vmem:[%s2451 + $0x129] sm:$0xff]
    %v2863 = vld [vmem:[%s2451 + $0x131] sm:$0xff]
    %v2864 = vld [vmem:[%s2451 + $0x149] sm:$0xff]
    %v2865 = vld [vmem:[%s2451 + $0x151] sm:$0xff]
    %v2866 = vld [vmem:[%s2451 + $0x169] sm:$0xff]
    %v2867 = vld [vmem:[%s2451 + $0x171] sm:$0xff]
    %v2868 = vld [vmem:[%s2451 + $0x189] sm:$0xff]
    %v2869 = vld [vmem:[%s2451 + $0x191] sm:$0xff]
    %v2870 = vld [vmem:[%s2451 + $0x1a9] sm:$0xff]
    %v2871 = vld [vmem:[%s2451 + $0x1b1] sm:$0xff]
    %v2872 = vld [vmem:[%s2451 + $0x1c9] sm:$0xff]
    %v2873 = vld [vmem:[%s2451 + $0x1d1] sm:$0xff]
    %v2874 = vld [vmem:[%s2451 + $0x1e9] sm:$0xff]
    %v2875 = vld [vmem:[%s2451 + $0x1f1] sm:$0xff]
    %v2876 = vld [vmem:[%s2451 + $0x249] sm:$0xff]
    %v2877 = vld [vmem:[%s2451 + $0x251] sm:$0xff]
    %v2878 = vld [vmem:[%s2451 + $0x269] sm:$0xff]
    %v2879 = vld [vmem:[%s2451 + $0x271] sm:$0xff]
    %v2880 = vld [vmem:[%s2451 + $0x289] sm:$0xff]
    %v2881 = vld [vmem:[%s2451 + $0x291] sm:$0xff]
    %v2882 = vld [vmem:[%s2451 + $0x2a9] sm:$0xff]
    %v2883 = vld [vmem:[%s2451 + $0x2b1] sm:$0xff]
    %v2884 = vld [vmem:[%s2451 + $0x2c9] sm:$0xff]
    %v2885 = vld [vmem:[%s2451 + $0x2d1] sm:$0xff]
    %v2886 = vld [vmem:[%s2451 + $0x2e9] sm:$0xff]
    %v2887 = vld [vmem:[%s2451 + $0x2f1] sm:$0xff]
    %v2888 = vld [vmem:[%s2451 + $0x309] sm:$0xff]
    %v2889 = vld [vmem:[%s2451 + $0x311] sm:$0xff]
    %v2890 = vld [vmem:[%s2451 + $0x329] sm:$0xff]
    %v2891 = vld [vmem:[%s2451 + $0x331] sm:$0xff]
    %v2892 = vld [vmem:[%s2451 + $0x349] sm:$0xff]
    %v2893 = vld [vmem:[%s2451 + $0x351] sm:$0xff]
    %v2894 = vld [vmem:[%s2451 + $0x369] sm:$0xff]
    %v2895 = vld [vmem:[%s2451 + $0x371] sm:$0xff]
    %v2896 = vld [vmem:[%s2451 + $0x389] sm:$0xff]
    %v2897 = vld [vmem:[%s2451 + $0x391] sm:$0xff]
    %v2898 = vld [vmem:[%s2451 + $0x3a9] sm:$0xff]
    %v2899 = vld [vmem:[%s2451 + $0x3b1] sm:$0xff]
    %v2900 = vld [vmem:[%s2451 + $0x3c9] sm:$0xff]
    %v2901 = vld [vmem:[%s2451 + $0x3d1] sm:$0xff]
    %v2902 = vld [vmem:[%s2451 + $0x3e9] sm:$0xff]
    %v2903 = vld [vmem:[%s2451 + $0x3f1] sm:$0xff]
    %v2904 = vld [vmem:[%s2451 + $0x409] sm:$0xff]
    %v2905 = vld [vmem:[%s2451 + $0x411] sm:$0xff]
    %v2906 = vld [vmem:[%s2451 + $0x429] sm:$0xff]
    %v2907 = vld [vmem:[%s2451 + $0x431] sm:$0xff]
    %v2908 = vlaneseq
    %v2909 = vshrl.u32 %v2908, 7
    %v2910 = vsub.s32 2, %v2909
    %v2911 = vrot.slane %v1274, %v2910
    %v2912 = vmul.f32 %v2844, %v2911
    %v2913 = vmul.f32 %v2845, %v2911
    %v2914 = vmul.f32 %v2846, %v2911
    %v2915 = vmul.f32 %v2847, %v2911
    %v2916 = vmul.f32 %v2848, %v2911
    %v2917 = vmul.f32 %v2849, %v2911
    %v2918 = vmul.f32 %v2850, %v2911
    %v2919 = vmul.f32 %v2851, %v2911
    %v2920 = vmul.f32 %v2852, %v2911
    %v2921 = vmul.f32 %v2853, %v2911
    %v2922 = vmul.f32 %v2854, %v2911
    %v2923 = vmul.f32 %v2855, %v2911
    %v2924 = vmul.f32 %v2856, %v2911
    %v2925 = vmul.f32 %v2857, %v2911
    %v2926 = vmul.f32 %v2858, %v2911
    %v2927 = vmul.f32 %v2859, %v2911
    %v2928 = vmul.f32 %v2860, %v2911
    %v2929 = vmul.f32 %v2861, %v2911
    %v2930 = vmul.f32 %v2862, %v2911
    %v2931 = vmul.f32 %v2863, %v2911
    %v2932 = vmul.f32 %v2864, %v2911
    %v2933 = vmul.f32 %v2865, %v2911
    %v2934 = vmul.f32 %v2866, %v2911
    %v2935 = vmul.f32 %v2867, %v2911
    %v2936 = vmul.f32 %v2868, %v2911
    %v2937 = vmul.f32 %v2869, %v2911
    %v2938 = vmul.f32 %v2870, %v2911
    %v2939 = vmul.f32 %v2871, %v2911
    %v2940 = vmul.f32 %v2872, %v2911
    %v2941 = vmul.f32 %v2873, %v2911
    %v2942 = vmul.f32 %v2874, %v2911
    %v2943 = vmul.f32 %v2875, %v2911
    %v2944 = vmul.f32 %v2876, %v2911
    %v2945 = vmul.f32 %v2877, %v2911
    %v2946 = vmul.f32 %v2878, %v2911
    %v2947 = vmul.f32 %v2879, %v2911
    %v2948 = vmul.f32 %v2880, %v2911
    %v2949 = vmul.f32 %v2881, %v2911
    %v2950 = vmul.f32 %v2882, %v2911
    %v2951 = vmul.f32 %v2883, %v2911
    %v2952 = vmul.f32 %v2884, %v2911
    %v2953 = vmul.f32 %v2885, %v2911
    %v2954 = vmul.f32 %v2886, %v2911
    %v2955 = vmul.f32 %v2887, %v2911
    %v2956 = vmul.f32 %v2888, %v2911
    %v2957 = vmul.f32 %v2889, %v2911
    %v2958 = vmul.f32 %v2890, %v2911
    %v2959 = vmul.f32 %v2891, %v2911
    %v2960 = vmul.f32 %v2892, %v2911
    %v2961 = vmul.f32 %v2893, %v2911
    %v2962 = vmul.f32 %v2894, %v2911
    %v2963 = vmul.f32 %v2895, %v2911
    %v2964 = vmul.f32 %v2896, %v2911
    %v2965 = vmul.f32 %v2897, %v2911
    %v2966 = vmul.f32 %v2898, %v2911
    %v2967 = vmul.f32 %v2899, %v2911
    %v2968 = vmul.f32 %v2900, %v2911
    %v2969 = vmul.f32 %v2901, %v2911
    %v2970 = vmul.f32 %v2902, %v2911
    %v2971 = vmul.f32 %v2903, %v2911
    %v2972 = vmul.f32 %v2904, %v2911
    %v2973 = vmul.f32 %v2905, %v2911
    %v2974 = vmul.f32 %v2906, %v2911
    %v2975 = vmul.f32 %v2907, %v2911
    %v2976 = vadd.f32 %v2780, %v2912
    %v2977 = vadd.f32 %v2781, %v2913
    %v2978 = vadd.f32 %v2782, %v2914
    %v2979 = vadd.f32 %v2783, %v2915
    %v2980 = vadd.f32 %v2784, %v2916
    %v2981 = vadd.f32 %v2785, %v2917
    %v2982 = vadd.f32 %v2786, %v2918
    %v2983 = vadd.f32 %v2787, %v2919
    %v2984 = vadd.f32 %v2788, %v2920
    %v2985 = vadd.f32 %v2789, %v2921
    %v2986 = vadd.f32 %v2790, %v2922
    %v2987 = vadd.f32 %v2791, %v2923
    %v2988 = vadd.f32 %v2792, %v2924
    %v2989 = vadd.f32 %v2793, %v2925
    %v2990 = vadd.f32 %v2794, %v2926
    %v2991 = vadd.f32 %v2795, %v2927
    %v2992 = vadd.f32 %v2796, %v2928
    %v2993 = vadd.f32 %v2797, %v2929
    %v2994 = vadd.f32 %v2798, %v2930
    %v2995 = vadd.f32 %v2799, %v2931
    %v2996 = vadd.f32 %v2800, %v2932
    %v2997 = vadd.f32 %v2801, %v2933
    %v2998 = vadd.f32 %v2802, %v2934
    %v2999 = vadd.f32 %v2803, %v2935
    %v3000 = vadd.f32 %v2804, %v2936
    %v3001 = vadd.f32 %v2805, %v2937
    %v3002 = vadd.f32 %v2806, %v2938
    %v3003 = vadd.f32 %v2807, %v2939
    %v3004 = vadd.f32 %v2808, %v2940
    %v3005 = vadd.f32 %v2809, %v2941
    %v3006 = vadd.f32 %v2810, %v2942
    %v3007 = vadd.f32 %v2811, %v2943
    %v3008 = vadd.f32 %v2812, %v2944
    %v3009 = vadd.f32 %v2813, %v2945
    %v3010 = vadd.f32 %v2814, %v2946
    %v3011 = vadd.f32 %v2815, %v2947
    %v3012 = vadd.f32 %v2816, %v2948
    %v3013 = vadd.f32 %v2817, %v2949
    %v3014 = vadd.f32 %v2818, %v2950
    %v3015 = vadd.f32 %v2819, %v2951
    %v3016 = vadd.f32 %v2820, %v2952
    %v3017 = vadd.f32 %v2821, %v2953
    %v3018 = vadd.f32 %v2822, %v2954
    %v3019 = vadd.f32 %v2823, %v2955
    %v3020 = vadd.f32 %v2824, %v2956
    %v3021 = vadd.f32 %v2825, %v2957
    %v3022 = vadd.f32 %v2826, %v2958
    %v3023 = vadd.f32 %v2827, %v2959
    %v3024 = vadd.f32 %v2828, %v2960
    %v3025 = vadd.f32 %v2829, %v2961
    %v3026 = vadd.f32 %v2830, %v2962
    %v3027 = vadd.f32 %v2831, %v2963
    %v3028 = vadd.f32 %v2832, %v2964
    %v3029 = vadd.f32 %v2833, %v2965
    %v3030 = vadd.f32 %v2834, %v2966
    %v3031 = vadd.f32 %v2835, %v2967
    %v3032 = vadd.f32 %v2836, %v2968
    %v3033 = vadd.f32 %v2837, %v2969
    %v3034 = vadd.f32 %v2838, %v2970
    %v3035 = vadd.f32 %v2839, %v2971
    %v3036 = vadd.f32 %v2840, %v2972
    %v3037 = vadd.f32 %v2841, %v2973
    %v3038 = vadd.f32 %v2842, %v2974
    %v3039 = vadd.f32 %v2843, %v2975
    %v3040 = vld [vmem:[%s4] sm:$0x1]
    %v3042 = vlaneseq
    %v3043 = vshrl.u32 %v3042, 7
    %v3044 = vsub.s32 0, %v3043
    %v3045 = vrot.slane %v3040, %v3044
    %v3047 = vadd.f32 %v2976, %v3045
    %v3048 = vadd.f32 %v2977, %v3045
    %v3049 = vadd.f32 %v2978, %v3045
    %v3050 = vadd.f32 %v2979, %v3045
    %v3051 = vadd.f32 %v2980, %v3045
    %v3052 = vadd.f32 %v2981, %v3045
    %v3053 = vadd.f32 %v2982, %v3045
    %v3054 = vadd.f32 %v2983, %v3045
    %v3055 = vadd.f32 %v2984, %v3045
    %v3056 = vadd.f32 %v2985, %v3045
    %v3057 = vadd.f32 %v2986, %v3045
    %v3058 = vadd.f32 %v2987, %v3045
    %v3059 = vadd.f32 %v2988, %v3045
    %v3060 = vadd.f32 %v2989, %v3045
    %v3061 = vadd.f32 %v2990, %v3045
    %v3062 = vadd.f32 %v2991, %v3045
    %v3063 = vadd.f32 %v2992, %v3045
    %v3064 = vadd.f32 %v2993, %v3045
    %v3065 = vadd.f32 %v2994, %v3045
    %v3066 = vadd.f32 %v2995, %v3045
    %v3067 = vadd.f32 %v2996, %v3045
    %v3068 = vadd.f32 %v2997, %v3045
    %v3069 = vadd.f32 %v2998, %v3045
    %v3070 = vadd.f32 %v2999, %v3045
    %v3071 = vadd.f32 %v3000, %v3045
    %v3072 = vadd.f32 %v3001, %v3045
    %v3073 = vadd.f32 %v3002, %v3045
    %v3074 = vadd.f32 %v3003, %v3045
    %v3075 = vadd.f32 %v3004, %v3045
    %v3076 = vadd.f32 %v3005, %v3045
    %v3077 = vadd.f32 %v3006, %v3045
    %v3078 = vadd.f32 %v3007, %v3045
    %v3079 = vadd.f32 %v3008, %v3045
    %v3080 = vadd.f32 %v3009, %v3045
    %v3081 = vadd.f32 %v3010, %v3045
    %v3082 = vadd.f32 %v3011, %v3045
    %v3083 = vadd.f32 %v3012, %v3045
    %v3084 = vadd.f32 %v3013, %v3045
    %v3085 = vadd.f32 %v3014, %v3045
    %v3086 = vadd.f32 %v3015, %v3045
    %v3087 = vadd.f32 %v3016, %v3045
    %v3088 = vadd.f32 %v3017, %v3045
    %v3089 = vadd.f32 %v3018, %v3045
    %v3090 = vadd.f32 %v3019, %v3045
    %v3091 = vadd.f32 %v3020, %v3045
    %v3092 = vadd.f32 %v3021, %v3045
    %v3093 = vadd.f32 %v3022, %v3045
    %v3094 = vadd.f32 %v3023, %v3045
    %v3095 = vadd.f32 %v3024, %v3045
    %v3096 = vadd.f32 %v3025, %v3045
    %v3097 = vadd.f32 %v3026, %v3045
    %v3098 = vadd.f32 %v3027, %v3045
    %v3099 = vadd.f32 %v3028, %v3045
    %v3100 = vadd.f32 %v3029, %v3045
    %v3101 = vadd.f32 %v3030, %v3045
    %v3102 = vadd.f32 %v3031, %v3045
    %v3103 = vadd.f32 %v3032, %v3045
    %v3104 = vadd.f32 %v3033, %v3045
    %v3105 = vadd.f32 %v3034, %v3045
    %v3106 = vadd.f32 %v3035, %v3045
    %v3107 = vadd.f32 %v3036, %v3045
    %v3108 = vadd.f32 %v3037, %v3045
    %v3109 = vadd.f32 %v3038, %v3045
    %v3110 = vadd.f32 %v3039, %v3045
    %v3111 = vsub.f32 0.0, %v3047
    %v3112 = vsub.f32 0.0, %v3048
    %v3113 = vsub.f32 0.0, %v3049
    %v3114 = vsub.f32 0.0, %v3050
    %v3115 = vsub.f32 0.0, %v3051
    %v3116 = vsub.f32 0.0, %v3052
    %v3117 = vsub.f32 0.0, %v3053
    %v3118 = vsub.f32 0.0, %v3054
    %v3119 = vsub.f32 0.0, %v3055
    %v3120 = vsub.f32 0.0, %v3056
    %v3121 = vsub.f32 0.0, %v3057
    %v3122 = vsub.f32 0.0, %v3058
    %v3123 = vsub.f32 0.0, %v3059
    %v3124 = vsub.f32 0.0, %v3060
    %v3125 = vsub.f32 0.0, %v3061
    %v3126 = vsub.f32 0.0, %v3062
    %v3127 = vsub.f32 0.0, %v3063
    %v3128 = vsub.f32 0.0, %v3064
    %v3129 = vsub.f32 0.0, %v3065
    %v3130 = vsub.f32 0.0, %v3066
    %v3131 = vsub.f32 0.0, %v3067
    %v3132 = vsub.f32 0.0, %v3068
    %v3133 = vsub.f32 0.0, %v3069
    %v3134 = vsub.f32 0.0, %v3070
    %v3135 = vsub.f32 0.0, %v3071
    %v3136 = vsub.f32 0.0, %v3072
    %v3137 = vsub.f32 0.0, %v3073
    %v3138 = vsub.f32 0.0, %v3074
    %v3139 = vsub.f32 0.0, %v3075
    %v3140 = vsub.f32 0.0, %v3076
    %v3141 = vsub.f32 0.0, %v3077
    %v3142 = vsub.f32 0.0, %v3078
    %v3143 = vsub.f32 0.0, %v3079
    %v3144 = vsub.f32 0.0, %v3080
    %v3145 = vsub.f32 0.0, %v3081
    %v3146 = vsub.f32 0.0, %v3082
    %v3147 = vsub.f32 0.0, %v3083
    %v3148 = vsub.f32 0.0, %v3084
    %v3149 = vsub.f32 0.0, %v3085
    %v3150 = vsub.f32 0.0, %v3086
    %v3151 = vsub.f32 0.0, %v3087
    %v3152 = vsub.f32 0.0, %v3088
    %v3153 = vsub.f32 0.0, %v3089
    %v3154 = vsub.f32 0.0, %v3090
    %v3155 = vsub.f32 0.0, %v3091
    %v3156 = vsub.f32 0.0, %v3092
    %v3157 = vsub.f32 0.0, %v3093
    %v3158 = vsub.f32 0.0, %v3094
    %v3159 = vsub.f32 0.0, %v3095
    %v3160 = vsub.f32 0.0, %v3096
    %v3161 = vsub.f32 0.0, %v3097
    %v3162 = vsub.f32 0.0, %v3098
    %v3163 = vsub.f32 0.0, %v3099
    %v3164 = vsub.f32 0.0, %v3100
    %v3165 = vsub.f32 0.0, %v3101
    %v3166 = vsub.f32 0.0, %v3102
    %v3167 = vsub.f32 0.0, %v3103
    %v3168 = vsub.f32 0.0, %v3104
    %v3169 = vsub.f32 0.0, %v3105
    %v3170 = vsub.f32 0.0, %v3106
    %v3171 = vsub.f32 0.0, %v3107
    %v3172 = vsub.f32 0.0, %v3108
    %v3173 = vsub.f32 0.0, %v3109
    %v3174 = vsub.f32 0.0, %v3110
    %v3175 = vmul.f32 %v3111, 1.442695
    %v3176 = vpow.pop %v3175
    %v3177 = vmul.f32 %v3112, 1.442695
    %v3178 = vpow.pop %v3177
    %v3179 = vmul.f32 %v3113, 1.442695
    %v3180 = vpow.pop %v3179
    %v3181 = vmul.f32 %v3114, 1.442695
    %v3182 = vpow.pop %v3181
    %v3183 = vmul.f32 %v3115, 1.442695
    %v3184 = vpow.pop %v3183
    %v3185 = vmul.f32 %v3116, 1.442695
    %v3186 = vpow.pop %v3185
    %v3187 = vmul.f32 %v3117, 1.442695
    %v3188 = vpow.pop %v3187
    %v3189 = vmul.f32 %v3118, 1.442695
    %v3190 = vpow.pop %v3189
    %v3191 = vmul.f32 %v3119, 1.442695
    %v3192 = vpow.pop %v3191
    %v3193 = vmul.f32 %v3120, 1.442695
    %v3194 = vpow.pop %v3193
    %v3195 = vmul.f32 %v3121, 1.442695
    %v3196 = vpow.pop %v3195
    %v3197 = vmul.f32 %v3122, 1.442695
    %v3198 = vpow.pop %v3197
    %v3199 = vmul.f32 %v3123, 1.442695
    %v3200 = vpow.pop %v3199
    %v3201 = vmul.f32 %v3124, 1.442695
    %v3202 = vpow.pop %v3201
    %v3203 = vmul.f32 %v3125, 1.442695
    %v3204 = vpow.pop %v3203
    %v3205 = vmul.f32 %v3126, 1.442695
    %v3206 = vpow.pop %v3205
    %v3207 = vmul.f32 %v3127, 1.442695
    %v3208 = vpow.pop %v3207
    %v3209 = vmul.f32 %v3128, 1.442695
    %v3210 = vpow.pop %v3209
    %v3211 = vmul.f32 %v3129, 1.442695
    %v3212 = vpow.pop %v3211
    %v3213 = vmul.f32 %v3130, 1.442695
    %v3214 = vpow.pop %v3213
    %v3215 = vmul.f32 %v3131, 1.442695
    %v3216 = vpow.pop %v3215
    %v3217 = vmul.f32 %v3132, 1.442695
    %v3218 = vpow.pop %v3217
    %v3219 = vmul.f32 %v3133, 1.442695
    %v3220 = vpow.pop %v3219
    %v3221 = vmul.f32 %v3134, 1.442695
    %v3222 = vpow.pop %v3221
    %v3223 = vmul.f32 %v3135, 1.442695
    %v3224 = vpow.pop %v3223
    %v3225 = vmul.f32 %v3136, 1.442695
    %v3226 = vpow.pop %v3225
    %v3227 = vmul.f32 %v3137, 1.442695
    %v3228 = vpow.pop %v3227
    %v3229 = vmul.f32 %v3138, 1.442695
    %v3230 = vpow.pop %v3229
    %v3231 = vmul.f32 %v3139, 1.442695
    %v3232 = vpow.pop %v3231
    %v3233 = vmul.f32 %v3140, 1.442695
    %v3234 = vpow.pop %v3233
    %v3235 = vmul.f32 %v3141, 1.442695
    %v3236 = vpow.pop %v3235
    %v3237 = vmul.f32 %v3142, 1.442695
    %v3238 = vpow.pop %v3237
    %v3239 = vmul.f32 %v3143, 1.442695
    %v3240 = vpow.pop %v3239
    %v3241 = vmul.f32 %v3144, 1.442695
    %v3242 = vpow.pop %v3241
    %v3243 = vmul.f32 %v3145, 1.442695
    %v3244 = vpow.pop %v3243
    %v3245 = vmul.f32 %v3146, 1.442695
    %v3246 = vpow.pop %v3245
    %v3247 = vmul.f32 %v3147, 1.442695
    %v3248 = vpow.pop %v3247
    %v3249 = vmul.f32 %v3148, 1.442695
    %v3250 = vpow.pop %v3249
    %v3251 = vmul.f32 %v3149, 1.442695
    %v3252 = vpow.pop %v3251
    %v3253 = vmul.f32 %v3150, 1.442695
    %v3254 = vpow.pop %v3253
    %v3255 = vmul.f32 %v3151, 1.442695
    %v3256 = vpow.pop %v3255
    %v3257 = vmul.f32 %v3152, 1.442695
    %v3258 = vpow.pop %v3257
    %v3259 = vmul.f32 %v3153, 1.442695
    %v3260 = vpow.pop %v3259
    %v3261 = vmul.f32 %v3154, 1.442695
    %v3262 = vpow.pop %v3261
    %v3263 = vmul.f32 %v3155, 1.442695
    %v3264 = vpow.pop %v3263
    %v3265 = vmul.f32 %v3156, 1.442695
    %v3266 = vpow.pop %v3265
    %v3267 = vmul.f32 %v3157, 1.442695
    %v3268 = vpow.pop %v3267
    %v3269 = vmul.f32 %v3158, 1.442695
    %v3270 = vpow.pop %v3269
    %v3271 = vmul.f32 %v3159, 1.442695
    %v3272 = vpow.pop %v3271
    %v3273 = vmul.f32 %v3160, 1.442695
    %v3274 = vpow.pop %v3273
    %v3275 = vmul.f32 %v3161, 1.442695
    %v3276 = vpow.pop %v3275
    %v3277 = vmul.f32 %v3162, 1.442695
    %v3278 = vpow.pop %v3277
    %v3279 = vmul.f32 %v3163, 1.442695
    %v3280 = vpow.pop %v3279
    %v3281 = vmul.f32 %v3164, 1.442695
    %v3282 = vpow.pop %v3281
    %v3283 = vmul.f32 %v3165, 1.442695
    %v3284 = vpow.pop %v3283
    %v3285 = vmul.f32 %v3166, 1.442695
    %v3286 = vpow.pop %v3285
    %v3287 = vmul.f32 %v3167, 1.442695
    %v3288 = vpow.pop %v3287
    %v3289 = vmul.f32 %v3168, 1.442695
    %v3290 = vpow.pop %v3289
    %v3291 = vmul.f32 %v3169, 1.442695
    %v3292 = vpow.pop %v3291
    %v3293 = vmul.f32 %v3170, 1.442695
    %v3294 = vpow.pop %v3293
    %v3295 = vmul.f32 %v3171, 1.442695
    %v3296 = vpow.pop %v3295
    %v3297 = vmul.f32 %v3172, 1.442695
    %v3298 = vpow.pop %v3297
    %v3299 = vmul.f32 %v3173, 1.442695
    %v3300 = vpow.pop %v3299
    %v3301 = vmul.f32 %v3174, 1.442695
    %v3302 = vpow.pop %v3301
    %v3303 = vadd.f32 %v3176, 1.0
    %v3304 = vadd.f32 %v3178, 1.0
    %v3305 = vadd.f32 %v3180, 1.0
    %v3306 = vadd.f32 %v3182, 1.0
    %v3307 = vadd.f32 %v3184, 1.0
    %v3308 = vadd.f32 %v3186, 1.0
    %v3309 = vadd.f32 %v3188, 1.0
    %v3310 = vadd.f32 %v3190, 1.0
    %v3311 = vadd.f32 %v3192, 1.0
    %v3312 = vadd.f32 %v3194, 1.0
    %v3313 = vadd.f32 %v3196, 1.0
    %v3314 = vadd.f32 %v3198, 1.0
    %v3315 = vadd.f32 %v3200, 1.0
    %v3316 = vadd.f32 %v3202, 1.0
    %v3317 = vadd.f32 %v3204, 1.0
    %v3318 = vadd.f32 %v3206, 1.0
    %v3319 = vadd.f32 %v3208, 1.0
    %v3320 = vadd.f32 %v3210, 1.0
    %v3321 = vadd.f32 %v3212, 1.0
    %v3322 = vadd.f32 %v3214, 1.0
    %v3323 = vadd.f32 %v3216, 1.0
    %v3324 = vadd.f32 %v3218, 1.0
    %v3325 = vadd.f32 %v3220, 1.0
    %v3326 = vadd.f32 %v3222, 1.0
    %v3327 = vadd.f32 %v3224, 1.0
    %v3328 = vadd.f32 %v3226, 1.0
    %v3329 = vadd.f32 %v3228, 1.0
    %v3330 = vadd.f32 %v3230, 1.0
    %v3331 = vadd.f32 %v3232, 1.0
    %v3332 = vadd.f32 %v3234, 1.0
    %v3333 = vadd.f32 %v3236, 1.0
    %v3334 = vadd.f32 %v3238, 1.0
    %v3335 = vadd.f32 %v3240, 1.0
    %v3336 = vadd.f32 %v3242, 1.0
    %v3337 = vadd.f32 %v3244, 1.0
    %v3338 = vadd.f32 %v3246, 1.0
    %v3339 = vadd.f32 %v3248, 1.0
    %v3340 = vadd.f32 %v3250, 1.0
    %v3341 = vadd.f32 %v3252, 1.0
    %v3342 = vadd.f32 %v3254, 1.0
    %v3343 = vadd.f32 %v3256, 1.0
    %v3344 = vadd.f32 %v3258, 1.0
    %v3345 = vadd.f32 %v3260, 1.0
    %v3346 = vadd.f32 %v3262, 1.0
    %v3347 = vadd.f32 %v3264, 1.0
    %v3348 = vadd.f32 %v3266, 1.0
    %v3349 = vadd.f32 %v3268, 1.0
    %v3350 = vadd.f32 %v3270, 1.0
    %v3351 = vadd.f32 %v3272, 1.0
    %v3352 = vadd.f32 %v3274, 1.0
    %v3353 = vadd.f32 %v3276, 1.0
    %v3354 = vadd.f32 %v3278, 1.0
    %v3355 = vadd.f32 %v3280, 1.0
    %v3356 = vadd.f32 %v3282, 1.0
    %v3357 = vadd.f32 %v3284, 1.0
    %v3358 = vadd.f32 %v3286, 1.0
    %v3359 = vadd.f32 %v3288, 1.0
    %v3360 = vadd.f32 %v3290, 1.0
    %v3361 = vadd.f32 %v3292, 1.0
    %v3362 = vadd.f32 %v3294, 1.0
    %v3363 = vadd.f32 %v3296, 1.0
    %v3364 = vadd.f32 %v3298, 1.0
    %v3365 = vadd.f32 %v3300, 1.0
    %v3366 = vadd.f32 %v3302, 1.0
    %v3367 = vrcp.pop %v3303
    %v3368 = vrcp.pop %v3304
    %v3369 = vrcp.pop %v3305
    %v3370 = vrcp.pop %v3306
    %v3371 = vrcp.pop %v3307
    %v3372 = vrcp.pop %v3308
    %v3373 = vrcp.pop %v3309
    %v3374 = vrcp.pop %v3310
    %v3375 = vrcp.pop %v3311
    %v3376 = vrcp.pop %v3312
    %v3377 = vrcp.pop %v3313
    %v3378 = vrcp.pop %v3314
    %v3379 = vrcp.pop %v3315
    %v3380 = vrcp.pop %v3316
    %v3381 = vrcp.pop %v3317
    %v3382 = vrcp.pop %v3318
    %v3383 = vrcp.pop %v3319
    %v3384 = vrcp.pop %v3320
    %v3385 = vrcp.pop %v3321
    %v3386 = vrcp.pop %v3322
    %v3387 = vrcp.pop %v3323
    %v3388 = vrcp.pop %v3324
    %v3389 = vrcp.pop %v3325
    %v3390 = vrcp.pop %v3326
    %v3391 = vrcp.pop %v3327
    %v3392 = vrcp.pop %v3328
    %v3393 = vrcp.pop %v3329
    %v3394 = vrcp.pop %v3330
    %v3395 = vrcp.pop %v3331
    %v3396 = vrcp.pop %v3332
    %v3397 = vrcp.pop %v3333
    %v3398 = vrcp.pop %v3334
    %v3399 = vrcp.pop %v3335
    %v3400 = vrcp.pop %v3336
    %v3401 = vrcp.pop %v3337
    %v3402 = vrcp.pop %v3338
    %v3403 = vrcp.pop %v3339
    %v3404 = vrcp.pop %v3340
    %v3405 = vrcp.pop %v3341
    %v3406 = vrcp.pop %v3342
    %v3407 = vrcp.pop %v3343
    %v3408 = vrcp.pop %v3344
    %v3409 = vrcp.pop %v3345
    %v3410 = vrcp.pop %v3346
    %v3411 = vrcp.pop %v3347
    %v3412 = vrcp.pop %v3348
    %v3413 = vrcp.pop %v3349
    %v3414 = vrcp.pop %v3350
    %v3415 = vrcp.pop %v3351
    %v3416 = vrcp.pop %v3352
    %v3417 = vrcp.pop %v3353
    %v3418 = vrcp.pop %v3354
    %v3419 = vrcp.pop %v3355
    %v3420 = vrcp.pop %v3356
    %v3421 = vrcp.pop %v3357
    %v3422 = vrcp.pop %v3358
    %v3423 = vrcp.pop %v3359
    %v3424 = vrcp.pop %v3360
    %v3425 = vrcp.pop %v3361
    %v3426 = vrcp.pop %v3362
    %v3427 = vrcp.pop %v3363
    %v3428 = vrcp.pop %v3364
    %v3429 = vrcp.pop %v3365
    %v3430 = vrcp.pop %v3366
    %v3431 = vmul.f32 %v3047, %v3367
    %v3432 = vmul.f32 %v3048, %v3368
    %v3433 = vmul.f32 %v3049, %v3369
    %v3434 = vmul.f32 %v3050, %v3370
    %v3435 = vmul.f32 %v3051, %v3371
    %v3436 = vmul.f32 %v3052, %v3372
    %v3437 = vmul.f32 %v3053, %v3373
    %v3438 = vmul.f32 %v3054, %v3374
    %v3439 = vmul.f32 %v3055, %v3375
    %v3440 = vmul.f32 %v3056, %v3376
    %v3441 = vmul.f32 %v3057, %v3377
    %v3442 = vmul.f32 %v3058, %v3378
    %v3443 = vmul.f32 %v3059, %v3379
    %v3444 = vmul.f32 %v3060, %v3380
    %v3445 = vmul.f32 %v3061, %v3381
    %v3446 = vmul.f32 %v3062, %v3382
    %v3447 = vmul.f32 %v3063, %v3383
    %v3448 = vmul.f32 %v3064, %v3384
    %v3449 = vmul.f32 %v3065, %v3385
    %v3450 = vmul.f32 %v3066, %v3386
    %v3451 = vmul.f32 %v3067, %v3387
    %v3452 = vmul.f32 %v3068, %v3388
    %v3453 = vmul.f32 %v3069, %v3389
    %v3454 = vmul.f32 %v3070, %v3390
    %v3455 = vmul.f32 %v3071, %v3391
    %v3456 = vmul.f32 %v3072, %v3392
    %v3457 = vmul.f32 %v3073, %v3393
    %v3458 = vmul.f32 %v3074, %v3394
    %v3459 = vmul.f32 %v3075, %v3395
    %v3460 = vmul.f32 %v3076, %v3396
    %v3461 = vmul.f32 %v3077, %v3397
    %v3462 = vmul.f32 %v3078, %v3398
    %v3463 = vmul.f32 %v3079, %v3399
    %v3464 = vmul.f32 %v3080, %v3400
    %v3465 = vmul.f32 %v3081, %v3401
    %v3466 = vmul.f32 %v3082, %v3402
    %v3467 = vmul.f32 %v3083, %v3403
    %v3468 = vmul.f32 %v3084, %v3404
    %v3469 = vmul.f32 %v3085, %v3405
    %v3470 = vmul.f32 %v3086, %v3406
    %v3471 = vmul.f32 %v3087, %v3407
    %v3472 = vmul.f32 %v3088, %v3408
    %v3473 = vmul.f32 %v3089, %v3409
    %v3474 = vmul.f32 %v3090, %v3410
    %v3475 = vmul.f32 %v3091, %v3411
    %v3476 = vmul.f32 %v3092, %v3412
    %v3477 = vmul.f32 %v3093, %v3413
    %v3478 = vmul.f32 %v3094, %v3414
    %v3479 = vmul.f32 %v3095, %v3415
    %v3480 = vmul.f32 %v3096, %v3416
    %v3481 = vmul.f32 %v3097, %v3417
    %v3482 = vmul.f32 %v3098, %v3418
    %v3483 = vmul.f32 %v3099, %v3419
    %v3484 = vmul.f32 %v3100, %v3420
    %v3485 = vmul.f32 %v3101, %v3421
    %v3486 = vmul.f32 %v3102, %v3422
    %v3487 = vmul.f32 %v3103, %v3423
    %v3488 = vmul.f32 %v3104, %v3424
    %v3489 = vmul.f32 %v3105, %v3425
    %v3490 = vmul.f32 %v3106, %v3426
    %v3491 = vmul.f32 %v3107, %v3427
    %v3492 = vmul.f32 %v3108, %v3428
    %v3493 = vmul.f32 %v3109, %v3429
    %v3494 = vmul.f32 %v3110, %v3430
    %v3495 = vpack.c.bf16 %v3432, %v3431
    %v3496 = vpack.c.bf16 %v3434, %v3433
    %v3497 = vpack.c.bf16 %v3436, %v3435
    %v3498 = vpack.c.bf16 %v3438, %v3437
    %v3499 = vpack.c.bf16 %v3440, %v3439
    %v3500 = vpack.c.bf16 %v3442, %v3441
    %v3501 = vpack.c.bf16 %v3444, %v3443
    %v3502 = vpack.c.bf16 %v3446, %v3445
    %v3503 = vpack.c.bf16 %v3448, %v3447
    %v3504 = vpack.c.bf16 %v3450, %v3449
    %v3505 = vpack.c.bf16 %v3452, %v3451
    %v3506 = vpack.c.bf16 %v3454, %v3453
    %v3507 = vpack.c.bf16 %v3456, %v3455
    %v3508 = vpack.c.bf16 %v3458, %v3457
    %v3509 = vpack.c.bf16 %v3460, %v3459
    %v3510 = vpack.c.bf16 %v3462, %v3461
    %v3511 = vpack.c.bf16 %v3464, %v3463
    %v3512 = vpack.c.bf16 %v3466, %v3465
    %v3513 = vpack.c.bf16 %v3468, %v3467
    %v3514 = vpack.c.bf16 %v3470, %v3469
    %v3515 = vpack.c.bf16 %v3472, %v3471
    %v3516 = vpack.c.bf16 %v3474, %v3473
    %v3517 = vpack.c.bf16 %v3476, %v3475
    %v3518 = vpack.c.bf16 %v3478, %v3477
    %v3519 = vpack.c.bf16 %v3480, %v3479
    %v3520 = vpack.c.bf16 %v3482, %v3481
    %v3521 = vpack.c.bf16 %v3484, %v3483
    %v3522 = vpack.c.bf16 %v3486, %v3485
    %v3523 = vpack.c.bf16 %v3488, %v3487
    %v3524 = vpack.c.bf16 %v3490, %v3489
    %v3525 = vpack.c.bf16 %v3492, %v3491
    %v3526 = vpack.c.bf16 %v3494, %v3493
    %v3527 = vld [vmem:[#allocation9] sm:$0xf]
    %v3528 = vld [vmem:[#allocation9 + $0x4] sm:$0xf]
    %v3529 = vld [vmem:[#allocation9 + $0x8] sm:$0xf]
    %v3530 = vld [vmem:[#allocation9 + $0xc] sm:$0xf]
    %v3531 = vld [vmem:[#allocation9 + $0x10] sm:$0xf]
    %v3532 = vld [vmem:[#allocation9 + $0x14] sm:$0xf]
    %v3533 = vld [vmem:[#allocation9 + $0x18] sm:$0xf]
    %v3534 = vld [vmem:[#allocation9 + $0x1c] sm:$0xf]
    %v3535 = vld [vmem:[#allocation9 + $0x20] sm:$0xf]
    %v3536 = vld [vmem:[#allocation9 + $0x24] sm:$0xf]
    %v3537 = vld [vmem:[#allocation9 + $0x28] sm:$0xf]
    %v3538 = vld [vmem:[#allocation9 + $0x2c] sm:$0xf]
    %v3539 = vld [vmem:[#allocation9 + $0x30] sm:$0xf]
    %v3540 = vld [vmem:[#allocation9 + $0x34] sm:$0xf]
    %v3541 = vld [vmem:[#allocation9 + $0x38] sm:$0xf]
    %v3542 = vld [vmem:[#allocation9 + $0x3c] sm:$0xf]
    %v3543 = vld [vmem:[%s6] sm:$0x1]
    %v3545 = vlaneseq
    %v3546 = vshrl.u32 %v3545, 7
    %v3547 = vsub.s32 0, %v3546
    %v3548 = vrot.slane %v3543, %v3547
    %v3566 = vunpack.c.l.b16 %v3527
    %v3567 = vunpack.c.l.b16 %v3528
    %v3568 = vunpack.c.l.b16 %v3529
    %v3569 = vunpack.c.l.b16 %v3530
    %v3570 = vunpack.c.l.b16 %v3531
    %v3571 = vunpack.c.l.b16 %v3532
    %v3572 = vunpack.c.l.b16 %v3533
    %v3573 = vunpack.c.l.b16 %v3534
    %v3574 = vunpack.c.l.b16 %v3535
    %v3575 = vunpack.c.l.b16 %v3536
    %v3576 = vunpack.c.l.b16 %v3537
    %v3577 = vunpack.c.l.b16 %v3538
    %v3578 = vunpack.c.l.b16 %v3539
    %v3579 = vunpack.c.l.b16 %v3540
    %v3580 = vunpack.c.l.b16 %v3541
    %v3581 = vunpack.c.l.b16 %v3542
    %v3582 = vpack.c.b16 %v3567, %v3566
    %v3583 = vpack.c.b16 %v3569, %v3568
    %v3584 = vpack.c.b16 %v3571, %v3570
    %v3585 = vpack.c.b16 %v3573, %v3572
    %v3586 = vpack.c.b16 %v3575, %v3574
    %v3587 = vpack.c.b16 %v3577, %v3576
    %v3588 = vpack.c.b16 %v3579, %v3578
    %v3589 = vpack.c.b16 %v3581, %v3580
    %3598 = vmatprep.subr.bf16.mxu0 0
    %3599 = vmatpush1.bf16.msra.mxu0 %v3582
    %3600 = vmatprep.subr.bf16.mxu0 0
    %3601 = vmatpush1.bf16.msra.mxu0 %v3583
    %3602 = vmatprep.subr.bf16.mxu0 0
    %3603 = vmatpush1.bf16.msra.mxu0 %v3584
    %3604 = vmatprep.subr.bf16.mxu0 0
    %3605 = vmatpush1.bf16.msra.mxu0 %v3585
    %3606 = vmatprep.subr.bf16.mxu0 0
    %3607 = vmatpush1.bf16.msra.mxu0 %v3586
    %3608 = vmatprep.subr.bf16.mxu0 0
    %3609 = vmatpush1.bf16.msra.mxu0 %v3587
    %3610 = vmatprep.subr.bf16.mxu0 0
    %3611 = vmatpush1.bf16.msra.mxu0 %v3588
    %3612 = vmatprep.subr.bf16.mxu0 0
    %3613 = vmatpush1.bf16.msra.mxu0 %v3589
    %3614 = vmatprep.subr.bf16.mxu0 0
    %3615 = vmatpush1.bf16.msra.mxu0 0
    %3616 = vmatprep.subr.bf16.mxu0 0
    %3617 = vmatpush1.bf16.msra.mxu0 0
    %3618 = vmatprep.subr.bf16.mxu0 0
    %3619 = vmatpush1.bf16.msra.mxu0 0
    %3620 = vmatprep.subr.bf16.mxu0 0
    %3621 = vmatpush1.bf16.msra.mxu0 0
    %3622 = vmatprep.subr.bf16.mxu0 0
    %3623 = vmatpush1.bf16.msra.mxu0 0
    %3624 = vmatprep.subr.bf16.mxu0 0
    %3625 = vmatpush1.bf16.msra.mxu0 0
    %3626 = vmatprep.subr.bf16.mxu0 0
    %3627 = vmatpush1.bf16.msra.mxu0 0
    %3628 = vmatprep.subr.bf16.mxu0 0
    %3629 = vmatpush1.bf16.msra.mxu0 0
    %3630 = vmatprep.mubr.bf16.mxu0 0
    %3631 = vmatmul.mubr.bf16.gmra.mrb[0].mxu0 %v3495
    %v3632 = vpop.f32.mrb[0].mxu0
    %v3633 = vadd.f32 %v3548, %v3632
    %v3634 = vpop.f32.mrb[0].mxu0
    %v3635 = vpop.f32.mrb[0].mxu0
    %v3636 = vadd.f32 %v3548, %v3635
    %v3637 = vpop.f32.mrb[0].mxu0
    %3638 = vmatprep.mubr.bf16.mxu0 0
    %3639 = vmatmul.mubr.bf16.gmra.mrb[0].mxu0 %v3496
    %v3640 = vpop.f32.mrb[0].mxu0
    %v3641 = vadd.f32 %v3548, %v3640
    %v3642 = vpop.f32.mrb[0].mxu0
    %v3643 = vpop.f32.mrb[0].mxu0
    %v3644 = vadd.f32 %v3548, %v3643
    %v3645 = vpop.f32.mrb[0].mxu0
    %3646 = vmatprep.mubr.bf16.mxu0 0
    %3647 = vmatmul.mubr.bf16.gmra.mrb[0].mxu0 %v3497
    %v3648 = vpop.f32.mrb[0].mxu0
    %v3649 = vadd.f32 %v3548, %v3648
    %v3650 = vpop.f32.mrb[0].mxu0
    %v3651 = vpop.f32.mrb[0].mxu0
    %v3652 = vadd.f32 %v3548, %v3651
    %v3653 = vpop.f32.mrb[0].mxu0
    %3654 = vmatprep.mubr.bf16.mxu0 0
    %3655 = vmatmul.mubr.bf16.gmra.mrb[0].mxu0 %v3498
    %v3656 = vpop.f32.mrb[0].mxu0
    %v3657 = vadd.f32 %v3548, %v3656
    %v3658 = vpop.f32.mrb[0].mxu0
    %v3659 = vpop.f32.mrb[0].mxu0
    %v3660 = vadd.f32 %v3548, %v3659
    %v3661 = vpop.f32.mrb[0].mxu0
    %3662 = vmatprep.mubr.bf16.mxu0 0
    %3663 = vmatmul.mubr.bf16.gmra.mrb[0].mxu0 %v3499
    %v3664 = vpop.f32.mrb[0].mxu0
    %v3665 = vadd.f32 %v3548, %v3664
    %v3666 = vpop.f32.mrb[0].mxu0
    %v3667 = vpop.f32.mrb[0].mxu0
    %v3668 = vadd.f32 %v3548, %v3667
    %v3669 = vpop.f32.mrb[0].mxu0
    %3670 = vmatprep.mubr.bf16.mxu0 0
    %3671 = vmatmul.mubr.bf16.gmra.mrb[0].mxu0 %v3500
    %v3672 = vpop.f32.mrb[0].mxu0
    %v3673 = vadd.f32 %v3548, %v3672
    %v3674 = vpop.f32.mrb[0].mxu0
    %v3675 = vpop.f32.mrb[0].mxu0
    %v3676 = vadd.f32 %v3548, %v3675
    %v3677 = vpop.f32.mrb[0].mxu0
    %3678 = vmatprep.mubr.bf16.mxu0 0
    %3679 = vmatmul.mubr.bf16.gmra.mrb[0].mxu0 %v3501
    %v3680 = vpop.f32.mrb[0].mxu0
    %v3681 = vadd.f32 %v3548, %v3680
    %v3682 = vpop.f32.mrb[0].mxu0
    %v3683 = vpop.f32.mrb[0].mxu0
    %v3684 = vadd.f32 %v3548, %v3683
    %v3685 = vpop.f32.mrb[0].mxu0
    %3686 = vmatprep.mubr.bf16.mxu0 0
    %3687 = vmatmul.mubr.bf16.gmra.mrb[0].mxu0 %v3502
    %v3688 = vpop.f32.mrb[0].mxu0
    %v3689 = vadd.f32 %v3548, %v3688
    %v3690 = vpop.f32.mrb[0].mxu0
    %v3691 = vpop.f32.mrb[0].mxu0
    %v3692 = vadd.f32 %v3548, %v3691
    %v3693 = vpop.f32.mrb[0].mxu0
    %3694 = vmatprep.mubr.bf16.mxu0 0
    %3695 = vmatmul.mubr.bf16.gmra.mrb[0].mxu0 %v3503
    %v3696 = vpop.f32.mrb[0].mxu0
    %v3697 = vadd.f32 %v3548, %v3696
    %v3698 = vpop.f32.mrb[0].mxu0
    %v3699 = vpop.f32.mrb[0].mxu0
    %v3700 = vadd.f32 %v3548, %v3699
    %v3701 = vpop.f32.mrb[0].mxu0
    %3702 = vmatprep.mubr.bf16.mxu0 0
    %3703 = vmatmul.mubr.bf16.gmra.mrb[0].mxu0 %v3504
    %v3704 = vpop.f32.mrb[0].mxu0
    %v3705 = vadd.f32 %v3548, %v3704
    %v3706 = vpop.f32.mrb[0].mxu0
    %v3707 = vpop.f32.mrb[0].mxu0
    %v3708 = vadd.f32 %v3548, %v3707
    %v3709 = vpop.f32.mrb[0].mxu0
    %3710 = vmatprep.mubr.bf16.mxu0 0
    %3711 = vmatmul.mubr.bf16.gmra.mrb[0].mxu0 %v3505
    %v3712 = vpop.f32.mrb[0].mxu0
    %v3713 = vadd.f32 %v3548, %v3712
    %v3714 = vpop.f32.mrb[0].mxu0
    %v3715 = vpop.f32.mrb[0].mxu0
    %v3716 = vadd.f32 %v3548, %v3715
    %v3717 = vpop.f32.mrb[0].mxu0
    %3718 = vmatprep.mubr.bf16.mxu0 0
    %3719 = vmatmul.mubr.bf16.gmra.mrb[0].mxu0 %v3506
    %v3720 = vpop.f32.mrb[0].mxu0
    %v3721 = vadd.f32 %v3548, %v3720
    %v3722 = vpop.f32.mrb[0].mxu0
    %v3723 = vpop.f32.mrb[0].mxu0
    %v3724 = vadd.f32 %v3548, %v3723
    %v3725 = vpop.f32.mrb[0].mxu0
    %3726 = vmatprep.mubr.bf16.mxu0 0
    %3727 = vmatmul.mubr.bf16.gmra.mrb[0].mxu0 %v3507
    %v3728 = vpop.f32.mrb[0].mxu0
    %v3729 = vadd.f32 %v3548, %v3728
    %v3730 = vpop.f32.mrb[0].mxu0
    %v3731 = vpop.f32.mrb[0].mxu0
    %v3732 = vadd.f32 %v3548, %v3731
    %v3733 = vpop.f32.mrb[0].mxu0
    %3734 = vmatprep.mubr.bf16.mxu0 0
    %3735 = vmatmul.mubr.bf16.gmra.mrb[0].mxu0 %v3508
    %v3736 = vpop.f32.mrb[0].mxu0
    %v3737 = vadd.f32 %v3548, %v3736
    %v3738 = vpop.f32.mrb[0].mxu0
    %v3739 = vpop.f32.mrb[0].mxu0
    %v3740 = vadd.f32 %v3548, %v3739
    %v3741 = vpop.f32.mrb[0].mxu0
    %3742 = vmatprep.mubr.bf16.mxu0 0
    %3743 = vmatmul.mubr.bf16.gmra.mrb[0].mxu0 %v3509
    %v3744 = vpop.f32.mrb[0].mxu0
    %v3745 = vadd.f32 %v3548, %v3744
    %v3746 = vpop.f32.mrb[0].mxu0
    %v3747 = vpop.f32.mrb[0].mxu0
    %v3748 = vadd.f32 %v3548, %v3747
    %v3749 = vpop.f32.mrb[0].mxu0
    %3750 = vmatprep.mubr.bf16.mxu0 0
    %3751 = vmatmul.mubr.bf16.gmra.mrb[0].mxu0 %v3510
    %v3752 = vpop.f32.mrb[0].mxu0
    %v3753 = vadd.f32 %v3548, %v3752
    %v3754 = vpop.f32.mrb[0].mxu0
    %v3755 = vpop.f32.mrb[0].mxu0
    %v3756 = vadd.f32 %v3548, %v3755
    %v3757 = vpop.f32.mrb[0].mxu0
    %3758 = vmatprep.mubr.bf16.mxu0 0
    %3759 = vmatmul.mubr.bf16.gmra.mrb[0].mxu0 %v3511
    %v3760 = vpop.f32.mrb[0].mxu0
    %v3761 = vadd.f32 %v3548, %v3760
    %v3762 = vpop.f32.mrb[0].mxu0
    %v3763 = vpop.f32.mrb[0].mxu0
    %v3764 = vadd.f32 %v3548, %v3763
    %v3765 = vpop.f32.mrb[0].mxu0
    %3766 = vmatprep.mubr.bf16.mxu0 0
    %3767 = vmatmul.mubr.bf16.gmra.mrb[0].mxu0 %v3512
    %v3768 = vpop.f32.mrb[0].mxu0
    %v3769 = vadd.f32 %v3548, %v3768
    %v3770 = vpop.f32.mrb[0].mxu0
    %v3771 = vpop.f32.mrb[0].mxu0
    %v3772 = vadd.f32 %v3548, %v3771
    %v3773 = vpop.f32.mrb[0].mxu0
    %3774 = vmatprep.mubr.bf16.mxu0 0
    %3775 = vmatmul.mubr.bf16.gmra.mrb[0].mxu0 %v3513
    %v3776 = vpop.f32.mrb[0].mxu0
    %v3777 = vadd.f32 %v3548, %v3776
    %v3778 = vpop.f32.mrb[0].mxu0
    %v3779 = vpop.f32.mrb[0].mxu0
    %v3780 = vadd.f32 %v3548, %v3779
    %v3781 = vpop.f32.mrb[0].mxu0
    %3782 = vmatprep.mubr.bf16.mxu0 0
    %3783 = vmatmul.mubr.bf16.gmra.mrb[0].mxu0 %v3514
    %v3784 = vpop.f32.mrb[0].mxu0
    %v3785 = vadd.f32 %v3548, %v3784
    %v3786 = vpop.f32.mrb[0].mxu0
    %v3787 = vpop.f32.mrb[0].mxu0
    %v3788 = vadd.f32 %v3548, %v3787
    %v3789 = vpop.f32.mrb[0].mxu0
    %3790 = vmatprep.mubr.bf16.mxu0 0
    %3791 = vmatmul.mubr.bf16.gmra.mrb[0].mxu0 %v3515
    %v3792 = vpop.f32.mrb[0].mxu0
    %v3793 = vadd.f32 %v3548, %v3792
    %v3794 = vpop.f32.mrb[0].mxu0
    %v3795 = vpop.f32.mrb[0].mxu0
    %v3796 = vadd.f32 %v3548, %v3795
    %v3797 = vpop.f32.mrb[0].mxu0
    %3798 = vmatprep.mubr.bf16.mxu0 0
    %3799 = vmatmul.mubr.bf16.gmra.mrb[0].mxu0 %v3516
    %v3800 = vpop.f32.mrb[0].mxu0
    %v3801 = vadd.f32 %v3548, %v3800
    %v3802 = vpop.f32.mrb[0].mxu0
    %v3803 = vpop.f32.mrb[0].mxu0
    %v3804 = vadd.f32 %v3548, %v3803
    %v3805 = vpop.f32.mrb[0].mxu0
    %3806 = vmatprep.mubr.bf16.mxu0 0
    %3807 = vmatmul.mubr.bf16.gmra.mrb[0].mxu0 %v3517
    %v3808 = vpop.f32.mrb[0].mxu0
    %v3809 = vadd.f32 %v3548, %v3808
    %v3810 = vpop.f32.mrb[0].mxu0
    %v3811 = vpop.f32.mrb[0].mxu0
    %v3812 = vadd.f32 %v3548, %v3811
    %v3813 = vpop.f32.mrb[0].mxu0
    %3814 = vmatprep.mubr.bf16.mxu0 0
    %3815 = vmatmul.mubr.bf16.gmra.mrb[0].mxu0 %v3518
    %v3816 = vpop.f32.mrb[0].mxu0
    %v3817 = vadd.f32 %v3548, %v3816
    %v3818 = vpop.f32.mrb[0].mxu0
    %v3819 = vpop.f32.mrb[0].mxu0
    %v3820 = vadd.f32 %v3548, %v3819
    %v3821 = vpop.f32.mrb[0].mxu0
    %3822 = vmatprep.mubr.bf16.mxu0 0
    %3823 = vmatmul.mubr.bf16.gmra.mrb[0].mxu0 %v3519
    %v3824 = vpop.f32.mrb[0].mxu0
    %v3825 = vadd.f32 %v3548, %v3824
    %v3826 = vpop.f32.mrb[0].mxu0
    %v3827 = vpop.f32.mrb[0].mxu0
    %v3828 = vadd.f32 %v3548, %v3827
    %v3829 = vpop.f32.mrb[0].mxu0
    %3830 = vmatprep.mubr.bf16.mxu0 0
    %3831 = vmatmul.mubr.bf16.gmra.mrb[0].mxu0 %v3520
    %v3832 = vpop.f32.mrb[0].mxu0
    %v3833 = vadd.f32 %v3548, %v3832
    %v3834 = vpop.f32.mrb[0].mxu0
    %v3835 = vpop.f32.mrb[0].mxu0
    %v3836 = vadd.f32 %v3548, %v3835
    %v3837 = vpop.f32.mrb[0].mxu0
    %3838 = vmatprep.mubr.bf16.mxu0 0
    %3839 = vmatmul.mubr.bf16.gmra.mrb[0].mxu0 %v3521
    %v3840 = vpop.f32.mrb[0].mxu0
    %v3841 = vadd.f32 %v3548, %v3840
    %v3842 = vpop.f32.mrb[0].mxu0
    %v3843 = vpop.f32.mrb[0].mxu0
    %v3844 = vadd.f32 %v3548, %v3843
    %v3845 = vpop.f32.mrb[0].mxu0
    %3846 = vmatprep.mubr.bf16.mxu0 0
    %3847 = vmatmul.mubr.bf16.gmra.mrb[0].mxu0 %v3522
    %v3848 = vpop.f32.mrb[0].mxu0
    %v3849 = vadd.f32 %v3548, %v3848
    %v3850 = vpop.f32.mrb[0].mxu0
    %v3851 = vpop.f32.mrb[0].mxu0
    %v3852 = vadd.f32 %v3548, %v3851
    %v3853 = vpop.f32.mrb[0].mxu0
    %3854 = vmatprep.mubr.bf16.mxu0 0
    %3855 = vmatmul.mubr.bf16.gmra.mrb[0].mxu0 %v3523
    %v3856 = vpop.f32.mrb[0].mxu0
    %v3857 = vadd.f32 %v3548, %v3856
    %v3858 = vpop.f32.mrb[0].mxu0
    %v3859 = vpop.f32.mrb[0].mxu0
    %v3860 = vadd.f32 %v3548, %v3859
    %v3861 = vpop.f32.mrb[0].mxu0
    %3862 = vmatprep.mubr.bf16.mxu0 0
    %3863 = vmatmul.mubr.bf16.gmra.mrb[0].mxu0 %v3524
    %v3864 = vpop.f32.mrb[0].mxu0
    %v3865 = vadd.f32 %v3548, %v3864
    %v3866 = vpop.f32.mrb[0].mxu0
    %v3867 = vpop.f32.mrb[0].mxu0
    %v3868 = vadd.f32 %v3548, %v3867
    %v3869 = vpop.f32.mrb[0].mxu0
    %3870 = vmatprep.mubr.bf16.mxu0 0
    %3871 = vmatmul.mubr.bf16.gmra.mrb[0].mxu0 %v3525
    %v3872 = vpop.f32.mrb[0].mxu0
    %v3873 = vadd.f32 %v3548, %v3872
    %v3874 = vpop.f32.mrb[0].mxu0
    %v3875 = vpop.f32.mrb[0].mxu0
    %v3876 = vadd.f32 %v3548, %v3875
    %v3877 = vpop.f32.mrb[0].mxu0
    %3878 = vmatprep.mubr.bf16.mxu0 0
    %3879 = vmatmul.mubr.bf16.gmra.mrb[0].mxu0 %v3526
    %v3880 = vpop.f32.mrb[0].mxu0
    %v3881 = vadd.f32 %v3548, %v3880
    %v3882 = vpop.f32.mrb[0].mxu0
    %v3883 = vpop.f32.mrb[0].mxu0
    %v3884 = vadd.f32 %v3548, %v3883
    %v3885 = vpop.f32.mrb[0].mxu0
    %3886 = vdwg.mxu0
    %v3887 = vadd.f32 %v3633, %v3636
    %v3888 = vadd.f32 %v3887, %v3641
    %v3889 = vadd.f32 %v3888, %v3644
    %v3890 = vadd.f32 %v3889, %v3649
    %v3891 = vadd.f32 %v3890, %v3652
    %v3892 = vadd.f32 %v3891, %v3657
    %v3893 = vadd.f32 %v3892, %v3660
    %v3894 = vadd.f32 %v3893, %v3665
    %v3895 = vadd.f32 %v3894, %v3668
    %v3896 = vadd.f32 %v3895, %v3673
    %v3897 = vadd.f32 %v3896, %v3676
    %v3898 = vadd.f32 %v3897, %v3681
    %v3899 = vadd.f32 %v3898, %v3684
    %v3900 = vadd.f32 %v3899, %v3689
    %v3901 = vadd.f32 %v3900, %v3692
    %v3902 = vadd.f32 %v3901, %v3697
    %v3903 = vadd.f32 %v3902, %v3700
    %v3904 = vadd.f32 %v3903, %v3705
    %v3905 = vadd.f32 %v3904, %v3708
    %v3906 = vadd.f32 %v3905, %v3713
    %v3907 = vadd.f32 %v3906, %v3716
    %v3908 = vadd.f32 %v3907, %v3721
    %v3909 = vadd.f32 %v3908, %v3724
    %v3910 = vadd.f32 %v3909, %v3729
    %v3911 = vadd.f32 %v3910, %v3732
    %v3912 = vadd.f32 %v3911, %v3737
    %v3913 = vadd.f32 %v3912, %v3740
    %v3914 = vadd.f32 %v3913, %v3745
    %v3915 = vadd.f32 %v3914, %v3748
    %v3916 = vadd.f32 %v3915, %v3753
    %v3917 = vadd.f32 %v3916, %v3756
    %v3918 = vrot.slane %v3917, 4
    %v3919 = vadd.f32 %v3917, %v3918
    %v3920 = vrot.slane %v3919, 2
    %v3921 = vadd.f32 %v3919, %v3920
    %v3922 = vrot.slane %v3921, 1
    %v3923 = vadd.f32 %v3921, %v3922
    %v3924 = vadd.f32 %v3761, %v3764
    %v3925 = vadd.f32 %v3924, %v3769
    %v3926 = vadd.f32 %v3925, %v3772
    %v3927 = vadd.f32 %v3926, %v3777
    %v3928 = vadd.f32 %v3927, %v3780
    %v3929 = vadd.f32 %v3928, %v3785
    %v3930 = vadd.f32 %v3929, %v3788
    %v3931 = vadd.f32 %v3930, %v3793
    %v3932 = vadd.f32 %v3931, %v3796
    %v3933 = vadd.f32 %v3932, %v3801
    %v3934 = vadd.f32 %v3933, %v3804
    %v3935 = vadd.f32 %v3934, %v3809
    %v3936 = vadd.f32 %v3935, %v3812
    %v3937 = vadd.f32 %v3936, %v3817
    %v3938 = vadd.f32 %v3937, %v3820
    %v3939 = vadd.f32 %v3938, %v3825
    %v3940 = vadd.f32 %v3939, %v3828
    %v3941 = vadd.f32 %v3940, %v3833
    %v3942 = vadd.f32 %v3941, %v3836
    %v3943 = vadd.f32 %v3942, %v3841
    %v3944 = vadd.f32 %v3943, %v3844
    %v3945 = vadd.f32 %v3944, %v3849
    %v3946 = vadd.f32 %v3945, %v3852
    %v3947 = vadd.f32 %v3946, %v3857
    %v3948 = vadd.f32 %v3947, %v3860
    %v3949 = vadd.f32 %v3948, %v3865
    %v3950 = vadd.f32 %v3949, %v3868
    %v3951 = vadd.f32 %v3950, %v3873
    %v3952 = vadd.f32 %v3951, %v3876
    %v3953 = vadd.f32 %v3952, %v3881
    %v3954 = vadd.f32 %v3953, %v3884
    %v3955 = vrot.slane %v3954, 4
    %v3956 = vadd.f32 %v3954, %v3955
    %v3957 = vrot.slane %v3956, 2
    %v3958 = vadd.f32 %v3956, %v3957
    %v3959 = vrot.slane %v3958, 1
    %v3960 = vadd.f32 %v3958, %v3959
    %v3961 = vrcp.pop 256.0
    %v3962 = vmul.f32 %v3923, %v3961
    %v3963 = vmul.f32 %v3960, %v3961
    %v3964 = vpack.c.bf16 %v3962, %v3962
    %v3965 = vpack.c.bf16 %v3963, %v3963
    %v3966 = vld [vmem:[#allocation11] sm:$0xf]
    %v3967 = vld [vmem:[#allocation11 + $0x4] sm:$0xf]
    %v3968 = vld [vmem:[#allocation11 + $0x8] sm:$0xf]
    %v3969 = vld [vmem:[#allocation11 + $0xc] sm:$0xf]
    %v3970 = vld [vmem:[#allocation11 + $0x10] sm:$0xf]
    %v3971 = vld [vmem:[#allocation11 + $0x14] sm:$0xf]
    %v3972 = vld [vmem:[#allocation11 + $0x18] sm:$0xf]
    %v3973 = vld [vmem:[#allocation11 + $0x1c] sm:$0xf]
    %v3974 = vld [vmem:[#allocation11 + $0x20] sm:$0xf]
    %v3975 = vld [vmem:[#allocation11 + $0x24] sm:$0xf]
    %v3976 = vld [vmem:[#allocation11 + $0x28] sm:$0xf]
    %v3977 = vld [vmem:[#allocation11 + $0x2c] sm:$0xf]
    %v3978 = vld [vmem:[#allocation11 + $0x30] sm:$0xf]
    %v3979 = vld [vmem:[#allocation11 + $0x34] sm:$0xf]
    %v3980 = vld [vmem:[#allocation11 + $0x38] sm:$0xf]
    %v3981 = vld [vmem:[#allocation11 + $0x3c] sm:$0xf]
    %v3982 = vld [vmem:[%s8] sm:$0x1]
    %v3984 = vlaneseq
    %v3985 = vshrl.u32 %v3984, 7
    %v3986 = vsub.s32 0, %v3985
    %v3987 = vrot.slane %v3982, %v3986
    %v3991 = vunpack.c.l.b16 %v3964
    %v3992 = vunpack.c.l.b16 %v3965
    %vm3993 = vcmask 1041409
    %v3994 = vsel %vm3993, %v3992, %v3991
    %v3995 = vpack.c.b16 %v3994, %v3994
    %v4013 = vunpack.c.l.b16 %v3966
    %v4014 = vunpack.c.l.b16 %v3967
    %v4015 = vunpack.c.l.b16 %v3968
    %v4016 = vunpack.c.l.b16 %v3969
    %v4017 = vunpack.c.l.b16 %v3970
    %v4018 = vunpack.c.l.b16 %v3971
    %v4019 = vunpack.c.l.b16 %v3972
    %v4020 = vunpack.c.l.b16 %v3973
    %v4021 = vunpack.c.l.b16 %v3974
    %v4022 = vunpack.c.l.b16 %v3975
    %v4023 = vunpack.c.l.b16 %v3976
    %v4024 = vunpack.c.l.b16 %v3977
    %v4025 = vunpack.c.l.b16 %v3978
    %v4026 = vunpack.c.l.b16 %v3979
    %v4027 = vunpack.c.l.b16 %v3980
    %v4028 = vunpack.c.l.b16 %v3981
    %v4029 = vpack.c.b16 %v4014, %v4013
    %v4030 = vpack.c.b16 %v4016, %v4015
    %v4031 = vpack.c.b16 %v4018, %v4017
    %v4032 = vpack.c.b16 %v4020, %v4019
    %v4033 = vpack.c.b16 %v4022, %v4021
    %v4034 = vpack.c.b16 %v4024, %v4023
    %v4035 = vpack.c.b16 %v4026, %v4025
    %v4036 = vpack.c.b16 %v4028, %v4027
    %4045 = vmatprep.subr.bf16.mxu0 0
    %4046 = vmatpush1.bf16.msra.mxu0 %v4029
    %4047 = vmatprep.subr.bf16.mxu0 0
    %4048 = vmatpush1.bf16.msra.mxu0 %v4030
    %4049 = vmatprep.subr.bf16.mxu0 0
    %4050 = vmatpush1.bf16.msra.mxu0 %v4031
    %4051 = vmatprep.subr.bf16.mxu0 0
    %4052 = vmatpush1.bf16.msra.mxu0 %v4032
    %4053 = vmatprep.subr.bf16.mxu0 0
    %4054 = vmatpush1.bf16.msra.mxu0 %v4033
    %4055 = vmatprep.subr.bf16.mxu0 0
    %4056 = vmatpush1.bf16.msra.mxu0 %v4034
    %4057 = vmatprep.subr.bf16.mxu0 0
    %4058 = vmatpush1.bf16.msra.mxu0 %v4035
    %4059 = vmatprep.subr.bf16.mxu0 0
    %4060 = vmatpush1.bf16.msra.mxu0 %v4036
    %4061 = vmatprep.subr.bf16.mxu0 0
    %4062 = vmatpush1.bf16.msra.mxu0 0
    %4063 = vmatprep.subr.bf16.mxu0 0
    %4064 = vmatpush1.bf16.msra.mxu0 0
    %4065 = vmatprep.subr.bf16.mxu0 0
    %4066 = vmatpush1.bf16.msra.mxu0 0
    %4067 = vmatprep.subr.bf16.mxu0 0
    %4068 = vmatpush1.bf16.msra.mxu0 0
    %4069 = vmatprep.subr.bf16.mxu0 0
    %4070 = vmatpush1.bf16.msra.mxu0 0
    %4071 = vmatprep.subr.bf16.mxu0 0
    %4072 = vmatpush1.bf16.msra.mxu0 0
    %4073 = vmatprep.subr.bf16.mxu0 0
    %4074 = vmatpush1.bf16.msra.mxu0 0
    %4075 = vmatprep.subr.bf16.mxu0 0
    %4076 = vmatpush1.bf16.msra.mxu0 0
    %4077 = vmatprep.mubr.bf16.mxu0 0
    %4078 = vmatmul.mubr.bf16.gmra.mrb[0].mxu0 %v3995
    %v4079 = vpop.f32.mrb[0].mxu0
    %v4080 = vadd.f32 %v3987, %v4079
    %v4081 = vpop.f32.mrb[0].mxu0
    %v4082 = vpop.f32.mrb[0].mxu0
    %v4083 = vpop.f32.mrb[0].mxu0
    %4084 = vdwg.mxu0
    %v4085 = vsub.f32 0.0, %v4080
    %v4086 = vmul.f32 %v4085, 1.442695
    %v4087 = vpow.pop %v4086
    %v4088 = vadd.f32 %v4087, 1.0
    %v4089 = vrcp.pop %v4088
    %v4090 = vmul.f32 %v4080, %v4089
    %v4091 = vpack.c.bf16 %v4090, %v4090
    %v4092 = vld [vmem:[#allocation12] sm:$0xf]
    %v4093 = vld [vmem:[#allocation12 + $0x4] sm:$0xf]
    %v4094 = vld [vmem:[#allocation12 + $0x8] sm:$0xf]
    %v4095 = vld [vmem:[#allocation12 + $0xc] sm:$0xf]
    %v4096 = vld [vmem:[#allocation12 + $0x10] sm:$0xf]
    %v4097 = vld [vmem:[#allocation12 + $0x14] sm:$0xf]
    %v4098 = vld [vmem:[#allocation12 + $0x18] sm:$0xf]
    %v4099 = vld [vmem:[#allocation12 + $0x1c] sm:$0xf]
    %v4100 = vld [vmem:[#allocation12 + $0x20] sm:$0xf]
    %v4101 = vld [vmem:[#allocation12 + $0x24] sm:$0xf]
    %v4102 = vld [vmem:[#allocation12 + $0x28] sm:$0xf]
    %v4103 = vld [vmem:[#allocation12 + $0x2c] sm:$0xf]
    %v4104 = vld [vmem:[#allocation12 + $0x30] sm:$0xf]
    %v4105 = vld [vmem:[#allocation12 + $0x34] sm:$0xf]
    %v4106 = vld [vmem:[#allocation12 + $0x38] sm:$0xf]
    %v4107 = vld [vmem:[#allocation12 + $0x3c] sm:$0xf]
    %v4108 = vld [vmem:[%s10] sm:$0x1]
    %v4110 = vlaneseq
    %v4111 = vshrl.u32 %v4110, 7
    %v4112 = vsub.s32 0, %v4111
    %v4113 = vrot.slane %v4108, %v4112
    %v4131 = vunpack.c.l.b16 %v4092
    %v4132 = vunpack.c.l.b16 %v4093
    %v4133 = vunpack.c.l.b16 %v4094
    %v4134 = vunpack.c.l.b16 %v4095
    %v4135 = vunpack.c.l.b16 %v4096
    %v4136 = vunpack.c.l.b16 %v4097
    %v4137 = vunpack.c.l.b16 %v4098
    %v4138 = vunpack.c.l.b16 %v4099
    %v4139 = vunpack.c.l.b16 %v4100
    %v4140 = vunpack.c.l.b16 %v4101
    %v4141 = vunpack.c.l.b16 %v4102
    %v4142 = vunpack.c.l.b16 %v4103
    %v4143 = vunpack.c.l.b16 %v4104
    %v4144 = vunpack.c.l.b16 %v4105
    %v4145 = vunpack.c.l.b16 %v4106
    %v4146 = vunpack.c.l.b16 %v4107
    %v4147 = vpack.c.b16 %v4132, %v4131
    %v4148 = vpack.c.b16 %v4134, %v4133
    %v4149 = vpack.c.b16 %v4136, %v4135
    %v4150 = vpack.c.b16 %v4138, %v4137
    %v4151 = vpack.c.b16 %v4140, %v4139
    %v4152 = vpack.c.b16 %v4142, %v4141
    %v4153 = vpack.c.b16 %v4144, %v4143
    %v4154 = vpack.c.b16 %v4146, %v4145
    %4163 = vmatprep.subr.bf16.mxu0 0
    %4164 = vmatpush1.bf16.msra.mxu0 %v4147
    %4165 = vmatprep.subr.bf16.mxu0 0
    %4166 = vmatpush1.bf16.msra.mxu0 %v4148
    %4167 = vmatprep.subr.bf16.mxu0 0
    %4168 = vmatpush1.bf16.msra.mxu0 %v4149
    %4169 = vmatprep.subr.bf16.mxu0 0
    %4170 = vmatpush1.bf16.msra.mxu0 %v4150
    %4171 = vmatprep.subr.bf16.mxu0 0
    %4172 = vmatpush1.bf16.msra.mxu0 %v4151
    %4173 = vmatprep.subr.bf16.mxu0 0
    %4174 = vmatpush1.bf16.msra.mxu0 %v4152
    %4175 = vmatprep.subr.bf16.mxu0 0
    %4176 = vmatpush1.bf16.msra.mxu0 %v4153
    %4177 = vmatprep.subr.bf16.mxu0 0
    %4178 = vmatpush1.bf16.msra.mxu0 %v4154
    %4179 = vmatprep.subr.bf16.mxu0 0
    %4180 = vmatpush1.bf16.msra.mxu0 0
    %4181 = vmatprep.subr.bf16.mxu0 0
    %4182 = vmatpush1.bf16.msra.mxu0 0
    %4183 = vmatprep.subr.bf16.mxu0 0
    %4184 = vmatpush1.bf16.msra.mxu0 0
    %4185 = vmatprep.subr.bf16.mxu0 0
    %4186 = vmatpush1.bf16.msra.mxu0 0
    %4187 = vmatprep.subr.bf16.mxu0 0
    %4188 = vmatpush1.bf16.msra.mxu0 0
    %4189 = vmatprep.subr.bf16.mxu0 0
    %4190 = vmatpush1.bf16.msra.mxu0 0
    %4191 = vmatprep.subr.bf16.mxu0 0
    %4192 = vmatpush1.bf16.msra.mxu0 0
    %4193 = vmatprep.subr.bf16.mxu0 0
    %4194 = vmatpush1.bf16.msra.mxu0 0
    %4195 = vmatprep.mubr.bf16.mxu0 0
    %4196 = vmatmul.mubr.bf16.gmra.mrb[0].mxu0 %v4091
    %v4197 = vpop.f32.mrb[0].mxu0
    %v4198 = vadd.f32 %v4113, %v4197
    %v4199 = vpop.f32.mrb[0].mxu0
    %v4200 = vpop.f32.mrb[0].mxu0
    %v4201 = vpop.f32.mrb[0].mxu0
    %4202 = vdwg.mxu0
    %v4203 = vsub.f32 0.0, %v4198
    %v4204 = vmul.f32 %v4203, 1.442695
    %v4205 = vpow.pop %v4204
    %v4206 = vadd.f32 %v4205, 1.0
    %v4207 = vrcp.pop %v4206
    %v4210 = vunpack.c.l.s4 1966171168
    %v4211 = vunpack.c.0.s8 %v4210
    %v4212 = vlaneseq
    %v4213 = vshrl.u32 %v4212, 7
    %v4214 = vsub.s32 %v4211, %v4213
    %v4215 = vrot.slane %v4207, %v4214
    %v4216 = vcombine.high %v4215, %v4215
    %v4218 = vunpack.c.l.s4 1966171168
    %v4219 = vunpack.c.0.s8 %v4218
    %v4220 = vlaneseq
    %v4221 = vshrl.u32 %v4220, 7
    %v4222 = vsub.s32 %v4219, %v4221
    %v4223 = vrot.slane %v4215, %v4222
    %v4225 = vunpack.c.l.s4 1966171168
    %v4226 = vunpack.c.0.s8 %v4225
    %v4227 = vlaneseq
    %v4228 = vshrl.u32 %v4227, 7
    %v4229 = vsub.s32 %v4226, %v4228
    %v4230 = vrot.slane %v4216, %v4229
    %v4231 = vlaneseq
    %v4232 = vshrl.u32 %v4231, 7
    %v4233 = vsub.s32 0, %v4232
    %v4234 = vrot.slane %v4223, %v4233
    %v4235 = vlaneseq
    %v4236 = vshrl.u32 %v4235, 7
    %v4237 = vsub.s32 0, %v4236
    %v4238 = vrot.slane %v4230, %v4237
    %v4241 = vmul.f32 %v3633, %v4234
    %v4242 = vmul.f32 %v3636, %v4234
    %v4243 = vmul.f32 %v3641, %v4234
    %v4244 = vmul.f32 %v3644, %v4234
    %v4245 = vmul.f32 %v3649, %v4234
    %v4246 = vmul.f32 %v3652, %v4234
    %v4247 = vmul.f32 %v3657, %v4234
    %v4248 = vmul.f32 %v3660, %v4234
    %v4249 = vmul.f32 %v3665, %v4234
    %v4250 = vmul.f32 %v3668, %v4234
    %v4251 = vmul.f32 %v3673, %v4234
    %v4252 = vmul.f32 %v3676, %v4234
    %v4253 = vmul.f32 %v3681, %v4234
    %v4254 = vmul.f32 %v3684, %v4234
    %v4255 = vmul.f32 %v3689, %v4234
    %v4256 = vmul.f32 %v3692, %v4234
    %v4257 = vmul.f32 %v3697, %v4234
    %v4258 = vmul.f32 %v3700, %v4234
    %v4259 = vmul.f32 %v3705, %v4234
    %v4260 = vmul.f32 %v3708, %v4234
    %v4261 = vmul.f32 %v3713, %v4234
    %v4262 = vmul.f32 %v3716, %v4234
    %v4263 = vmul.f32 %v3721, %v4234
    %v4264 = vmul.f32 %v3724, %v4234
    %v4265 = vmul.f32 %v3729, %v4234
    %v4266 = vmul.f32 %v3732, %v4234
    %v4267 = vmul.f32 %v3737, %v4234
    %v4268 = vmul.f32 %v3740, %v4234
    %v4269 = vmul.f32 %v3745, %v4234
    %v4270 = vmul.f32 %v3748, %v4234
    %v4271 = vmul.f32 %v3753, %v4234
    %v4272 = vmul.f32 %v3756, %v4234
    %v4273 = vmul.f32 %v3761, %v4238
    %v4274 = vmul.f32 %v3764, %v4238
    %v4275 = vmul.f32 %v3769, %v4238
    %v4276 = vmul.f32 %v3772, %v4238
    %v4277 = vmul.f32 %v3777, %v4238
    %v4278 = vmul.f32 %v3780, %v4238
    %v4279 = vmul.f32 %v3785, %v4238
    %v4280 = vmul.f32 %v3788, %v4238
    %v4281 = vmul.f32 %v3793, %v4238
    %v4282 = vmul.f32 %v3796, %v4238
    %v4283 = vmul.f32 %v3801, %v4238
    %v4284 = vmul.f32 %v3804, %v4238
    %v4285 = vmul.f32 %v3809, %v4238
    %v4286 = vmul.f32 %v3812, %v4238
    %v4287 = vmul.f32 %v3817, %v4238
    %v4288 = vmul.f32 %v3820, %v4238
    %v4289 = vmul.f32 %v3825, %v4238
    %v4290 = vmul.f32 %v3828, %v4238
    %v4291 = vmul.f32 %v3833, %v4238
    %v4292 = vmul.f32 %v3836, %v4238
    %v4293 = vmul.f32 %v3841, %v4238
    %v4294 = vmul.f32 %v3844, %v4238
    %v4295 = vmul.f32 %v3849, %v4238
    %v4296 = vmul.f32 %v3852, %v4238
    %v4297 = vmul.f32 %v3857, %v4238
    %v4298 = vmul.f32 %v3860, %v4238
    %v4299 = vmul.f32 %v3865, %v4238
    %v4300 = vmul.f32 %v3868, %v4238
    %v4301 = vmul.f32 %v3873, %v4238
    %v4302 = vmul.f32 %v3876, %v4238
    %v4303 = vmul.f32 %v3881, %v4238
    %v4304 = vmul.f32 %v3884, %v4238
    %v4305 = vunpack.c.l.bf16 %v122
    %v4306 = vunpack.c.l.bf16 %v123
    %v4307 = vunpack.c.l.bf16 %v124
    %v4308 = vunpack.c.l.bf16 %v125
    %v4309 = vunpack.c.l.bf16 %v126
    %v4310 = vunpack.c.l.bf16 %v127
    %v4311 = vunpack.c.l.bf16 %v128
    %v4312 = vunpack.c.l.bf16 %v129
    %v4313 = vunpack.c.l.bf16 %v130
    %v4314 = vunpack.c.l.bf16 %v131
    %v4315 = vunpack.c.l.bf16 %v132
    %v4316 = vunpack.c.l.bf16 %v133
    %v4317 = vunpack.c.l.bf16 %v134
    %v4318 = vunpack.c.l.bf16 %v135
    %v4319 = vunpack.c.l.bf16 %v136
    %v4320 = vunpack.c.l.bf16 %v137
    %v4321 = vunpack.c.l.bf16 %v138
    %v4322 = vunpack.c.l.bf16 %v139
    %v4323 = vunpack.c.l.bf16 %v140
    %v4324 = vunpack.c.l.bf16 %v141
    %v4325 = vunpack.c.l.bf16 %v142
    %v4326 = vunpack.c.l.bf16 %v143
    %v4327 = vunpack.c.l.bf16 %v144
    %v4328 = vunpack.c.l.bf16 %v145
    %v4329 = vunpack.c.l.bf16 %v146
    %v4330 = vunpack.c.l.bf16 %v147
    %v4331 = vunpack.c.l.bf16 %v148
    %v4332 = vunpack.c.l.bf16 %v149
    %v4333 = vunpack.c.l.bf16 %v150
    %v4334 = vunpack.c.l.bf16 %v151
    %v4335 = vunpack.c.l.bf16 %v152
    %v4336 = vunpack.c.l.bf16 %v153
    %v4337 = vunpack.c.l.bf16 %v154
    %v4338 = vunpack.c.l.bf16 %v155
    %v4339 = vunpack.c.l.bf16 %v156
    %v4340 = vunpack.c.l.bf16 %v157
    %v4341 = vunpack.c.l.bf16 %v158
    %v4342 = vunpack.c.l.bf16 %v159
    %v4343 = vunpack.c.l.bf16 %v160
    %v4344 = vunpack.c.l.bf16 %v161
    %v4345 = vunpack.c.l.bf16 %v162
    %v4346 = vunpack.c.l.bf16 %v163
    %v4347 = vunpack.c.l.bf16 %v164
    %v4348 = vunpack.c.l.bf16 %v165
    %v4349 = vunpack.c.l.bf16 %v166
    %v4350 = vunpack.c.l.bf16 %v167
    %v4351 = vunpack.c.l.bf16 %v168
    %v4352 = vunpack.c.l.bf16 %v169
    %v4353 = vunpack.c.l.bf16 %v170
    %v4354 = vunpack.c.l.bf16 %v171
    %v4355 = vunpack.c.l.bf16 %v172
    %v4356 = vunpack.c.l.bf16 %v173
    %v4357 = vunpack.c.l.bf16 %v174
    %v4358 = vunpack.c.l.bf16 %v175
    %v4359 = vunpack.c.l.bf16 %v176
    %v4360 = vunpack.c.l.bf16 %v177
    %v4361 = vunpack.c.l.bf16 %v178
    %v4362 = vunpack.c.l.bf16 %v179
    %v4363 = vunpack.c.l.bf16 %v180
    %v4364 = vunpack.c.l.bf16 %v181
    %v4365 = vunpack.c.l.bf16 %v182
    %v4366 = vunpack.c.l.bf16 %v183
    %v4367 = vunpack.c.l.bf16 %v184
    %v4368 = vunpack.c.l.bf16 %v185
    %v4369 = vadd.f32 %v4241, %v4305
    %v4370 = vadd.f32 %v4242, %v4306
    %v4371 = vadd.f32 %v4243, %v4307
    %v4372 = vadd.f32 %v4244, %v4308
    %v4373 = vadd.f32 %v4245, %v4309
    %v4374 = vadd.f32 %v4246, %v4310
    %v4375 = vadd.f32 %v4247, %v4311
    %v4376 = vadd.f32 %v4248, %v4312
    %v4377 = vadd.f32 %v4249, %v4313
    %v4378 = vadd.f32 %v4250, %v4314
    %v4379 = vadd.f32 %v4251, %v4315
    %v4380 = vadd.f32 %v4252, %v4316
    %v4381 = vadd.f32 %v4253, %v4317
    %v4382 = vadd.f32 %v4254, %v4318
    %v4383 = vadd.f32 %v4255, %v4319
    %v4384 = vadd.f32 %v4256, %v4320
    %v4385 = vadd.f32 %v4257, %v4321
    %v4386 = vadd.f32 %v4258, %v4322
    %v4387 = vadd.f32 %v4259, %v4323
    %v4388 = vadd.f32 %v4260, %v4324
    %v4389 = vadd.f32 %v4261, %v4325
    %v4390 = vadd.f32 %v4262, %v4326
    %v4391 = vadd.f32 %v4263, %v4327
    %v4392 = vadd.f32 %v4264, %v4328
    %v4393 = vadd.f32 %v4265, %v4329
    %v4394 = vadd.f32 %v4266, %v4330
    %v4395 = vadd.f32 %v4267, %v4331
    %v4396 = vadd.f32 %v4268, %v4332
    %v4397 = vadd.f32 %v4269, %v4333
    %v4398 = vadd.f32 %v4270, %v4334
    %v4399 = vadd.f32 %v4271, %v4335
    %v4400 = vadd.f32 %v4272, %v4336
    %v4401 = vadd.f32 %v4273, %v4337
    %v4402 = vadd.f32 %v4274, %v4338
    %v4403 = vadd.f32 %v4275, %v4339
    %v4404 = vadd.f32 %v4276, %v4340
    %v4405 = vadd.f32 %v4277, %v4341
    %v4406 = vadd.f32 %v4278, %v4342
    %v4407 = vadd.f32 %v4279, %v4343
    %v4408 = vadd.f32 %v4280, %v4344
    %v4409 = vadd.f32 %v4281, %v4345
    %v4410 = vadd.f32 %v4282, %v4346
    %v4411 = vadd.f32 %v4283, %v4347
    %v4412 = vadd.f32 %v4284, %v4348
    %v4413 = vadd.f32 %v4285, %v4349
    %v4414 = vadd.f32 %v4286, %v4350
    %v4415 = vadd.f32 %v4287, %v4351
    %v4416 = vadd.f32 %v4288, %v4352
    %v4417 = vadd.f32 %v4289, %v4353
    %v4418 = vadd.f32 %v4290, %v4354
    %v4419 = vadd.f32 %v4291, %v4355
    %v4420 = vadd.f32 %v4292, %v4356
    %v4421 = vadd.f32 %v4293, %v4357
    %v4422 = vadd.f32 %v4294, %v4358
    %v4423 = vadd.f32 %v4295, %v4359
    %v4424 = vadd.f32 %v4296, %v4360
    %v4425 = vadd.f32 %v4297, %v4361
    %v4426 = vadd.f32 %v4298, %v4362
    %v4427 = vadd.f32 %v4299, %v4363
    %v4428 = vadd.f32 %v4300, %v4364
    %v4429 = vadd.f32 %v4301, %v4365
    %v4430 = vadd.f32 %v4302, %v4366
    %v4431 = vadd.f32 %v4303, %v4367
    %v4432 = vadd.f32 %v4304, %v4368
    %4433 = vst [vmem:[#allocation14] sm:$0xff] %v4369
    %4434 = vst [vmem:[#allocation14 + $0x8] sm:$0xff] %v4370
    %4435 = vst [vmem:[#allocation14 + $0x10] sm:$0xff] %v4371
    %4436 = vst [vmem:[#allocation14 + $0x18] sm:$0xff] %v4372
    %4437 = vst [vmem:[#allocation14 + $0x20] sm:$0xff] %v4373
    %4438 = vst [vmem:[#allocation14 + $0x28] sm:$0xff] %v4374
    %4439 = vst [vmem:[#allocation14 + $0x30] sm:$0xff] %v4375
    %4440 = vst [vmem:[#allocation14 + $0x38] sm:$0xff] %v4376
    %4441 = vst [vmem:[#allocation14 + $0x40] sm:$0xff] %v4377
    %4442 = vst [vmem:[#allocation14 + $0x48] sm:$0xff] %v4378
    %4443 = vst [vmem:[#allocation14 + $0x50] sm:$0xff] %v4379
    %4444 = vst [vmem:[#allocation14 + $0x58] sm:$0xff] %v4380
    %4445 = vst [vmem:[#allocation14 + $0x60] sm:$0xff] %v4381
    %4446 = vst [vmem:[#allocation14 + $0x68] sm:$0xff] %v4382
    %4447 = vst [vmem:[#allocation14 + $0x70] sm:$0xff] %v4383
    %4448 = vst [vmem:[#allocation14 + $0x78] sm:$0xff] %v4384
    %4449 = vst [vmem:[#allocation14 + $0x80] sm:$0xff] %v4385
    %4450 = vst [vmem:[#allocation14 + $0x88] sm:$0xff] %v4386
    %4451 = vst [vmem:[#allocation14 + $0x90] sm:$0xff] %v4387
    %4452 = vst [vmem:[#allocation14 + $0x98] sm:$0xff] %v4388
    %4453 = vst [vmem:[#allocation14 + $0xa0] sm:$0xff] %v4389
    %4454 = vst [vmem:[#allocation14 + $0xa8] sm:$0xff] %v4390
    %4455 = vst [vmem:[#allocation14 + $0xb0] sm:$0xff] %v4391
    %4456 = vst [vmem:[#allocation14 + $0xb8] sm:$0xff] %v4392
    %4457 = vst [vmem:[#allocation14 + $0xc0] sm:$0xff] %v4393
    %4458 = vst [vmem:[#allocation14 + $0xc8] sm:$0xff] %v4394
    %4459 = vst [vmem:[#allocation14 + $0xd0] sm:$0xff] %v4395
    %4460 = vst [vmem:[#allocation14 + $0xd8] sm:$0xff] %v4396
    %4461 = vst [vmem:[#allocation14 + $0xe0] sm:$0xff] %v4397
    %4462 = vst [vmem:[#allocation14 + $0xe8] sm:$0xff] %v4398
    %4463 = vst [vmem:[#allocation14 + $0xf0] sm:$0xff] %v4399
    %4464 = vst [vmem:[#allocation14 + $0xf8] sm:$0xff] %v4400
    %4465 = vst [vmem:[#allocation14 + $0x100] sm:$0xff] %v4401
    %4466 = vst [vmem:[#allocation14 + $0x108] sm:$0xff] %v4402
    %4467 = vst [vmem:[#allocation14 + $0x110] sm:$0xff] %v4403
    %4468 = vst [vmem:[#allocation14 + $0x118] sm:$0xff] %v4404
    %4469 = vst [vmem:[#allocation14 + $0x120] sm:$0xff] %v4405
    %4470 = vst [vmem:[#allocation14 + $0x128] sm:$0xff] %v4406
    %4471 = vst [vmem:[#allocation14 + $0x130] sm:$0xff] %v4407
    %4472 = vst [vmem:[#allocation14 + $0x138] sm:$0xff] %v4408
    %4473 = vst [vmem:[#allocation14 + $0x140] sm:$0xff] %v4409
    %4474 = vst [vmem:[#allocation14 + $0x148] sm:$0xff] %v4410
    %4475 = vst [vmem:[#allocation14 + $0x150] sm:$0xff] %v4411
    %4476 = vst [vmem:[#allocation14 + $0x158] sm:$0xff] %v4412
    %4477 = vst [vmem:[#allocation14 + $0x160] sm:$0xff] %v4413
    %4478 = vst [vmem:[#allocation14 + $0x168] sm:$0xff] %v4414
    %4479 = vst [vmem:[#allocation14 + $0x170] sm:$0xff] %v4415
    %4480 = vst [vmem:[#allocation14 + $0x178] sm:$0xff] %v4416
    %4481 = vst [vmem:[#allocation14 + $0x180] sm:$0xff] %v4417
    %4482 = vst [vmem:[#allocation14 + $0x188] sm:$0xff] %v4418
    %4483 = vst [vmem:[#allocation14 + $0x190] sm:$0xff] %v4419
    %4484 = vst [vmem:[#allocation14 + $0x198] sm:$0xff] %v4420
    %4485 = vst [vmem:[#allocation14 + $0x1a0] sm:$0xff] %v4421
    %4486 = vst [vmem:[#allocation14 + $0x1a8] sm:$0xff] %v4422
    %4487 = vst [vmem:[#allocation14 + $0x1b0] sm:$0xff] %v4423
    %4488 = vst [vmem:[#allocation14 + $0x1b8] sm:$0xff] %v4424
    %4489 = vst [vmem:[#allocation14 + $0x1c0] sm:$0xff] %v4425
    %4490 = vst [vmem:[#allocation14 + $0x1c8] sm:$0xff] %v4426
    %4491 = vst [vmem:[#allocation14 + $0x1d0] sm:$0xff] %v4427
    %4492 = vst [vmem:[#allocation14 + $0x1d8] sm:$0xff] %v4428
    %4493 = vst [vmem:[#allocation14 + $0x1e0] sm:$0xff] %v4429
    %4494 = vst [vmem:[#allocation14 + $0x1e8] sm:$0xff] %v4430
    %4495 = vst [vmem:[#allocation14 + $0x1f0] sm:$0xff] %v4431
    %4496 = vst [vmem:[#allocation14 + $0x1f8] sm:$0xff] %v4432
    // Predicated region
    $region70: #{tpu_custom_call.1} parent=1 // pred_check
      _
    $region71: #{tpu_custom_call.1} parent=1 // pred_check_branch
      %4498 = sbr.rel (0) target = $region73
    $region72: #{tpu_custom_call.1} parent=1 // pred_region
      %s4500 = ssub.s32 8192, 8192
      %4501 = vsyncadd [#allocation5], %s4500
      %s4502 = sshll.u32 [#allocation14], 4
      %s4503 = int_to_ptr.vmem [resolvable:$true] %s4502
      %4508 = dma.vmem_to_hbm [thread:$0]  %s4503, 8192, %s11, [#allocation5], 128, 128, 8
    $region73: #{tpu_custom_call.1} parent=1 // pred_fallthru
      _
    // Predicated region
    $region74: #{tpu_custom_call.1} parent=1 // pred_check
      _
    $region75: #{tpu_custom_call.1} parent=1 // pred_check_branch
      %4510 = sbr.rel (0) target = $region77
    $region76: #{tpu_custom_call.1} parent=1 // pred_region
      %4511 = dma.done [#allocation5], 8192
    $region77: #{tpu_custom_call.1} parent=1 // pred_fallthru
      _
    %4512 = vsyncpa [#allocation4], 1
    %4513 = vsyncpa [#allocation7], 1
    %4514 = vsyncpa [#allocation10], 1
    %4515 = vsyncpa [#allocation13], 1
    %4516 = vsyncpa [#allocation5], 1

</llo_original>
